<compile_context>
chip_gen: v7x
topology: tpu7x:2x2x1
jax: 0.10.0
libtpu: 0.0.40
codegen_flags: <defaults>
</compile_context>

<pallas_src>
import math

import jax
import jax.numpy as jnp
from jax import lax
from jax.experimental import pallas as pl
from jax.experimental.pallas import tpu as pltpu


def _round_up(x, m):
    return (x + m - 1) // m * m


def gru_seq_kernel(h0_ref, gx_ref, urz_ref, uh_ref, out_ref, h_scr):
    """One grid step = `Tb` GRU time steps for one batch block.

    h0_ref : (Bb, Hp)        f32   initial hidden (loaded into scratch at t==0)
    gx_ref : (Tb, Bb, 3*Hp)  f32   precomputed x@[Wr|Wz|Wh] + [br|bz|bh]
    urz_ref: (Hp, 2*Hp)      bf16  [Ur | Uz]   (VMEM-resident, constant index)
    uh_ref : (Hp, Hp)        bf16  Uh          (VMEM-resident, constant index)
    out_ref: (Tb, Bb, Hp)          hidden state after each of the Tb steps
    h_scr  : (Bb, Hp)        f32   running hidden state (scratch accumulator)
    """
    t_blk = pl.program_id(1)          # time is the innermost grid axis (pinned)
    H = uh_ref.shape[0]
    Tb = gx_ref.shape[0]

    @pl.when(t_blk == 0)
    def _():
        h_scr[...] = h0_ref[...]

    def step(i, h):
        gx = gx_ref[i]                                       # (Bb, 3Hp) f32
        # Fused h contribution to r and z: one MXU matmul.
        ghrz = jnp.dot(h.astype(urz_ref.dtype), urz_ref[...],
                       preferred_element_type=jnp.float32)   # (Bb, 2Hp)
        r = jax.nn.sigmoid(gx[:, :H] + ghrz[:, :H])
        z = jax.nn.sigmoid(gx[:, H:2 * H] + ghrz[:, H:])
        # Candidate hidden: second MXU matmul on (r*h)  -- original (r*h)@Uh
        # semantics of GRU_cell.forward (NOT torch.nn.GRU's r*(h@Uh)).
        h_tilde = jnp.tanh(
            gx[:, 2 * H:]
            + jnp.dot((r * h).astype(uh_ref.dtype), uh_ref[...],
                      preferred_element_type=jnp.float32))
        h_new = (1.0 - z) * h + z * h_tilde
        out_ref[i] = h_new.astype(out_ref.dtype)
        return h_new

    # Tb is a small static trip count -> fully unrolled for ILP across steps.
    h_final = lax.fori_loop(0, Tb, step, h_scr[...], unroll=True)
    h_scr[...] = h_final


def gru_layer(xs, h0, params, *, batch_block=None, time_block=None,
              out_dtype=jnp.float32):
    """Run the GRU cell over a full sequence.

    xs     : (T, B, E) f32
    h0     : (B, H)    f32
    params : (Wr, Ur, br, Wz, Uz, bz, Wh, Uh, bh) with PyTorch shapes
             W*: (E, H), U*: (H, H), b*: (H,)
    Returns: (T, B, H) out_dtype — hidden state after each step (out[t] = h_{t+1}).
    """
    wr, ur, br, wz, uz, bz, wh, uh, bh = params
    T, B, E = xs.shape
    H = h0.shape[1]

    # Lane-dense / sublane-aligned padded shapes.  Zero padding is exact for
    # this GRU formulation: padded H columns never feed real outputs (the
    # corresponding U rows are zero) and padded batch rows are sliced off.
    Ep = _round_up(E, 128)
    Hp = _round_up(H, 128)
    Bp = _round_up(B, 8)

    # --- batch blocking: keep the MXU M-dimension wide; don't shard small batches.
    if batch_block is None:
        batch_block = min(Bp, 256)
    batch_block = max(8, _round_up(batch_block, 8))
    Bp = _round_up(Bp, batch_block)
    nb = Bp // batch_block

    # --- time blocking: amortize per-grid-step overhead, bounded by VMEM budget.
    if time_block is None:
        time_block = 1
        for tb in (8, 4, 2):
            if T % tb == 0 and tb * batch_block * 3 * Hp * 4 <= (4 << 20):
                time_block = tb
                break
    assert T % time_block == 0, "time_block must divide the sequence length"
    Tb = time_block

    def pad2(a, rows, cols):
        return jnp.pad(a, ((0, rows - a.shape[0]), (0, cols - a.shape[1])))

    def pad1(a, n):
        return jnp.pad(a, (0, n - a.shape[0]))

    # Fused weights / biases (bf16 MXU operands, f32 bias).
    w_fused = jnp.concatenate(
        [pad2(wr, Ep, Hp), pad2(wz, Ep, Hp), pad2(wh, Ep, Hp)],
        axis=1).astype(jnp.bfloat16)                                       # (Ep, 3Hp)
    urz_fused = jnp.concatenate(
        [pad2(ur, Hp, Hp), pad2(uz, Hp, Hp)], axis=1).astype(jnp.bfloat16)  # (Hp, 2Hp)
    uh_p = pad2(uh, Hp, Hp).astype(jnp.bfloat16)                            # (Hp, Hp)
    bias = jnp.concatenate([pad1(br, Hp), pad1(bz, Hp), pad1(bh, Hp)])      # (3Hp,)
    bias = bias.astype(jnp.float32)

    xs_p = jnp.pad(xs, ((0, 0), (0, Bp - B), (0, Ep - E))).astype(jnp.bfloat16)
    h0_p = pad2(h0, Bp, Hp).astype(jnp.float32)

    # ---- Hoisted input-gate matmul: one full-occupancy (T*Bp, Ep)x(Ep, 3Hp)
    # matmul outside the serial recurrence (plain XLA; bf16 in, f32 acc).
    gates_x = jnp.einsum("tbe,eg->tbg", xs_p, w_fused,
                         preferred_element_type=jnp.float32) + bias  # (T, Bp, 3Hp) f32

    # ---- Explicit VMEM budget (conservative: assume double-buffering everywhere).
    out_itemsize = jnp.dtype(out_dtype).itemsize
    const_bytes = 2 * ((Hp * 2 * Hp + Hp * Hp) * 2)          # recurrent weights (bf16)
    h0_bytes = 2 * batch_block * Hp * 4
    gx_bytes = 2 * Tb * batch_block * 3 * Hp * 4
    out_bytes = 2 * Tb * batch_block * Hp * out_itemsize
    scratch_bytes = batch_block * Hp * 4
    needed = const_bytes + h0_bytes + gx_bytes + out_bytes + scratch_bytes
    vmem_limit = int(min(100 << 20, max(32 << 20, int(needed * 1.25) + (2 << 20))))

    def run(single_buffer_consts):
        # Constant-index weights: request single buffering (pure VMEM saving,
        # their index_map never changes).
        const_kwargs = {}
        if single_buffer_consts:
            const_kwargs = dict(pipeline_mode=pl.Buffered(1))

        in_specs = [
            pl.BlockSpec((batch_block, Hp), lambda b, t: (b, 0)),              # h0
            pl.BlockSpec((Tb, batch_block, 3 * Hp), lambda b, t: (t, b, 0)),   # gates_x
            pl.BlockSpec((Hp, 2 * Hp), lambda b, t: (0, 0), **const_kwargs),   # [Ur|Uz]
            pl.BlockSpec((Hp, Hp), lambda b, t: (0, 0), **const_kwargs),       # Uh
        ]
        return pl.pallas_call(
            gru_seq_kernel,
            out_shape=jax.ShapeDtypeStruct((T, Bp, Hp), out_dtype),
            grid_spec=pltpu.PrefetchScalarGridSpec(
                num_scalar_prefetch=0,
                # Time MUST stay the innermost axis (scratch carries h across it).
                grid=(nb, T // Tb),
                in_specs=in_specs,
                out_specs=pl.BlockSpec((Tb, batch_block, Hp),
                                       lambda b, t: (t, b, 0)),
                scratch_shapes=[pltpu.VMEM((batch_block, Hp), jnp.float32)],
            ),
            compiler_params=pltpu.CompilerParams(
                dimension_semantics=("parallel", "arbitrary"),
                vmem_limit_bytes=vmem_limit),
        )(h0_p, gates_x, urz_fused, uh_p)

    try:
        out = run(True)
    except Exception:
        # Older JAX without single-buffer (pl.Buffered(1)) support for the
        # top-level pipeline: fall back to default double-buffering.
        out = run(False)

    return out[:, :B, :H]


def gru_cell(x, hidden, params):
    """Single-step GRU cell (matches GRU_cell.forward): x (B,E), hidden (B,H)."""
    return gru_layer(x[None, ...], hidden, params)[0]


def gru_layer_reference(xs, h0, params):
    """Pure-JAX f32 reference matching the PyTorch forward, scanned over time."""
    wr, ur, br, wz, uz, bz, wh, uh, bh = params

    def step(h, x):
        r = jax.nn.sigmoid(x @ wr + h @ ur + br)
        z = jax.nn.sigmoid(x @ wz + h @ uz + bz)
        h_ = jnp.tanh(x @ wh + (r * h) @ uh + bh)
        h_new = (1.0 - z) * h + z * h_
        return h_new, h_new

    _, hs = lax.scan(step, h0, xs)
    return hs


# TODO(synk): the embedding lookup, dropout, and final Linear/softmax of the full
# GRU module are left to standard XLA ops; only the recurrent GRU cell (the
# sequential bottleneck) is implemented as a Pallas kernel here.

if __name__ == "__main__":
    # Small shapes consistent with the module: seq=8, batch=8, emb=32, hidden=32.
    T, B, E, H = 8, 8, 32, 32
    key = jax.random.PRNGKey(0)
    ks = jax.random.split(key, 12)

    # Parameter init mirroring init_weights(): U(-k, k), k = 1/sqrt(H).
    k = 1.0 / math.sqrt(H)
    u = lambda kk, shape: jax.random.uniform(kk, shape, jnp.float32, -k, k)

    xs = jax.random.normal(ks[0], (T, B, E), jnp.float32)
    h0 = jax.random.normal(ks[1], (B, H), jnp.float32)

    params = (
        u(ks[2], (E, H)),   # Wr
        u(ks[3], (H, H)),   # Ur
        u(ks[4], (H,)),     # br
        u(ks[5], (E, H)),   # Wz
        u(ks[6], (H, H)),   # Uz
        u(ks[7], (H,)),     # bz
        u(ks[8], (E, H)),   # Wh
        u(ks[9], (H, H)),   # Uh
        u(ks[10], (H,)),    # bh
    )

    # Full-sequence kernel (recurrence inside one pallas_call).
    hs = jax.block_until_ready(gru_layer(xs, h0, params))

    # Single-step (GRU_cell.forward) path as well.
    h1 = jax.block_until_ready(gru_cell(xs[0], h0, params))

    ref_hs = gru_layer_reference(xs, h0, params)

    assert hs.shape == (T, B, H)
    assert h1.shape == (B, H)
    # bf16 MXU inputs with f32 accumulation -> slightly looser tolerance than pure f32.
    assert jnp.allclose(hs, ref_hs, atol=3e-2, rtol=3e-2), "sequence mismatch vs reference"
    assert jnp.allclose(h1, ref_hs[0], atol=3e-2, rtol=3e-2), "single-step mismatch vs reference"

    print("KERNEL_OK")
</pallas_src>

<mosaic_0001>
module attributes {stable_mosaic.version = 11 : i64} {
  func.func @gru_seq_kernel(%arg0: i32, %arg1: i32, %arg2: memref<8x128xf32, #tpu.memory_space<vmem>>, %arg3: memref<8x8x384xf32, #tpu.memory_space<vmem>>, %arg4: memref<128x256xbf16, #tpu.memory_space<vmem>>, %arg5: memref<128x128xbf16, #tpu.memory_space<vmem>>, %arg6: memref<8x8x128xf32, #tpu.memory_space<vmem>>, %arg7: memref<8x128xf32, #tpu.memory_space<vmem>>) attributes {dimension_semantics = [#tpu.dimension_semantics<parallel>, #tpu.dimension_semantics<arbitrary>], iteration_bounds = array<i64: 1, 1>, scalar_prefetch = 0 : i64, scratch_operands = 1 : i64, tpu.core_type = #tpu.core_type<tc>, window_params = [{transform_indices = @transform_0, window_bounds = array<i64: 8, 128>}, {transform_indices = @transform_1, window_bounds = array<i64: 8, 8, 384>}, {pipeline_mode = #tpu.pipeline_mode<synchronous>, transform_indices = @transform_2, window_bounds = array<i64: 128, 256>}, {pipeline_mode = #tpu.pipeline_mode<synchronous>, transform_indices = @transform_3, window_bounds = array<i64: 128, 128>}, {transform_indices = @transform_4, window_bounds = array<i64: 8, 8, 128>}]} {
    %c0_i32 = arith.constant 0 : i32
    %0 = arith.cmpi eq, %arg1, %c0_i32 : i32
    %1 = arith.extui %0 : i1 to i32
    %c0_i32_0 = arith.constant 0 : i32
    %2 = arith.cmpi ne, %1, %c0_i32_0 : i32
    scf.if %2 {
      %c0_108 = arith.constant 0 : index
      %c0_109 = arith.constant 0 : index
      %309 = vector.load %arg2[%c0_108, %c0_109] : memref<8x128xf32, #tpu.memory_space<vmem>>, vector<8x128xf32>
      %c0_110 = arith.constant 0 : index
      %c0_111 = arith.constant 0 : index
      %310 = vector.load %arg7[%c0_110, %c0_111] : memref<8x128xf32, #tpu.memory_space<vmem>>, vector<8x128xf32>
      tpu.vector_store %arg7[%c0_110, %c0_111], %309 {strides = array<i32>} : memref<8x128xf32, #tpu.memory_space<vmem>>, vector<8x128xf32>,
    } else {
    }
    %c0 = arith.constant 0 : index
    %c0_1 = arith.constant 0 : index
    %3 = vector.load %arg7[%c0, %c0_1] : memref<8x128xf32, #tpu.memory_space<vmem>>, vector<8x128xf32>
    %c0_i32_2 = arith.constant 0 : i32
    %4 = arith.index_cast %c0_i32_2 : i32 to index
    %c0_3 = arith.constant 0 : index
    %c0_4 = arith.constant 0 : index
    %5 = vector.load %arg3[%4, %c0_3, %c0_4] : memref<8x8x384xf32, #tpu.memory_space<vmem>>, vector<1x8x384xf32>
    %6 = vector.shape_cast %5 : vector<1x8x384xf32> to vector<8x384xf32>
    %7 = arith.truncf %3 : vector<8x128xf32> to vector<8x128xbf16>
    %c0_5 = arith.constant 0 : index
    %c0_6 = arith.constant 0 : index
    %8 = vector.load %arg4[%c0_5, %c0_6] : memref<128x256xbf16, #tpu.memory_space<vmem>>, vector<128x256xbf16>
    %cst = arith.constant dense<0.000000e+00> : vector<8x256xf32>
    %9 = tpu.matmul %7, %8, %cst {dimension_numbers = #tpu.dot_dimension_numbers<[1], [0], [0], [1], [0, 0, 1, 1], [], []>} : vector<8x128xbf16>, vector<128x256xbf16>, vector<8x256xf32> -> vector<8x256xf32>
    %10 = vector.extract_strided_slice %6 {offsets = [0, 0], sizes = [8, 128], strides = [1, 1]} : vector<8x384xf32> to vector<8x128xf32>
    %11 = vector.extract_strided_slice %9 {offsets = [0, 0], sizes = [8, 128], strides = [1, 1]} : vector<8x256xf32> to vector<8x128xf32>
    %12 = arith.addf %10, %11 : vector<8x128xf32>
    %13 = arith.negf %12 : vector<8x128xf32>
    %14 = math.exp %13 : vector<8x128xf32>
    %cst_7 = arith.constant 1.000000e+00 : f32
    %15 = vector.broadcast %cst_7 : f32 to vector<8x128xf32>
    %16 = arith.addf %15, %14 : vector<8x128xf32>
    %17 = arith.divf %15, %16 : vector<8x128xf32>
    %18 = vector.extract_strided_slice %6 {offsets = [0, 128], sizes = [8, 128], strides = [1, 1]} : vector<8x384xf32> to vector<8x128xf32>
    %19 = vector.extract_strided_slice %9 {offsets = [0, 128], sizes = [8, 128], strides = [1, 1]} : vector<8x256xf32> to vector<8x128xf32>
    %20 = arith.addf %18, %19 : vector<8x128xf32>
    %21 = arith.negf %20 : vector<8x128xf32>
    %22 = math.exp %21 : vector<8x128xf32>
    %cst_8 = arith.constant 1.000000e+00 : f32
    %23 = vector.broadcast %cst_8 : f32 to vector<8x128xf32>
    %24 = arith.addf %23, %22 : vector<8x128xf32>
    %25 = arith.divf %23, %24 : vector<8x128xf32>
    %26 = vector.extract_strided_slice %6 {offsets = [0, 256], sizes = [8, 128], strides = [1, 1]} : vector<8x384xf32> to vector<8x128xf32>
    %27 = arith.mulf %17, %3 : vector<8x128xf32>
    %28 = arith.truncf %27 : vector<8x128xf32> to vector<8x128xbf16>
    %c0_9 = arith.constant 0 : index
    %c0_10 = arith.constant 0 : index
    %29 = vector.load %arg5[%c0_9, %c0_10] : memref<128x128xbf16, #tpu.memory_space<vmem>>, vector<128x128xbf16>
    %cst_11 = arith.constant dense<0.000000e+00> : vector<8x128xf32>
    %30 = tpu.matmul %28, %29, %cst_11 {dimension_numbers = #tpu.dot_dimension_numbers<[1], [0], [0], [1], [0, 0, 1, 1], [], []>} : vector<8x128xbf16>, vector<128x128xbf16>, vector<8x128xf32> -> vector<8x128xf32>
    %31 = arith.addf %26, %30 : vector<8x128xf32>
    %32 = math.tanh %31 : vector<8x128xf32>
    %cst_12 = arith.constant 1.000000e+00 : f32
    %33 = vector.broadcast %cst_12 : f32 to vector<8x128xf32>
    %34 = arith.subf %33, %25 : vector<8x128xf32>
    %35 = arith.mulf %34, %3 : vector<8x128xf32>
    %36 = arith.mulf %25, %32 : vector<8x128xf32>
    %37 = arith.addf %35, %36 : vector<8x128xf32>
    %38 = arith.index_cast %c0_i32_2 : i32 to index
    %c0_13 = arith.constant 0 : index
    %c0_14 = arith.constant 0 : index
    %39 = vector.load %arg6[%38, %c0_13, %c0_14] : memref<8x8x128xf32, #tpu.memory_space<vmem>>, vector<1x8x128xf32>
    %40 = vector.shape_cast %39 : vector<1x8x128xf32> to vector<8x128xf32>
    %41 = vector.shape_cast %37 : vector<8x128xf32> to vector<1x8x128xf32>
    tpu.vector_store %arg6[%38, %c0_13, %c0_14], %41 {strides = array<i32>} : memref<8x8x128xf32, #tpu.memory_space<vmem>>, vector<1x8x128xf32>,
    %c1_i32 = arith.constant 1 : i32
    %42 = arith.index_cast %c1_i32 : i32 to index
    %c0_15 = arith.constant 0 : index
    %c0_16 = arith.constant 0 : index
    %43 = vector.load %arg3[%42, %c0_15, %c0_16] : memref<8x8x384xf32, #tpu.memory_space<vmem>>, vector<1x8x384xf32>
    %44 = vector.shape_cast %43 : vector<1x8x384xf32> to vector<8x384xf32>
    %45 = arith.truncf %37 : vector<8x128xf32> to vector<8x128xbf16>
    %c0_17 = arith.constant 0 : index
    %c0_18 = arith.constant 0 : index
    %46 = vector.load %arg4[%c0_17, %c0_18] : memref<128x256xbf16, #tpu.memory_space<vmem>>, vector<128x256xbf16>
    %cst_19 = arith.constant dense<0.000000e+00> : vector<8x256xf32>
    %47 = tpu.matmul %45, %46, %cst_19 {dimension_numbers = #tpu.dot_dimension_numbers<[1], [0], [0], [1], [0, 0, 1, 1], [], []>} : vector<8x128xbf16>, vector<128x256xbf16>, vector<8x256xf32> -> vector<8x256xf32>
    %48 = vector.extract_strided_slice %44 {offsets = [0, 0], sizes = [8, 128], strides = [1, 1]} : vector<8x384xf32> to vector<8x128xf32>
    %49 = vector.extract_strided_slice %47 {offsets = [0, 0], sizes = [8, 128], strides = [1, 1]} : vector<8x256xf32> to vector<8x128xf32>
    %50 = arith.addf %48, %49 : vector<8x128xf32>
    %51 = arith.negf %50 : vector<8x128xf32>
    %52 = math.exp %51 : vector<8x128xf32>
    %cst_20 = arith.constant 1.000000e+00 : f32
    %53 = vector.broadcast %cst_20 : f32 to vector<8x128xf32>
    %54 = arith.addf %53, %52 : vector<8x128xf32>
    %55 = arith.divf %53, %54 : vector<8x128xf32>
    %56 = vector.extract_strided_slice %44 {offsets = [0, 128], sizes = [8, 128], strides = [1, 1]} : vector<8x384xf32> to vector<8x128xf32>
    %57 = vector.extract_strided_slice %47 {offsets = [0, 128], sizes = [8, 128], strides = [1, 1]} : vector<8x256xf32> to vector<8x128xf32>
    %58 = arith.addf %56, %57 : vector<8x128xf32>
    %59 = arith.negf %58 : vector<8x128xf32>
    %60 = math.exp %59 : vector<8x128xf32>
    %cst_21 = arith.constant 1.000000e+00 : f32
    %61 = vector.broadcast %cst_21 : f32 to vector<8x128xf32>
    %62 = arith.addf %61, %60 : vector<8x128xf32>
    %63 = arith.divf %61, %62 : vector<8x128xf32>
    %64 = vector.extract_strided_slice %44 {offsets = [0, 256], sizes = [8, 128], strides = [1, 1]} : vector<8x384xf32> to vector<8x128xf32>
    %65 = arith.mulf %55, %37 : vector<8x128xf32>
    %66 = arith.truncf %65 : vector<8x128xf32> to vector<8x128xbf16>
    %c0_22 = arith.constant 0 : index
    %c0_23 = arith.constant 0 : index
    %67 = vector.load %arg5[%c0_22, %c0_23] : memref<128x128xbf16, #tpu.memory_space<vmem>>, vector<128x128xbf16>
    %cst_24 = arith.constant dense<0.000000e+00> : vector<8x128xf32>
    %68 = tpu.matmul %66, %67, %cst_24 {dimension_numbers = #tpu.dot_dimension_numbers<[1], [0], [0], [1], [0, 0, 1, 1], [], []>} : vector<8x128xbf16>, vector<128x128xbf16>, vector<8x128xf32> -> vector<8x128xf32>
    %69 = arith.addf %64, %68 : vector<8x128xf32>
    %70 = math.tanh %69 : vector<8x128xf32>
    %cst_25 = arith.constant 1.000000e+00 : f32
    %71 = vector.broadcast %cst_25 : f32 to vector<8x128xf32>
    %72 = arith.subf %71, %63 : vector<8x128xf32>
    %73 = arith.mulf %72, %37 : vector<8x128xf32>
    %74 = arith.mulf %63, %70 : vector<8x128xf32>
    %75 = arith.addf %73, %74 : vector<8x128xf32>
    %76 = arith.index_cast %c1_i32 : i32 to index
    %c0_26 = arith.constant 0 : index
    %c0_27 = arith.constant 0 : index
    %77 = vector.load %arg6[%76, %c0_26, %c0_27] : memref<8x8x128xf32, #tpu.memory_space<vmem>>, vector<1x8x128xf32>
    %78 = vector.shape_cast %77 : vector<1x8x128xf32> to vector<8x128xf32>
    %79 = vector.shape_cast %75 : vector<8x128xf32> to vector<1x8x128xf32>
    tpu.vector_store %arg6[%76, %c0_26, %c0_27], %79 {strides = array<i32>} : memref<8x8x128xf32, #tpu.memory_space<vmem>>, vector<1x8x128xf32>,
    %c2_i32 = arith.constant 2 : i32
    %80 = arith.index_cast %c2_i32 : i32 to index
    %c0_28 = arith.constant 0 : index
    %c0_29 = arith.constant 0 : index
    %81 = vector.load %arg3[%80, %c0_28, %c0_29] : memref<8x8x384xf32, #tpu.memory_space<vmem>>, vector<1x8x384xf32>
    %82 = vector.shape_cast %81 : vector<1x8x384xf32> to vector<8x384xf32>
    %83 = arith.truncf %75 : vector<8x128xf32> to vector<8x128xbf16>
    %c0_30 = arith.constant 0 : index
    %c0_31 = arith.constant 0 : index
    %84 = vector.load %arg4[%c0_30, %c0_31] : memref<128x256xbf16, #tpu.memory_space<vmem>>, vector<128x256xbf16>
    %cst_32 = arith.constant dense<0.000000e+00> : vector<8x256xf32>
    %85 = tpu.matmul %83, %84, %cst_32 {dimension_numbers = #tpu.dot_dimension_numbers<[1], [0], [0], [1], [0, 0, 1, 1], [], []>} : vector<8x128xbf16>, vector<128x256xbf16>, vector<8x256xf32> -> vector<8x256xf32>
    %86 = vector.extract_strided_slice %82 {offsets = [0, 0], sizes = [8, 128], strides = [1, 1]} : vector<8x384xf32> to vector<8x128xf32>
    %87 = vector.extract_strided_slice %85 {offsets = [0, 0], sizes = [8, 128], strides = [1, 1]} : vector<8x256xf32> to vector<8x128xf32>
    %88 = arith.addf %86, %87 : vector<8x128xf32>
    %89 = arith.negf %88 : vector<8x128xf32>
    %90 = math.exp %89 : vector<8x128xf32>
    %cst_33 = arith.constant 1.000000e+00 : f32
    %91 = vector.broadcast %cst_33 : f32 to vector<8x128xf32>
    %92 = arith.addf %91, %90 : vector<8x128xf32>
    %93 = arith.divf %91, %92 : vector<8x128xf32>
    %94 = vector.extract_strided_slice %82 {offsets = [0, 128], sizes = [8, 128], strides = [1, 1]} : vector<8x384xf32> to vector<8x128xf32>
    %95 = vector.extract_strided_slice %85 {offsets = [0, 128], sizes = [8, 128], strides = [1, 1]} : vector<8x256xf32> to vector<8x128xf32>
    %96 = arith.addf %94, %95 : vector<8x128xf32>
    %97 = arith.negf %96 : vector<8x128xf32>
    %98 = math.exp %97 : vector<8x128xf32>
    %cst_34 = arith.constant 1.000000e+00 : f32
    %99 = vector.broadcast %cst_34 : f32 to vector<8x128xf32>
    %100 = arith.addf %99, %98 : vector<8x128xf32>
    %101 = arith.divf %99, %100 : vector<8x128xf32>
    %102 = vector.extract_strided_slice %82 {offsets = [0, 256], sizes = [8, 128], strides = [1, 1]} : vector<8x384xf32> to vector<8x128xf32>
    %103 = arith.mulf %93, %75 : vector<8x128xf32>
    %104 = arith.truncf %103 : vector<8x128xf32> to vector<8x128xbf16>
    %c0_35 = arith.constant 0 : index
    %c0_36 = arith.constant 0 : index
    %105 = vector.load %arg5[%c0_35, %c0_36] : memref<128x128xbf16, #tpu.memory_space<vmem>>, vector<128x128xbf16>
    %cst_37 = arith.constant dense<0.000000e+00> : vector<8x128xf32>
    %106 = tpu.matmul %104, %105, %cst_37 {dimension_numbers = #tpu.dot_dimension_numbers<[1], [0], [0], [1], [0, 0, 1, 1], [], []>} : vector<8x128xbf16>, vector<128x128xbf16>, vector<8x128xf32> -> vector<8x128xf32>
    %107 = arith.addf %102, %106 : vector<8x128xf32>
    %108 = math.tanh %107 : vector<8x128xf32>
    %cst_38 = arith.constant 1.000000e+00 : f32
    %109 = vector.broadcast %cst_38 : f32 to vector<8x128xf32>
    %110 = arith.subf %109, %101 : vector<8x128xf32>
    %111 = arith.mulf %110, %75 : vector<8x128xf32>
    %112 = arith.mulf %101, %108 : vector<8x128xf32>
    %113 = arith.addf %111, %112 : vector<8x128xf32>
    %114 = arith.index_cast %c2_i32 : i32 to index
    %c0_39 = arith.constant 0 : index
    %c0_40 = arith.constant 0 : index
    %115 = vector.load %arg6[%114, %c0_39, %c0_40] : memref<8x8x128xf32, #tpu.memory_space<vmem>>, vector<1x8x128xf32>
    %116 = vector.shape_cast %115 : vector<1x8x128xf32> to vector<8x128xf32>
    %117 = vector.shape_cast %113 : vector<8x128xf32> to vector<1x8x128xf32>
    tpu.vector_store %arg6[%114, %c0_39, %c0_40], %117 {strides = array<i32>} : memref<8x8x128xf32, #tpu.memory_space<vmem>>, vector<1x8x128xf32>,
    %c3_i32 = arith.constant 3 : i32
    %118 = arith.index_cast %c3_i32 : i32 to index
    %c0_41 = arith.constant 0 : index
    %c0_42 = arith.constant 0 : index
    %119 = vector.load %arg3[%118, %c0_41, %c0_42] : memref<8x8x384xf32, #tpu.memory_space<vmem>>, vector<1x8x384xf32>
    %120 = vector.shape_cast %119 : vector<1x8x384xf32> to vector<8x384xf32>
    %121 = arith.truncf %113 : vector<8x128xf32> to vector<8x128xbf16>
    %c0_43 = arith.constant 0 : index
    %c0_44 = arith.constant 0 : index
    %122 = vector.load %arg4[%c0_43, %c0_44] : memref<128x256xbf16, #tpu.memory_space<vmem>>, vector<128x256xbf16>
    %cst_45 = arith.constant dense<0.000000e+00> : vector<8x256xf32>
    %123 = tpu.matmul %121, %122, %cst_45 {dimension_numbers = #tpu.dot_dimension_numbers<[1], [0], [0], [1], [0, 0, 1, 1], [], []>} : vector<8x128xbf16>, vector<128x256xbf16>, vector<8x256xf32> -> vector<8x256xf32>
    %124 = vector.extract_strided_slice %120 {offsets = [0, 0], sizes = [8, 128], strides = [1, 1]} : vector<8x384xf32> to vector<8x128xf32>
    %125 = vector.extract_strided_slice %123 {offsets = [0, 0], sizes = [8, 128], strides = [1, 1]} : vector<8x256xf32> to vector<8x128xf32>
    %126 = arith.addf %124, %125 : vector<8x128xf32>
    %127 = arith.negf %126 : vector<8x128xf32>
    %128 = math.exp %127 : vector<8x128xf32>
    %cst_46 = arith.constant 1.000000e+00 : f32
    %129 = vector.broadcast %cst_46 : f32 to vector<8x128xf32>
    %130 = arith.addf %129, %128 : vector<8x128xf32>
    %131 = arith.divf %129, %130 : vector<8x128xf32>
    %132 = vector.extract_strided_slice %120 {offsets = [0, 128], sizes = [8, 128], strides = [1, 1]} : vector<8x384xf32> to vector<8x128xf32>
    %133 = vector.extract_strided_slice %123 {offsets = [0, 128], sizes = [8, 128], strides = [1, 1]} : vector<8x256xf32> to vector<8x128xf32>
    %134 = arith.addf %132, %133 : vector<8x128xf32>
    %135 = arith.negf %134 : vector<8x128xf32>
    %136 = math.exp %135 : vector<8x128xf32>
    %cst_47 = arith.constant 1.000000e+00 : f32
    %137 = vector.broadcast %cst_47 : f32 to vector<8x128xf32>
    %138 = arith.addf %137, %136 : vector<8x128xf32>
    %139 = arith.divf %137, %138 : vector<8x128xf32>
    %140 = vector.extract_strided_slice %120 {offsets = [0, 256], sizes = [8, 128], strides = [1, 1]} : vector<8x384xf32> to vector<8x128xf32>
    %141 = arith.mulf %131, %113 : vector<8x128xf32>
    %142 = arith.truncf %141 : vector<8x128xf32> to vector<8x128xbf16>
    %c0_48 = arith.constant 0 : index
    %c0_49 = arith.constant 0 : index
    %143 = vector.load %arg5[%c0_48, %c0_49] : memref<128x128xbf16, #tpu.memory_space<vmem>>, vector<128x128xbf16>
    %cst_50 = arith.constant dense<0.000000e+00> : vector<8x128xf32>
    %144 = tpu.matmul %142, %143, %cst_50 {dimension_numbers = #tpu.dot_dimension_numbers<[1], [0], [0], [1], [0, 0, 1, 1], [], []>} : vector<8x128xbf16>, vector<128x128xbf16>, vector<8x128xf32> -> vector<8x128xf32>
    %145 = arith.addf %140, %144 : vector<8x128xf32>
    %146 = math.tanh %145 : vector<8x128xf32>
    %cst_51 = arith.constant 1.000000e+00 : f32
    %147 = vector.broadcast %cst_51 : f32 to vector<8x128xf32>
    %148 = arith.subf %147, %139 : vector<8x128xf32>
    %149 = arith.mulf %148, %113 : vector<8x128xf32>
    %150 = arith.mulf %139, %146 : vector<8x128xf32>
    %151 = arith.addf %149, %150 : vector<8x128xf32>
    %152 = arith.index_cast %c3_i32 : i32 to index
    %c0_52 = arith.constant 0 : index
    %c0_53 = arith.constant 0 : index
    %153 = vector.load %arg6[%152, %c0_52, %c0_53] : memref<8x8x128xf32, #tpu.memory_space<vmem>>, vector<1x8x128xf32>
    %154 = vector.shape_cast %153 : vector<1x8x128xf32> to vector<8x128xf32>
    %155 = vector.shape_cast %151 : vector<8x128xf32> to vector<1x8x128xf32>
    tpu.vector_store %arg6[%152, %c0_52, %c0_53], %155 {strides = array<i32>} : memref<8x8x128xf32, #tpu.memory_space<vmem>>, vector<1x8x128xf32>,
    %c4_i32 = arith.constant 4 : i32
    %156 = arith.index_cast %c4_i32 : i32 to index
    %c0_54 = arith.constant 0 : index
    %c0_55 = arith.constant 0 : index
    %157 = vector.load %arg3[%156, %c0_54, %c0_55] : memref<8x8x384xf32, #tpu.memory_space<vmem>>, vector<1x8x384xf32>
    %158 = vector.shape_cast %157 : vector<1x8x384xf32> to vector<8x384xf32>
    %159 = arith.truncf %151 : vector<8x128xf32> to vector<8x128xbf16>
    %c0_56 = arith.constant 0 : index
    %c0_57 = arith.constant 0 : index
    %160 = vector.load %arg4[%c0_56, %c0_57] : memref<128x256xbf16, #tpu.memory_space<vmem>>, vector<128x256xbf16>
    %cst_58 = arith.constant dense<0.000000e+00> : vector<8x256xf32>
    %161 = tpu.matmul %159, %160, %cst_58 {dimension_numbers = #tpu.dot_dimension_numbers<[1], [0], [0], [1], [0, 0, 1, 1], [], []>} : vector<8x128xbf16>, vector<128x256xbf16>, vector<8x256xf32> -> vector<8x256xf32>
    %162 = vector.extract_strided_slice %158 {offsets = [0, 0], sizes = [8, 128], strides = [1, 1]} : vector<8x384xf32> to vector<8x128xf32>
    %163 = vector.extract_strided_slice %161 {offsets = [0, 0], sizes = [8, 128], strides = [1, 1]} : vector<8x256xf32> to vector<8x128xf32>
    %164 = arith.addf %162, %163 : vector<8x128xf32>
    %165 = arith.negf %164 : vector<8x128xf32>
    %166 = math.exp %165 : vector<8x128xf32>
    %cst_59 = arith.constant 1.000000e+00 : f32
    %167 = vector.broadcast %cst_59 : f32 to vector<8x128xf32>
    %168 = arith.addf %167, %166 : vector<8x128xf32>
    %169 = arith.divf %167, %168 : vector<8x128xf32>
    %170 = vector.extract_strided_slice %158 {offsets = [0, 128], sizes = [8, 128], strides = [1, 1]} : vector<8x384xf32> to vector<8x128xf32>
    %171 = vector.extract_strided_slice %161 {offsets = [0, 128], sizes = [8, 128], strides = [1, 1]} : vector<8x256xf32> to vector<8x128xf32>
    %172 = arith.addf %170, %171 : vector<8x128xf32>
    %173 = arith.negf %172 : vector<8x128xf32>
    %174 = math.exp %173 : vector<8x128xf32>
    %cst_60 = arith.constant 1.000000e+00 : f32
    %175 = vector.broadcast %cst_60 : f32 to vector<8x128xf32>
    %176 = arith.addf %175, %174 : vector<8x128xf32>
    %177 = arith.divf %175, %176 : vector<8x128xf32>
    %178 = vector.extract_strided_slice %158 {offsets = [0, 256], sizes = [8, 128], strides = [1, 1]} : vector<8x384xf32> to vector<8x128xf32>
    %179 = arith.mulf %169, %151 : vector<8x128xf32>
    %180 = arith.truncf %179 : vector<8x128xf32> to vector<8x128xbf16>
    %c0_61 = arith.constant 0 : index
    %c0_62 = arith.constant 0 : index
    %181 = vector.load %arg5[%c0_61, %c0_62] : memref<128x128xbf16, #tpu.memory_space<vmem>>, vector<128x128xbf16>
    %cst_63 = arith.constant dense<0.000000e+00> : vector<8x128xf32>
    %182 = tpu.matmul %180, %181, %cst_63 {dimension_numbers = #tpu.dot_dimension_numbers<[1], [0], [0], [1], [0, 0, 1, 1], [], []>} : vector<8x128xbf16>, vector<128x128xbf16>, vector<8x128xf32> -> vector<8x128xf32>
    %183 = arith.addf %178, %182 : vector<8x128xf32>
    %184 = math.tanh %183 : vector<8x128xf32>
    %cst_64 = arith.constant 1.000000e+00 : f32
    %185 = vector.broadcast %cst_64 : f32 to vector<8x128xf32>
    %186 = arith.subf %185, %177 : vector<8x128xf32>
    %187 = arith.mulf %186, %151 : vector<8x128xf32>
    %188 = arith.mulf %177, %184 : vector<8x128xf32>
    %189 = arith.addf %187, %188 : vector<8x128xf32>
    %190 = arith.index_cast %c4_i32 : i32 to index
    %c0_65 = arith.constant 0 : index
    %c0_66 = arith.constant 0 : index
    %191 = vector.load %arg6[%190, %c0_65, %c0_66] : memref<8x8x128xf32, #tpu.memory_space<vmem>>, vector<1x8x128xf32>
    %192 = vector.shape_cast %191 : vector<1x8x128xf32> to vector<8x128xf32>
    %193 = vector.shape_cast %189 : vector<8x128xf32> to vector<1x8x128xf32>
    tpu.vector_store %arg6[%190, %c0_65, %c0_66], %193 {strides = array<i32>} : memref<8x8x128xf32, #tpu.memory_space<vmem>>, vector<1x8x128xf32>,
    %c5_i32 = arith.constant 5 : i32
    %194 = arith.index_cast %c5_i32 : i32 to index
    %c0_67 = arith.constant 0 : index
    %c0_68 = arith.constant 0 : index
    %195 = vector.load %arg3[%194, %c0_67, %c0_68] : memref<8x8x384xf32, #tpu.memory_space<vmem>>, vector<1x8x384xf32>
    %196 = vector.shape_cast %195 : vector<1x8x384xf32> to vector<8x384xf32>
    %197 = arith.truncf %189 : vector<8x128xf32> to vector<8x128xbf16>
    %c0_69 = arith.constant 0 : index
    %c0_70 = arith.constant 0 : index
    %198 = vector.load %arg4[%c0_69, %c0_70] : memref<128x256xbf16, #tpu.memory_space<vmem>>, vector<128x256xbf16>
    %cst_71 = arith.constant dense<0.000000e+00> : vector<8x256xf32>
    %199 = tpu.matmul %197, %198, %cst_71 {dimension_numbers = #tpu.dot_dimension_numbers<[1], [0], [0], [1], [0, 0, 1, 1], [], []>} : vector<8x128xbf16>, vector<128x256xbf16>, vector<8x256xf32> -> vector<8x256xf32>
    %200 = vector.extract_strided_slice %196 {offsets = [0, 0], sizes = [8, 128], strides = [1, 1]} : vector<8x384xf32> to vector<8x128xf32>
    %201 = vector.extract_strided_slice %199 {offsets = [0, 0], sizes = [8, 128], strides = [1, 1]} : vector<8x256xf32> to vector<8x128xf32>
    %202 = arith.addf %200, %201 : vector<8x128xf32>
    %203 = arith.negf %202 : vector<8x128xf32>
    %204 = math.exp %203 : vector<8x128xf32>
    %cst_72 = arith.constant 1.000000e+00 : f32
    %205 = vector.broadcast %cst_72 : f32 to vector<8x128xf32>
    %206 = arith.addf %205, %204 : vector<8x128xf32>
    %207 = arith.divf %205, %206 : vector<8x128xf32>
    %208 = vector.extract_strided_slice %196 {offsets = [0, 128], sizes = [8, 128], strides = [1, 1]} : vector<8x384xf32> to vector<8x128xf32>
    %209 = vector.extract_strided_slice %199 {offsets = [0, 128], sizes = [8, 128], strides = [1, 1]} : vector<8x256xf32> to vector<8x128xf32>
    %210 = arith.addf %208, %209 : vector<8x128xf32>
    %211 = arith.negf %210 : vector<8x128xf32>
    %212 = math.exp %211 : vector<8x128xf32>
    %cst_73 = arith.constant 1.000000e+00 : f32
    %213 = vector.broadcast %cst_73 : f32 to vector<8x128xf32>
    %214 = arith.addf %213, %212 : vector<8x128xf32>
    %215 = arith.divf %213, %214 : vector<8x128xf32>
    %216 = vector.extract_strided_slice %196 {offsets = [0, 256], sizes = [8, 128], strides = [1, 1]} : vector<8x384xf32> to vector<8x128xf32>
    %217 = arith.mulf %207, %189 : vector<8x128xf32>
    %218 = arith.truncf %217 : vector<8x128xf32> to vector<8x128xbf16>
    %c0_74 = arith.constant 0 : index
    %c0_75 = arith.constant 0 : index
    %219 = vector.load %arg5[%c0_74, %c0_75] : memref<128x128xbf16, #tpu.memory_space<vmem>>, vector<128x128xbf16>
    %cst_76 = arith.constant dense<0.000000e+00> : vector<8x128xf32>
    %220 = tpu.matmul %218, %219, %cst_76 {dimension_numbers = #tpu.dot_dimension_numbers<[1], [0], [0], [1], [0, 0, 1, 1], [], []>} : vector<8x128xbf16>, vector<128x128xbf16>, vector<8x128xf32> -> vector<8x128xf32>
    %221 = arith.addf %216, %220 : vector<8x128xf32>
    %222 = math.tanh %221 : vector<8x128xf32>
    %cst_77 = arith.constant 1.000000e+00 : f32
    %223 = vector.broadcast %cst_77 : f32 to vector<8x128xf32>
    %224 = arith.subf %223, %215 : vector<8x128xf32>
    %225 = arith.mulf %224, %189 : vector<8x128xf32>
    %226 = arith.mulf %215, %222 : vector<8x128xf32>
    %227 = arith.addf %225, %226 : vector<8x128xf32>
    %228 = arith.index_cast %c5_i32 : i32 to index
    %c0_78 = arith.constant 0 : index
    %c0_79 = arith.constant 0 : index
    %229 = vector.load %arg6[%228, %c0_78, %c0_79] : memref<8x8x128xf32, #tpu.memory_space<vmem>>, vector<1x8x128xf32>
    %230 = vector.shape_cast %229 : vector<1x8x128xf32> to vector<8x128xf32>
    %231 = vector.shape_cast %227 : vector<8x128xf32> to vector<1x8x128xf32>
    tpu.vector_store %arg6[%228, %c0_78, %c0_79], %231 {strides = array<i32>} : memref<8x8x128xf32, #tpu.memory_space<vmem>>, vector<1x8x128xf32>,
    %c6_i32 = arith.constant 6 : i32
    %232 = arith.index_cast %c6_i32 : i32 to index
    %c0_80 = arith.constant 0 : index
    %c0_81 = arith.constant 0 : index
    %233 = vector.load %arg3[%232, %c0_80, %c0_81] : memref<8x8x384xf32, #tpu.memory_space<vmem>>, vector<1x8x384xf32>
    %234 = vector.shape_cast %233 : vector<1x8x384xf32> to vector<8x384xf32>
    %235 = arith.truncf %227 : vector<8x128xf32> to vector<8x128xbf16>
    %c0_82 = arith.constant 0 : index
    %c0_83 = arith.constant 0 : index
    %236 = vector.load %arg4[%c0_82, %c0_83] : memref<128x256xbf16, #tpu.memory_space<vmem>>, vector<128x256xbf16>
    %cst_84 = arith.constant dense<0.000000e+00> : vector<8x256xf32>
    %237 = tpu.matmul %235, %236, %cst_84 {dimension_numbers = #tpu.dot_dimension_numbers<[1], [0], [0], [1], [0, 0, 1, 1], [], []>} : vector<8x128xbf16>, vector<128x256xbf16>, vector<8x256xf32> -> vector<8x256xf32>
    %238 = vector.extract_strided_slice %234 {offsets = [0, 0], sizes = [8, 128], strides = [1, 1]} : vector<8x384xf32> to vector<8x128xf32>
    %239 = vector.extract_strided_slice %237 {offsets = [0, 0], sizes = [8, 128], strides = [1, 1]} : vector<8x256xf32> to vector<8x128xf32>
    %240 = arith.addf %238, %239 : vector<8x128xf32>
    %241 = arith.negf %240 : vector<8x128xf32>
    %242 = math.exp %241 : vector<8x128xf32>
    %cst_85 = arith.constant 1.000000e+00 : f32
    %243 = vector.broadcast %cst_85 : f32 to vector<8x128xf32>
    %244 = arith.addf %243, %242 : vector<8x128xf32>
    %245 = arith.divf %243, %244 : vector<8x128xf32>
    %246 = vector.extract_strided_slice %234 {offsets = [0, 128], sizes = [8, 128], strides = [1, 1]} : vector<8x384xf32> to vector<8x128xf32>
    %247 = vector.extract_strided_slice %237 {offsets = [0, 128], sizes = [8, 128], strides = [1, 1]} : vector<8x256xf32> to vector<8x128xf32>
    %248 = arith.addf %246, %247 : vector<8x128xf32>
    %249 = arith.negf %248 : vector<8x128xf32>
    %250 = math.exp %249 : vector<8x128xf32>
    %cst_86 = arith.constant 1.000000e+00 : f32
    %251 = vector.broadcast %cst_86 : f32 to vector<8x128xf32>
    %252 = arith.addf %251, %250 : vector<8x128xf32>
    %253 = arith.divf %251, %252 : vector<8x128xf32>
    %254 = vector.extract_strided_slice %234 {offsets = [0, 256], sizes = [8, 128], strides = [1, 1]} : vector<8x384xf32> to vector<8x128xf32>
    %255 = arith.mulf %245, %227 : vector<8x128xf32>
    %256 = arith.truncf %255 : vector<8x128xf32> to vector<8x128xbf16>
    %c0_87 = arith.constant 0 : index
    %c0_88 = arith.constant 0 : index
    %257 = vector.load %arg5[%c0_87, %c0_88] : memref<128x128xbf16, #tpu.memory_space<vmem>>, vector<128x128xbf16>
    %cst_89 = arith.constant dense<0.000000e+00> : vector<8x128xf32>
    %258 = tpu.matmul %256, %257, %cst_89 {dimension_numbers = #tpu.dot_dimension_numbers<[1], [0], [0], [1], [0, 0, 1, 1], [], []>} : vector<8x128xbf16>, vector<128x128xbf16>, vector<8x128xf32> -> vector<8x128xf32>
    %259 = arith.addf %254, %258 : vector<8x128xf32>
    %260 = math.tanh %259 : vector<8x128xf32>
    %cst_90 = arith.constant 1.000000e+00 : f32
    %261 = vector.broadcast %cst_90 : f32 to vector<8x128xf32>
    %262 = arith.subf %261, %253 : vector<8x128xf32>
    %263 = arith.mulf %262, %227 : vector<8x128xf32>
    %264 = arith.mulf %253, %260 : vector<8x128xf32>
    %265 = arith.addf %263, %264 : vector<8x128xf32>
    %266 = arith.index_cast %c6_i32 : i32 to index
    %c0_91 = arith.constant 0 : index
    %c0_92 = arith.constant 0 : index
    %267 = vector.load %arg6[%266, %c0_91, %c0_92] : memref<8x8x128xf32, #tpu.memory_space<vmem>>, vector<1x8x128xf32>
    %268 = vector.shape_cast %267 : vector<1x8x128xf32> to vector<8x128xf32>
    %269 = vector.shape_cast %265 : vector<8x128xf32> to vector<1x8x128xf32>
    tpu.vector_store %arg6[%266, %c0_91, %c0_92], %269 {strides = array<i32>} : memref<8x8x128xf32, #tpu.memory_space<vmem>>, vector<1x8x128xf32>,
    %c7_i32 = arith.constant 7 : i32
    %270 = arith.index_cast %c7_i32 : i32 to index
    %c0_93 = arith.constant 0 : index
    %c0_94 = arith.constant 0 : index
    %271 = vector.load %arg3[%270, %c0_93, %c0_94] : memref<8x8x384xf32, #tpu.memory_space<vmem>>, vector<1x8x384xf32>
    %272 = vector.shape_cast %271 : vector<1x8x384xf32> to vector<8x384xf32>
    %273 = arith.truncf %265 : vector<8x128xf32> to vector<8x128xbf16>
    %c0_95 = arith.constant 0 : index
    %c0_96 = arith.constant 0 : index
    %274 = vector.load %arg4[%c0_95, %c0_96] : memref<128x256xbf16, #tpu.memory_space<vmem>>, vector<128x256xbf16>
    %cst_97 = arith.constant dense<0.000000e+00> : vector<8x256xf32>
    %275 = tpu.matmul %273, %274, %cst_97 {dimension_numbers = #tpu.dot_dimension_numbers<[1], [0], [0], [1], [0, 0, 1, 1], [], []>} : vector<8x128xbf16>, vector<128x256xbf16>, vector<8x256xf32> -> vector<8x256xf32>
    %276 = vector.extract_strided_slice %272 {offsets = [0, 0], sizes = [8, 128], strides = [1, 1]} : vector<8x384xf32> to vector<8x128xf32>
    %277 = vector.extract_strided_slice %275 {offsets = [0, 0], sizes = [8, 128], strides = [1, 1]} : vector<8x256xf32> to vector<8x128xf32>
    %278 = arith.addf %276, %277 : vector<8x128xf32>
    %279 = arith.negf %278 : vector<8x128xf32>
    %280 = math.exp %279 : vector<8x128xf32>
    %cst_98 = arith.constant 1.000000e+00 : f32
    %281 = vector.broadcast %cst_98 : f32 to vector<8x128xf32>
    %282 = arith.addf %281, %280 : vector<8x128xf32>
    %283 = arith.divf %281, %282 : vector<8x128xf32>
    %284 = vector.extract_strided_slice %272 {offsets = [0, 128], sizes = [8, 128], strides = [1, 1]} : vector<8x384xf32> to vector<8x128xf32>
    %285 = vector.extract_strided_slice %275 {offsets = [0, 128], sizes = [8, 128], strides = [1, 1]} : vector<8x256xf32> to vector<8x128xf32>
    %286 = arith.addf %284, %285 : vector<8x128xf32>
    %287 = arith.negf %286 : vector<8x128xf32>
    %288 = math.exp %287 : vector<8x128xf32>
    %cst_99 = arith.constant 1.000000e+00 : f32
    %289 = vector.broadcast %cst_99 : f32 to vector<8x128xf32>
    %290 = arith.addf %289, %288 : vector<8x128xf32>
    %291 = arith.divf %289, %290 : vector<8x128xf32>
    %292 = vector.extract_strided_slice %272 {offsets = [0, 256], sizes = [8, 128], strides = [1, 1]} : vector<8x384xf32> to vector<8x128xf32>
    %293 = arith.mulf %283, %265 : vector<8x128xf32>
    %294 = arith.truncf %293 : vector<8x128xf32> to vector<8x128xbf16>
    %c0_100 = arith.constant 0 : index
    %c0_101 = arith.constant 0 : index
    %295 = vector.load %arg5[%c0_100, %c0_101] : memref<128x128xbf16, #tpu.memory_space<vmem>>, vector<128x128xbf16>
    %cst_102 = arith.constant dense<0.000000e+00> : vector<8x128xf32>
    %296 = tpu.matmul %294, %295, %cst_102 {dimension_numbers = #tpu.dot_dimension_numbers<[1], [0], [0], [1], [0, 0, 1, 1], [], []>} : vector<8x128xbf16>, vector<128x128xbf16>, vector<8x128xf32> -> vector<8x128xf32>
    %297 = arith.addf %292, %296 : vector<8x128xf32>
    %298 = math.tanh %297 : vector<8x128xf32>
    %cst_103 = arith.constant 1.000000e+00 : f32
    %299 = vector.broadcast %cst_103 : f32 to vector<8x128xf32>
    %300 = arith.subf %299, %291 : vector<8x128xf32>
    %301 = arith.mulf %300, %265 : vector<8x128xf32>
    %302 = arith.mulf %291, %298 : vector<8x128xf32>
    %303 = arith.addf %301, %302 : vector<8x128xf32>
    %304 = arith.index_cast %c7_i32 : i32 to index
    %c0_104 = arith.constant 0 : index
    %c0_105 = arith.constant 0 : index
    %305 = vector.load %arg6[%304, %c0_104, %c0_105] : memref<8x8x128xf32, #tpu.memory_space<vmem>>, vector<1x8x128xf32>
    %306 = vector.shape_cast %305 : vector<1x8x128xf32> to vector<8x128xf32>
    %307 = vector.shape_cast %303 : vector<8x128xf32> to vector<1x8x128xf32>
    tpu.vector_store %arg6[%304, %c0_104, %c0_105], %307 {strides = array<i32>} : memref<8x8x128xf32, #tpu.memory_space<vmem>>, vector<1x8x128xf32>,
    %c8_i32 = arith.constant 8 : i32
    %c0_106 = arith.constant 0 : index
    %c0_107 = arith.constant 0 : index
    %308 = vector.load %arg7[%c0_106, %c0_107] : memref<8x128xf32, #tpu.memory_space<vmem>>, vector<8x128xf32>
    tpu.vector_store %arg7[%c0_106, %c0_107], %303 {strides = array<i32>} : memref<8x128xf32, #tpu.memory_space<vmem>>, vector<8x128xf32>,
    return
  }
  func.func @transform_0(%arg0: i32, %arg1: i32) -> (i32, i32) {
    %c0_i32 = arith.constant 0 : i32
    %c0_i32_0 = arith.constant 0 : i32
    return %arg0, %c0_i32 : i32, i32
  }
  func.func @transform_1(%arg0: i32, %arg1: i32) -> (i32, i32, i32) {
    %c0_i32 = arith.constant 0 : i32
    %c0_i32_0 = arith.constant 0 : i32
    return %arg1, %arg0, %c0_i32 : i32, i32, i32
  }
  func.func @transform_2(%arg0: i32, %arg1: i32) -> (i32, i32) {
    %c0_i32 = arith.constant 0 : i32
    %c0_i32_0 = arith.constant 0 : i32
    %c0_i32_1 = arith.constant 0 : i32
    return %c0_i32, %c0_i32_0 : i32, i32
  }
  func.func @transform_3(%arg0: i32, %arg1: i32) -> (i32, i32) {
    %c0_i32 = arith.constant 0 : i32
    %c0_i32_0 = arith.constant 0 : i32
    %c0_i32_1 = arith.constant 0 : i32
    return %c0_i32, %c0_i32_0 : i32, i32
  }
  func.func @transform_4(%arg0: i32, %arg1: i32) -> (i32, i32, i32) {
    %c0_i32 = arith.constant 0 : i32
    %c0_i32_0 = arith.constant 0 : i32
    return %arg1, %arg0, %c0_i32 : i32, i32, i32
  }
}

module attributes {stable_mosaic.version = 11 : i64} {
  func.func @gru_seq_kernel(%arg0: i32, %arg1: i32, %arg2: memref<8x128xf32, #tpu.memory_space<vmem>>, %arg3: memref<8x8x384xf32, #tpu.memory_space<vmem>>, %arg4: memref<128x256xbf16, #tpu.memory_space<vmem>>, %arg5: memref<128x128xbf16, #tpu.memory_space<vmem>>, %arg6: memref<8x8x128xf32, #tpu.memory_space<vmem>>, %arg7: memref<8x128xf32, #tpu.memory_space<vmem>>) attributes {dimension_semantics = [#tpu.dimension_semantics<parallel>, #tpu.dimension_semantics<arbitrary>], iteration_bounds = array<i64: 1, 1>, scalar_prefetch = 0 : i64, scratch_operands = 1 : i64, tpu.core_type = #tpu.core_type<tc>, window_params = [{transform_indices = @transform_0, window_bounds = array<i64: 8, 128>}, {transform_indices = @transform_1, window_bounds = array<i64: 8, 8, 384>}, {pipeline_mode = #tpu.pipeline_mode<synchronous>, transform_indices = @transform_2, window_bounds = array<i64: 128, 256>}, {pipeline_mode = #tpu.pipeline_mode<synchronous>, transform_indices = @transform_3, window_bounds = array<i64: 128, 128>}, {transform_indices = @transform_4, window_bounds = array<i64: 8, 8, 128>}]} {
    %c0_i32 = arith.constant 0 : i32
    %0 = arith.cmpi eq, %arg1, %c0_i32 : i32
    %1 = arith.extui %0 : i1 to i32
    %c0_i32_0 = arith.constant 0 : i32
    %2 = arith.cmpi ne, %1, %c0_i32_0 : i32
    scf.if %2 {
      %c0_108 = arith.constant 0 : index
      %c0_109 = arith.constant 0 : index
      %309 = vector.load %arg2[%c0_108, %c0_109] : memref<8x128xf32, #tpu.memory_space<vmem>>, vector<8x128xf32>
      %c0_110 = arith.constant 0 : index
      %c0_111 = arith.constant 0 : index
      %310 = vector.load %arg7[%c0_110, %c0_111] : memref<8x128xf32, #tpu.memory_space<vmem>>, vector<8x128xf32>
      tpu.vector_store %arg7[%c0_110, %c0_111], %309 {strides = array<i32>} : memref<8x128xf32, #tpu.memory_space<vmem>>, vector<8x128xf32>,
    } else {
    }
    %c0 = arith.constant 0 : index
    %c0_1 = arith.constant 0 : index
    %3 = vector.load %arg7[%c0, %c0_1] : memref<8x128xf32, #tpu.memory_space<vmem>>, vector<8x128xf32>
    %c0_i32_2 = arith.constant 0 : i32
    %4 = arith.index_cast %c0_i32_2 : i32 to index
    %c0_3 = arith.constant 0 : index
    %c0_4 = arith.constant 0 : index
    %5 = vector.load %arg3[%4, %c0_3, %c0_4] : memref<8x8x384xf32, #tpu.memory_space<vmem>>, vector<1x8x384xf32>
    %6 = vector.shape_cast %5 : vector<1x8x384xf32> to vector<8x384xf32>
    %7 = arith.truncf %3 : vector<8x128xf32> to vector<8x128xbf16>
    %c0_5 = arith.constant 0 : index
    %c0_6 = arith.constant 0 : index
    %8 = vector.load %arg4[%c0_5, %c0_6] : memref<128x256xbf16, #tpu.memory_space<vmem>>, vector<128x256xbf16>
    %cst = arith.constant dense<0.000000e+00> : vector<8x256xf32>
    %9 = tpu.matmul %7, %8, %cst {dimension_numbers = #tpu.dot_dimension_numbers<[1], [0], [0], [1], [0, 0, 1, 1], [], []>} : vector<8x128xbf16>, vector<128x256xbf16>, vector<8x256xf32> -> vector<8x256xf32>
    %10 = vector.extract_strided_slice %6 {offsets = [0, 0], sizes = [8, 128], strides = [1, 1]} : vector<8x384xf32> to vector<8x128xf32>
    %11 = vector.extract_strided_slice %9 {offsets = [0, 0], sizes = [8, 128], strides = [1, 1]} : vector<8x256xf32> to vector<8x128xf32>
    %12 = arith.addf %10, %11 : vector<8x128xf32>
    %13 = arith.negf %12 : vector<8x128xf32>
    %14 = math.exp %13 : vector<8x128xf32>
    %cst_7 = arith.constant 1.000000e+00 : f32
    %15 = vector.broadcast %cst_7 : f32 to vector<8x128xf32>
    %16 = arith.addf %15, %14 : vector<8x128xf32>
    %17 = arith.divf %15, %16 : vector<8x128xf32>
    %18 = vector.extract_strided_slice %6 {offsets = [0, 128], sizes = [8, 128], strides = [1, 1]} : vector<8x384xf32> to vector<8x128xf32>
    %19 = vector.extract_strided_slice %9 {offsets = [0, 128], sizes = [8, 128], strides = [1, 1]} : vector<8x256xf32> to vector<8x128xf32>
    %20 = arith.addf %18, %19 : vector<8x128xf32>
    %21 = arith.negf %20 : vector<8x128xf32>
    %22 = math.exp %21 : vector<8x128xf32>
    %cst_8 = arith.constant 1.000000e+00 : f32
    %23 = vector.broadcast %cst_8 : f32 to vector<8x128xf32>
    %24 = arith.addf %23, %22 : vector<8x128xf32>
    %25 = arith.divf %23, %24 : vector<8x128xf32>
    %26 = vector.extract_strided_slice %6 {offsets = [0, 256], sizes = [8, 128], strides = [1, 1]} : vector<8x384xf32> to vector<8x128xf32>
    %27 = arith.mulf %17, %3 : vector<8x128xf32>
    %28 = arith.truncf %27 : vector<8x128xf32> to vector<8x128xbf16>
    %c0_9 = arith.constant 0 : index
    %c0_10 = arith.constant 0 : index
    %29 = vector.load %arg5[%c0_9, %c0_10] : memref<128x128xbf16, #tpu.memory_space<vmem>>, vector<128x128xbf16>
    %cst_11 = arith.constant dense<0.000000e+00> : vector<8x128xf32>
    %30 = tpu.matmul %28, %29, %cst_11 {dimension_numbers = #tpu.dot_dimension_numbers<[1], [0], [0], [1], [0, 0, 1, 1], [], []>} : vector<8x128xbf16>, vector<128x128xbf16>, vector<8x128xf32> -> vector<8x128xf32>
    %31 = arith.addf %26, %30 : vector<8x128xf32>
    %32 = math.tanh %31 : vector<8x128xf32>
    %cst_12 = arith.constant 1.000000e+00 : f32
    %33 = vector.broadcast %cst_12 : f32 to vector<8x128xf32>
    %34 = arith.subf %33, %25 : vector<8x128xf32>
    %35 = arith.mulf %34, %3 : vector<8x128xf32>
    %36 = arith.mulf %25, %32 : vector<8x128xf32>
    %37 = arith.addf %35, %36 : vector<8x128xf32>
    %38 = arith.index_cast %c0_i32_2 : i32 to index
    %c0_13 = arith.constant 0 : index
    %c0_14 = arith.constant 0 : index
    %39 = vector.load %arg6[%38, %c0_13, %c0_14] : memref<8x8x128xf32, #tpu.memory_space<vmem>>, vector<1x8x128xf32>
    %40 = vector.shape_cast %39 : vector<1x8x128xf32> to vector<8x128xf32>
    %41 = vector.shape_cast %37 : vector<8x128xf32> to vector<1x8x128xf32>
    tpu.vector_store %arg6[%38, %c0_13, %c0_14], %41 {strides = array<i32>} : memref<8x8x128xf32, #tpu.memory_space<vmem>>, vector<1x8x128xf32>,
    %c1_i32 = arith.constant 1 : i32
    %42 = arith.index_cast %c1_i32 : i32 to index
    %c0_15 = arith.constant 0 : index
    %c0_16 = arith.constant 0 : index
    %43 = vector.load %arg3[%42, %c0_15, %c0_16] : memref<8x8x384xf32, #tpu.memory_space<vmem>>, vector<1x8x384xf32>
    %44 = vector.shape_cast %43 : vector<1x8x384xf32> to vector<8x384xf32>
    %45 = arith.truncf %37 : vector<8x128xf32> to vector<8x128xbf16>
    %c0_17 = arith.constant 0 : index
    %c0_18 = arith.constant 0 : index
    %46 = vector.load %arg4[%c0_17, %c0_18] : memref<128x256xbf16, #tpu.memory_space<vmem>>, vector<128x256xbf16>
    %cst_19 = arith.constant dense<0.000000e+00> : vector<8x256xf32>
    %47 = tpu.matmul %45, %46, %cst_19 {dimension_numbers = #tpu.dot_dimension_numbers<[1], [0], [0], [1], [0, 0, 1, 1], [], []>} : vector<8x128xbf16>, vector<128x256xbf16>, vector<8x256xf32> -> vector<8x256xf32>
    %48 = vector.extract_strided_slice %44 {offsets = [0, 0], sizes = [8, 128], strides = [1, 1]} : vector<8x384xf32> to vector<8x128xf32>
    %49 = vector.extract_strided_slice %47 {offsets = [0, 0], sizes = [8, 128], strides = [1, 1]} : vector<8x256xf32> to vector<8x128xf32>
    %50 = arith.addf %48, %49 : vector<8x128xf32>
    %51 = arith.negf %50 : vector<8x128xf32>
    %52 = math.exp %51 : vector<8x128xf32>
    %cst_20 = arith.constant 1.000000e+00 : f32
    %53 = vector.broadcast %cst_20 : f32 to vector<8x128xf32>
    %54 = arith.addf %53, %52 : vector<8x128xf32>
    %55 = arith.divf %53, %54 : vector<8x128xf32>
    %56 = vector.extract_strided_slice %44 {offsets = [0, 128], sizes = [8, 128], strides = [1, 1]} : vector<8x384xf32> to vector<8x128xf32>
    %57 = vector.extract_strided_slice %47 {offsets = [0, 128], sizes = [8, 128], strides = [1, 1]} : vector<8x256xf32> to vector<8x128xf32>
    %58 = arith.addf %56, %57 : vector<8x128xf32>
    %59 = arith.negf %58 : vector<8x128xf32>
    %60 = math.exp %59 : vector<8x128xf32>
    %cst_21 = arith.constant 1.000000e+00 : f32
    %61 = vector.broadcast %cst_21 : f32 to vector<8x128xf32>
    %62 = arith.addf %61, %60 : vector<8x128xf32>
    %63 = arith.divf %61, %62 : vector<8x128xf32>
    %64 = vector.extract_strided_slice %44 {offsets = [0, 256], sizes = [8, 128], strides = [1, 1]} : vector<8x384xf32> to vector<8x128xf32>
    %65 = arith.mulf %55, %37 : vector<8x128xf32>
    %66 = arith.truncf %65 : vector<8x128xf32> to vector<8x128xbf16>
    %c0_22 = arith.constant 0 : index
    %c0_23 = arith.constant 0 : index
    %67 = vector.load %arg5[%c0_22, %c0_23] : memref<128x128xbf16, #tpu.memory_space<vmem>>, vector<128x128xbf16>
    %cst_24 = arith.constant dense<0.000000e+00> : vector<8x128xf32>
    %68 = tpu.matmul %66, %67, %cst_24 {dimension_numbers = #tpu.dot_dimension_numbers<[1], [0], [0], [1], [0, 0, 1, 1], [], []>} : vector<8x128xbf16>, vector<128x128xbf16>, vector<8x128xf32> -> vector<8x128xf32>
    %69 = arith.addf %64, %68 : vector<8x128xf32>
    %70 = math.tanh %69 : vector<8x128xf32>
    %cst_25 = arith.constant 1.000000e+00 : f32
    %71 = vector.broadcast %cst_25 : f32 to vector<8x128xf32>
    %72 = arith.subf %71, %63 : vector<8x128xf32>
    %73 = arith.mulf %72, %37 : vector<8x128xf32>
    %74 = arith.mulf %63, %70 : vector<8x128xf32>
    %75 = arith.addf %73, %74 : vector<8x128xf32>
    %76 = arith.index_cast %c1_i32 : i32 to index
    %c0_26 = arith.constant 0 : index
    %c0_27 = arith.constant 0 : index
    %77 = vector.load %arg6[%76, %c0_26, %c0_27] : memref<8x8x128xf32, #tpu.memory_space<vmem>>, vector<1x8x128xf32>
    %78 = vector.shape_cast %77 : vector<1x8x128xf32> to vector<8x128xf32>
    %79 = vector.shape_cast %75 : vector<8x128xf32> to vector<1x8x128xf32>
    tpu.vector_store %arg6[%76, %c0_26, %c0_27], %79 {strides = array<i32>} : memref<8x8x128xf32, #tpu.memory_space<vmem>>, vector<1x8x128xf32>,
    %c2_i32 = arith.constant 2 : i32
    %80 = arith.index_cast %c2_i32 : i32 to index
    %c0_28 = arith.constant 0 : index
    %c0_29 = arith.constant 0 : index
    %81 = vector.load %arg3[%80, %c0_28, %c0_29] : memref<8x8x384xf32, #tpu.memory_space<vmem>>, vector<1x8x384xf32>
    %82 = vector.shape_cast %81 : vector<1x8x384xf32> to vector<8x384xf32>
    %83 = arith.truncf %75 : vector<8x128xf32> to vector<8x128xbf16>
    %c0_30 = arith.constant 0 : index
    %c0_31 = arith.constant 0 : index
    %84 = vector.load %arg4[%c0_30, %c0_31] : memref<128x256xbf16, #tpu.memory_space<vmem>>, vector<128x256xbf16>
    %cst_32 = arith.constant dense<0.000000e+00> : vector<8x256xf32>
    %85 = tpu.matmul %83, %84, %cst_32 {dimension_numbers = #tpu.dot_dimension_numbers<[1], [0], [0], [1], [0, 0, 1, 1], [], []>} : vector<8x128xbf16>, vector<128x256xbf16>, vector<8x256xf32> -> vector<8x256xf32>
    %86 = vector.extract_strided_slice %82 {offsets = [0, 0], sizes = [8, 128], strides = [1, 1]} : vector<8x384xf32> to vector<8x128xf32>
    %87 = vector.extract_strided_slice %85 {offsets = [0, 0], sizes = [8, 128], strides = [1, 1]} : vector<8x256xf32> to vector<8x128xf32>
    %88 = arith.addf %86, %87 : vector<8x128xf32>
    %89 = arith.negf %88 : vector<8x128xf32>
    %90 = math.exp %89 : vector<8x128xf32>
    %cst_33 = arith.constant 1.000000e+00 : f32
    %91 = vector.broadcast %cst_33 : f32 to vector<8x128xf32>
    %92 = arith.addf %91, %90 : vector<8x128xf32>
    %93 = arith.divf %91, %92 : vector<8x128xf32>
    %94 = vector.extract_strided_slice %82 {offsets = [0, 128], sizes = [8, 128], strides = [1, 1]} : vector<8x384xf32> to vector<8x128xf32>
    %95 = vector.extract_strided_slice %85 {offsets = [0, 128], sizes = [8, 128], strides = [1, 1]} : vector<8x256xf32> to vector<8x128xf32>
    %96 = arith.addf %94, %95 : vector<8x128xf32>
    %97 = arith.negf %96 : vector<8x128xf32>
    %98 = math.exp %97 : vector<8x128xf32>
    %cst_34 = arith.constant 1.000000e+00 : f32
    %99 = vector.broadcast %cst_34 : f32 to vector<8x128xf32>
    %100 = arith.addf %99, %98 : vector<8x128xf32>
    %101 = arith.divf %99, %100 : vector<8x128xf32>
    %102 = vector.extract_strided_slice %82 {offsets = [0, 256], sizes = [8, 128], strides = [1, 1]} : vector<8x384xf32> to vector<8x128xf32>
    %103 = arith.mulf %93, %75 : vector<8x128xf32>
    %104 = arith.truncf %103 : vector<8x128xf32> to vector<8x128xbf16>
    %c0_35 = arith.constant 0 : index
    %c0_36 = arith.constant 0 : index
    %105 = vector.load %arg5[%c0_35, %c0_36] : memref<128x128xbf16, #tpu.memory_space<vmem>>, vector<128x128xbf16>
    %cst_37 = arith.constant dense<0.000000e+00> : vector<8x128xf32>
    %106 = tpu.matmul %104, %105, %cst_37 {dimension_numbers = #tpu.dot_dimension_numbers<[1], [0], [0], [1], [0, 0, 1, 1], [], []>} : vector<8x128xbf16>, vector<128x128xbf16>, vector<8x128xf32> -> vector<8x128xf32>
    %107 = arith.addf %102, %106 : vector<8x128xf32>
    %108 = math.tanh %107 : vector<8x128xf32>
    %cst_38 = arith.constant 1.000000e+00 : f32
    %109 = vector.broadcast %cst_38 : f32 to vector<8x128xf32>
    %110 = arith.subf %109, %101 : vector<8x128xf32>
    %111 = arith.mulf %110, %75 : vector<8x128xf32>
    %112 = arith.mulf %101, %108 : vector<8x128xf32>
    %113 = arith.addf %111, %112 : vector<8x128xf32>
    %114 = arith.index_cast %c2_i32 : i32 to index
    %c0_39 = arith.constant 0 : index
    %c0_40 = arith.constant 0 : index
    %115 = vector.load %arg6[%114, %c0_39, %c0_40] : memref<8x8x128xf32, #tpu.memory_space<vmem>>, vector<1x8x128xf32>
    %116 = vector.shape_cast %115 : vector<1x8x128xf32> to vector<8x128xf32>
    %117 = vector.shape_cast %113 : vector<8x128xf32> to vector<1x8x128xf32>
    tpu.vector_store %arg6[%114, %c0_39, %c0_40], %117 {strides = array<i32>} : memref<8x8x128xf32, #tpu.memory_space<vmem>>, vector<1x8x128xf32>,
    %c3_i32 = arith.constant 3 : i32
    %118 = arith.index_cast %c3_i32 : i32 to index
    %c0_41 = arith.constant 0 : index
    %c0_42 = arith.constant 0 : index
    %119 = vector.load %arg3[%118, %c0_41, %c0_42] : memref<8x8x384xf32, #tpu.memory_space<vmem>>, vector<1x8x384xf32>
    %120 = vector.shape_cast %119 : vector<1x8x384xf32> to vector<8x384xf32>
    %121 = arith.truncf %113 : vector<8x128xf32> to vector<8x128xbf16>
    %c0_43 = arith.constant 0 : index
    %c0_44 = arith.constant 0 : index
    %122 = vector.load %arg4[%c0_43, %c0_44] : memref<128x256xbf16, #tpu.memory_space<vmem>>, vector<128x256xbf16>
    %cst_45 = arith.constant dense<0.000000e+00> : vector<8x256xf32>
    %123 = tpu.matmul %121, %122, %cst_45 {dimension_numbers = #tpu.dot_dimension_numbers<[1], [0], [0], [1], [0, 0, 1, 1], [], []>} : vector<8x128xbf16>, vector<128x256xbf16>, vector<8x256xf32> -> vector<8x256xf32>
    %124 = vector.extract_strided_slice %120 {offsets = [0, 0], sizes = [8, 128], strides = [1, 1]} : vector<8x384xf32> to vector<8x128xf32>
    %125 = vector.extract_strided_slice %123 {offsets = [0, 0], sizes = [8, 128], strides = [1, 1]} : vector<8x256xf32> to vector<8x128xf32>
    %126 = arith.addf %124, %125 : vector<8x128xf32>
    %127 = arith.negf %126 : vector<8x128xf32>
    %128 = math.exp %127 : vector<8x128xf32>
    %cst_46 = arith.constant 1.000000e+00 : f32
    %129 = vector.broadcast %cst_46 : f32 to vector<8x128xf32>
    %130 = arith.addf %129, %128 : vector<8x128xf32>
    %131 = arith.divf %129, %130 : vector<8x128xf32>
    %132 = vector.extract_strided_slice %120 {offsets = [0, 128], sizes = [8, 128], strides = [1, 1]} : vector<8x384xf32> to vector<8x128xf32>
    %133 = vector.extract_strided_slice %123 {offsets = [0, 128], sizes = [8, 128], strides = [1, 1]} : vector<8x256xf32> to vector<8x128xf32>
    %134 = arith.addf %132, %133 : vector<8x128xf32>
    %135 = arith.negf %134 : vector<8x128xf32>
    %136 = math.exp %135 : vector<8x128xf32>
    %cst_47 = arith.constant 1.000000e+00 : f32
    %137 = vector.broadcast %cst_47 : f32 to vector<8x128xf32>
    %138 = arith.addf %137, %136 : vector<8x128xf32>
    %139 = arith.divf %137, %138 : vector<8x128xf32>
    %140 = vector.extract_strided_slice %120 {offsets = [0, 256], sizes = [8, 128], strides = [1, 1]} : vector<8x384xf32> to vector<8x128xf32>
    %141 = arith.mulf %131, %113 : vector<8x128xf32>
    %142 = arith.truncf %141 : vector<8x128xf32> to vector<8x128xbf16>
    %c0_48 = arith.constant 0 : index
    %c0_49 = arith.constant 0 : index
    %143 = vector.load %arg5[%c0_48, %c0_49] : memref<128x128xbf16, #tpu.memory_space<vmem>>, vector<128x128xbf16>
    %cst_50 = arith.constant dense<0.000000e+00> : vector<8x128xf32>
    %144 = tpu.matmul %142, %143, %cst_50 {dimension_numbers = #tpu.dot_dimension_numbers<[1], [0], [0], [1], [0, 0, 1, 1], [], []>} : vector<8x128xbf16>, vector<128x128xbf16>, vector<8x128xf32> -> vector<8x128xf32>
    %145 = arith.addf %140, %144 : vector<8x128xf32>
    %146 = math.tanh %145 : vector<8x128xf32>
    %cst_51 = arith.constant 1.000000e+00 : f32
    %147 = vector.broadcast %cst_51 : f32 to vector<8x128xf32>
    %148 = arith.subf %147, %139 : vector<8x128xf32>
    %149 = arith.mulf %148, %113 : vector<8x128xf32>
    %150 = arith.mulf %139, %146 : vector<8x128xf32>
    %151 = arith.addf %149, %150 : vector<8x128xf32>
    %152 = arith.index_cast %c3_i32 : i32 to index
    %c0_52 = arith.constant 0 : index
    %c0_53 = arith.constant 0 : index
    %153 = vector.load %arg6[%152, %c0_52, %c0_53] : memref<8x8x128xf32, #tpu.memory_space<vmem>>, vector<1x8x128xf32>
    %154 = vector.shape_cast %153 : vector<1x8x128xf32> to vector<8x128xf32>
    %155 = vector.shape_cast %151 : vector<8x128xf32> to vector<1x8x128xf32>
    tpu.vector_store %arg6[%152, %c0_52, %c0_53], %155 {strides = array<i32>} : memref<8x8x128xf32, #tpu.memory_space<vmem>>, vector<1x8x128xf32>,
    %c4_i32 = arith.constant 4 : i32
    %156 = arith.index_cast %c4_i32 : i32 to index
    %c0_54 = arith.constant 0 : index
    %c0_55 = arith.constant 0 : index
    %157 = vector.load %arg3[%156, %c0_54, %c0_55] : memref<8x8x384xf32, #tpu.memory_space<vmem>>, vector<1x8x384xf32>
    %158 = vector.shape_cast %157 : vector<1x8x384xf32> to vector<8x384xf32>
    %159 = arith.truncf %151 : vector<8x128xf32> to vector<8x128xbf16>
    %c0_56 = arith.constant 0 : index
    %c0_57 = arith.constant 0 : index
    %160 = vector.load %arg4[%c0_56, %c0_57] : memref<128x256xbf16, #tpu.memory_space<vmem>>, vector<128x256xbf16>
    %cst_58 = arith.constant dense<0.000000e+00> : vector<8x256xf32>
    %161 = tpu.matmul %159, %160, %cst_58 {dimension_numbers = #tpu.dot_dimension_numbers<[1], [0], [0], [1], [0, 0, 1, 1], [], []>} : vector<8x128xbf16>, vector<128x256xbf16>, vector<8x256xf32> -> vector<8x256xf32>
    %162 = vector.extract_strided_slice %158 {offsets = [0, 0], sizes = [8, 128], strides = [1, 1]} : vector<8x384xf32> to vector<8x128xf32>
    %163 = vector.extract_strided_slice %161 {offsets = [0, 0], sizes = [8, 128], strides = [1, 1]} : vector<8x256xf32> to vector<8x128xf32>
    %164 = arith.addf %162, %163 : vector<8x128xf32>
    %165 = arith.negf %164 : vector<8x128xf32>
    %166 = math.exp %165 : vector<8x128xf32>
    %cst_59 = arith.constant 1.000000e+00 : f32
    %167 = vector.broadcast %cst_59 : f32 to vector<8x128xf32>
    %168 = arith.addf %167, %166 : vector<8x128xf32>
    %169 = arith.divf %167, %168 : vector<8x128xf32>
    %170 = vector.extract_strided_slice %158 {offsets = [0, 128], sizes = [8, 128], strides = [1, 1]} : vector<8x384xf32> to vector<8x128xf32>
    %171 = vector.extract_strided_slice %161 {offsets = [0, 128], sizes = [8, 128], strides = [1, 1]} : vector<8x256xf32> to vector<8x128xf32>
    %172 = arith.addf %170, %171 : vector<8x128xf32>
    %173 = arith.negf %172 : vector<8x128xf32>
    %174 = math.exp %173 : vector<8x128xf32>
    %cst_60 = arith.constant 1.000000e+00 : f32
    %175 = vector.broadcast %cst_60 : f32 to vector<8x128xf32>
    %176 = arith.addf %175, %174 : vector<8x128xf32>
    %177 = arith.divf %175, %176 : vector<8x128xf32>
    %178 = vector.extract_strided_slice %158 {offsets = [0, 256], sizes = [8, 128], strides = [1, 1]} : vector<8x384xf32> to vector<8x128xf32>
    %179 = arith.mulf %169, %151 : vector<8x128xf32>
    %180 = arith.truncf %179 : vector<8x128xf32> to vector<8x128xbf16>
    %c0_61 = arith.constant 0 : index
    %c0_62 = arith.constant 0 : index
    %181 = vector.load %arg5[%c0_61, %c0_62] : memref<128x128xbf16, #tpu.memory_space<vmem>>, vector<128x128xbf16>
    %cst_63 = arith.constant dense<0.000000e+00> : vector<8x128xf32>
    %182 = tpu.matmul %180, %181, %cst_63 {dimension_numbers = #tpu.dot_dimension_numbers<[1], [0], [0], [1], [0, 0, 1, 1], [], []>} : vector<8x128xbf16>, vector<128x128xbf16>, vector<8x128xf32> -> vector<8x128xf32>
    %183 = arith.addf %178, %182 : vector<8x128xf32>
    %184 = math.tanh %183 : vector<8x128xf32>
    %cst_64 = arith.constant 1.000000e+00 : f32
    %185 = vector.broadcast %cst_64 : f32 to vector<8x128xf32>
    %186 = arith.subf %185, %177 : vector<8x128xf32>
    %187 = arith.mulf %186, %151 : vector<8x128xf32>
    %188 = arith.mulf %177, %184 : vector<8x128xf32>
    %189 = arith.addf %187, %188 : vector<8x128xf32>
    %190 = arith.index_cast %c4_i32 : i32 to index
    %c0_65 = arith.constant 0 : index
    %c0_66 = arith.constant 0 : index
    %191 = vector.load %arg6[%190, %c0_65, %c0_66] : memref<8x8x128xf32, #tpu.memory_space<vmem>>, vector<1x8x128xf32>
    %192 = vector.shape_cast %191 : vector<1x8x128xf32> to vector<8x128xf32>
    %193 = vector.shape_cast %189 : vector<8x128xf32> to vector<1x8x128xf32>
    tpu.vector_store %arg6[%190, %c0_65, %c0_66], %193 {strides = array<i32>} : memref<8x8x128xf32, #tpu.memory_space<vmem>>, vector<1x8x128xf32>,
    %c5_i32 = arith.constant 5 : i32
    %194 = arith.index_cast %c5_i32 : i32 to index
    %c0_67 = arith.constant 0 : index
    %c0_68 = arith.constant 0 : index
    %195 = vector.load %arg3[%194, %c0_67, %c0_68] : memref<8x8x384xf32, #tpu.memory_space<vmem>>, vector<1x8x384xf32>
    %196 = vector.shape_cast %195 : vector<1x8x384xf32> to vector<8x384xf32>
    %197 = arith.truncf %189 : vector<8x128xf32> to vector<8x128xbf16>
    %c0_69 = arith.constant 0 : index
    %c0_70 = arith.constant 0 : index
    %198 = vector.load %arg4[%c0_69, %c0_70] : memref<128x256xbf16, #tpu.memory_space<vmem>>, vector<128x256xbf16>
    %cst_71 = arith.constant dense<0.000000e+00> : vector<8x256xf32>
    %199 = tpu.matmul %197, %198, %cst_71 {dimension_numbers = #tpu.dot_dimension_numbers<[1], [0], [0], [1], [0, 0, 1, 1], [], []>} : vector<8x128xbf16>, vector<128x256xbf16>, vector<8x256xf32> -> vector<8x256xf32>
    %200 = vector.extract_strided_slice %196 {offsets = [0, 0], sizes = [8, 128], strides = [1, 1]} : vector<8x384xf32> to vector<8x128xf32>
    %201 = vector.extract_strided_slice %199 {offsets = [0, 0], sizes = [8, 128], strides = [1, 1]} : vector<8x256xf32> to vector<8x128xf32>
    %202 = arith.addf %200, %201 : vector<8x128xf32>
    %203 = arith.negf %202 : vector<8x128xf32>
    %204 = math.exp %203 : vector<8x128xf32>
    %cst_72 = arith.constant 1.000000e+00 : f32
    %205 = vector.broadcast %cst_72 : f32 to vector<8x128xf32>
    %206 = arith.addf %205, %204 : vector<8x128xf32>
    %207 = arith.divf %205, %206 : vector<8x128xf32>
    %208 = vector.extract_strided_slice %196 {offsets = [0, 128], sizes = [8, 128], strides = [1, 1]} : vector<8x384xf32> to vector<8x128xf32>
    %209 = vector.extract_strided_slice %199 {offsets = [0, 128], sizes = [8, 128], strides = [1, 1]} : vector<8x256xf32> to vector<8x128xf32>
    %210 = arith.addf %208, %209 : vector<8x128xf32>
    %211 = arith.negf %210 : vector<8x128xf32>
    %212 = math.exp %211 : vector<8x128xf32>
    %cst_73 = arith.constant 1.000000e+00 : f32
    %213 = vector.broadcast %cst_73 : f32 to vector<8x128xf32>
    %214 = arith.addf %213, %212 : vector<8x128xf32>
    %215 = arith.divf %213, %214 : vector<8x128xf32>
    %216 = vector.extract_strided_slice %196 {offsets = [0, 256], sizes = [8, 128], strides = [1, 1]} : vector<8x384xf32> to vector<8x128xf32>
    %217 = arith.mulf %207, %189 : vector<8x128xf32>
    %218 = arith.truncf %217 : vector<8x128xf32> to vector<8x128xbf16>
    %c0_74 = arith.constant 0 : index
    %c0_75 = arith.constant 0 : index
    %219 = vector.load %arg5[%c0_74, %c0_75] : memref<128x128xbf16, #tpu.memory_space<vmem>>, vector<128x128xbf16>
    %cst_76 = arith.constant dense<0.000000e+00> : vector<8x128xf32>
    %220 = tpu.matmul %218, %219, %cst_76 {dimension_numbers = #tpu.dot_dimension_numbers<[1], [0], [0], [1], [0, 0, 1, 1], [], []>} : vector<8x128xbf16>, vector<128x128xbf16>, vector<8x128xf32> -> vector<8x128xf32>
    %221 = arith.addf %216, %220 : vector<8x128xf32>
    %222 = math.tanh %221 : vector<8x128xf32>
    %cst_77 = arith.constant 1.000000e+00 : f32
    %223 = vector.broadcast %cst_77 : f32 to vector<8x128xf32>
    %224 = arith.subf %223, %215 : vector<8x128xf32>
    %225 = arith.mulf %224, %189 : vector<8x128xf32>
    %226 = arith.mulf %215, %222 : vector<8x128xf32>
    %227 = arith.addf %225, %226 : vector<8x128xf32>
    %228 = arith.index_cast %c5_i32 : i32 to index
    %c0_78 = arith.constant 0 : index
    %c0_79 = arith.constant 0 : index
    %229 = vector.load %arg6[%228, %c0_78, %c0_79] : memref<8x8x128xf32, #tpu.memory_space<vmem>>, vector<1x8x128xf32>
    %230 = vector.shape_cast %229 : vector<1x8x128xf32> to vector<8x128xf32>
    %231 = vector.shape_cast %227 : vector<8x128xf32> to vector<1x8x128xf32>
    tpu.vector_store %arg6[%228, %c0_78, %c0_79], %231 {strides = array<i32>} : memref<8x8x128xf32, #tpu.memory_space<vmem>>, vector<1x8x128xf32>,
    %c6_i32 = arith.constant 6 : i32
    %232 = arith.index_cast %c6_i32 : i32 to index
    %c0_80 = arith.constant 0 : index
    %c0_81 = arith.constant 0 : index
    %233 = vector.load %arg3[%232, %c0_80, %c0_81] : memref<8x8x384xf32, #tpu.memory_space<vmem>>, vector<1x8x384xf32>
    %234 = vector.shape_cast %233 : vector<1x8x384xf32> to vector<8x384xf32>
    %235 = arith.truncf %227 : vector<8x128xf32> to vector<8x128xbf16>
    %c0_82 = arith.constant 0 : index
    %c0_83 = arith.constant 0 : index
    %236 = vector.load %arg4[%c0_82, %c0_83] : memref<128x256xbf16, #tpu.memory_space<vmem>>, vector<128x256xbf16>
    %cst_84 = arith.constant dense<0.000000e+00> : vector<8x256xf32>
    %237 = tpu.matmul %235, %236, %cst_84 {dimension_numbers = #tpu.dot_dimension_numbers<[1], [0], [0], [1], [0, 0, 1, 1], [], []>} : vector<8x128xbf16>, vector<128x256xbf16>, vector<8x256xf32> -> vector<8x256xf32>
    %238 = vector.extract_strided_slice %234 {offsets = [0, 0], sizes = [8, 128], strides = [1, 1]} : vector<8x384xf32> to vector<8x128xf32>
    %239 = vector.extract_strided_slice %237 {offsets = [0, 0], sizes = [8, 128], strides = [1, 1]} : vector<8x256xf32> to vector<8x128xf32>
    %240 = arith.addf %238, %239 : vector<8x128xf32>
    %241 = arith.negf %240 : vector<8x128xf32>
    %242 = math.exp %241 : vector<8x128xf32>
    %cst_85 = arith.constant 1.000000e+00 : f32
    %243 = vector.broadcast %cst_85 : f32 to vector<8x128xf32>
    %244 = arith.addf %243, %242 : vector<8x128xf32>
    %245 = arith.divf %243, %244 : vector<8x128xf32>
    %246 = vector.extract_strided_slice %234 {offsets = [0, 128], sizes = [8, 128], strides = [1, 1]} : vector<8x384xf32> to vector<8x128xf32>
    %247 = vector.extract_strided_slice %237 {offsets = [0, 128], sizes = [8, 128], strides = [1, 1]} : vector<8x256xf32> to vector<8x128xf32>
    %248 = arith.addf %246, %247 : vector<8x128xf32>
    %249 = arith.negf %248 : vector<8x128xf32>
    %250 = math.exp %249 : vector<8x128xf32>
    %cst_86 = arith.constant 1.000000e+00 : f32
    %251 = vector.broadcast %cst_86 : f32 to vector<8x128xf32>
    %252 = arith.addf %251, %250 : vector<8x128xf32>
    %253 = arith.divf %251, %252 : vector<8x128xf32>
    %254 = vector.extract_strided_slice %234 {offsets = [0, 256], sizes = [8, 128], strides = [1, 1]} : vector<8x384xf32> to vector<8x128xf32>
    %255 = arith.mulf %245, %227 : vector<8x128xf32>
    %256 = arith.truncf %255 : vector<8x128xf32> to vector<8x128xbf16>
    %c0_87 = arith.constant 0 : index
    %c0_88 = arith.constant 0 : index
    %257 = vector.load %arg5[%c0_87, %c0_88] : memref<128x128xbf16, #tpu.memory_space<vmem>>, vector<128x128xbf16>
    %cst_89 = arith.constant dense<0.000000e+00> : vector<8x128xf32>
    %258 = tpu.matmul %256, %257, %cst_89 {dimension_numbers = #tpu.dot_dimension_numbers<[1], [0], [0], [1], [0, 0, 1, 1], [], []>} : vector<8x128xbf16>, vector<128x128xbf16>, vector<8x128xf32> -> vector<8x128xf32>
    %259 = arith.addf %254, %258 : vector<8x128xf32>
    %260 = math.tanh %259 : vector<8x128xf32>
    %cst_90 = arith.constant 1.000000e+00 : f32
    %261 = vector.broadcast %cst_90 : f32 to vector<8x128xf32>
    %262 = arith.subf %261, %253 : vector<8x128xf32>
    %263 = arith.mulf %262, %227 : vector<8x128xf32>
    %264 = arith.mulf %253, %260 : vector<8x128xf32>
    %265 = arith.addf %263, %264 : vector<8x128xf32>
    %266 = arith.index_cast %c6_i32 : i32 to index
    %c0_91 = arith.constant 0 : index
    %c0_92 = arith.constant 0 : index
    %267 = vector.load %arg6[%266, %c0_91, %c0_92] : memref<8x8x128xf32, #tpu.memory_space<vmem>>, vector<1x8x128xf32>
    %268 = vector.shape_cast %267 : vector<1x8x128xf32> to vector<8x128xf32>
    %269 = vector.shape_cast %265 : vector<8x128xf32> to vector<1x8x128xf32>
    tpu.vector_store %arg6[%266, %c0_91, %c0_92], %269 {strides = array<i32>} : memref<8x8x128xf32, #tpu.memory_space<vmem>>, vector<1x8x128xf32>,
    %c7_i32 = arith.constant 7 : i32
    %270 = arith.index_cast %c7_i32 : i32 to index
    %c0_93 = arith.constant 0 : index
    %c0_94 = arith.constant 0 : index
    %271 = vector.load %arg3[%270, %c0_93, %c0_94] : memref<8x8x384xf32, #tpu.memory_space<vmem>>, vector<1x8x384xf32>
    %272 = vector.shape_cast %271 : vector<1x8x384xf32> to vector<8x384xf32>
    %273 = arith.truncf %265 : vector<8x128xf32> to vector<8x128xbf16>
    %c0_95 = arith.constant 0 : index
    %c0_96 = arith.constant 0 : index
    %274 = vector.load %arg4[%c0_95, %c0_96] : memref<128x256xbf16, #tpu.memory_space<vmem>>, vector<128x256xbf16>
    %cst_97 = arith.constant dense<0.000000e+00> : vector<8x256xf32>
    %275 = tpu.matmul %273, %274, %cst_97 {dimension_numbers = #tpu.dot_dimension_numbers<[1], [0], [0], [1], [0, 0, 1, 1], [], []>} : vector<8x128xbf16>, vector<128x256xbf16>, vector<8x256xf32> -> vector<8x256xf32>
    %276 = vector.extract_strided_slice %272 {offsets = [0, 0], sizes = [8, 128], strides = [1, 1]} : vector<8x384xf32> to vector<8x128xf32>
    %277 = vector.extract_strided_slice %275 {offsets = [0, 0], sizes = [8, 128], strides = [1, 1]} : vector<8x256xf32> to vector<8x128xf32>
    %278 = arith.addf %276, %277 : vector<8x128xf32>
    %279 = arith.negf %278 : vector<8x128xf32>
    %280 = math.exp %279 : vector<8x128xf32>
    %cst_98 = arith.constant 1.000000e+00 : f32
    %281 = vector.broadcast %cst_98 : f32 to vector<8x128xf32>
    %282 = arith.addf %281, %280 : vector<8x128xf32>
    %283 = arith.divf %281, %282 : vector<8x128xf32>
    %284 = vector.extract_strided_slice %272 {offsets = [0, 128], sizes = [8, 128], strides = [1, 1]} : vector<8x384xf32> to vector<8x128xf32>
    %285 = vector.extract_strided_slice %275 {offsets = [0, 128], sizes = [8, 128], strides = [1, 1]} : vector<8x256xf32> to vector<8x128xf32>
    %286 = arith.addf %284, %285 : vector<8x128xf32>
    %287 = arith.negf %286 : vector<8x128xf32>
    %288 = math.exp %287 : vector<8x128xf32>
    %cst_99 = arith.constant 1.000000e+00 : f32
    %289 = vector.broadcast %cst_99 : f32 to vector<8x128xf32>
    %290 = arith.addf %289, %288 : vector<8x128xf32>
    %291 = arith.divf %289, %290 : vector<8x128xf32>
    %292 = vector.extract_strided_slice %272 {offsets = [0, 256], sizes = [8, 128], strides = [1, 1]} : vector<8x384xf32> to vector<8x128xf32>
    %293 = arith.mulf %283, %265 : vector<8x128xf32>
    %294 = arith.truncf %293 : vector<8x128xf32> to vector<8x128xbf16>
    %c0_100 = arith.constant 0 : index
    %c0_101 = arith.constant 0 : index
    %295 = vector.load %arg5[%c0_100, %c0_101] : memref<128x128xbf16, #tpu.memory_space<vmem>>, vector<128x128xbf16>
    %cst_102 = arith.constant dense<0.000000e+00> : vector<8x128xf32>
    %296 = tpu.matmul %294, %295, %cst_102 {dimension_numbers = #tpu.dot_dimension_numbers<[1], [0], [0], [1], [0, 0, 1, 1], [], []>} : vector<8x128xbf16>, vector<128x128xbf16>, vector<8x128xf32> -> vector<8x128xf32>
    %297 = arith.addf %292, %296 : vector<8x128xf32>
    %298 = math.tanh %297 : vector<8x128xf32>
    %cst_103 = arith.constant 1.000000e+00 : f32
    %299 = vector.broadcast %cst_103 : f32 to vector<8x128xf32>
    %300 = arith.subf %299, %291 : vector<8x128xf32>
    %301 = arith.mulf %300, %265 : vector<8x128xf32>
    %302 = arith.mulf %291, %298 : vector<8x128xf32>
    %303 = arith.addf %301, %302 : vector<8x128xf32>
    %304 = arith.index_cast %c7_i32 : i32 to index
    %c0_104 = arith.constant 0 : index
    %c0_105 = arith.constant 0 : index
    %305 = vector.load %arg6[%304, %c0_104, %c0_105] : memref<8x8x128xf32, #tpu.memory_space<vmem>>, vector<1x8x128xf32>
    %306 = vector.shape_cast %305 : vector<1x8x128xf32> to vector<8x128xf32>
    %307 = vector.shape_cast %303 : vector<8x128xf32> to vector<1x8x128xf32>
    tpu.vector_store %arg6[%304, %c0_104, %c0_105], %307 {strides = array<i32>} : memref<8x8x128xf32, #tpu.memory_space<vmem>>, vector<1x8x128xf32>,
    %c8_i32 = arith.constant 8 : i32
    %c0_106 = arith.constant 0 : index
    %c0_107 = arith.constant 0 : index
    %308 = vector.load %arg7[%c0_106, %c0_107] : memref<8x128xf32, #tpu.memory_space<vmem>>, vector<8x128xf32>
    tpu.vector_store %arg7[%c0_106, %c0_107], %303 {strides = array<i32>} : memref<8x128xf32, #tpu.memory_space<vmem>>, vector<8x128xf32>,
    return
  }
  func.func @transform_0(%arg0: i32, %arg1: i32) -> (i32, i32) {
    %c0_i32 = arith.constant 0 : i32
    %c0_i32_0 = arith.constant 0 : i32
    return %arg0, %c0_i32 : i32, i32
  }
  func.func @transform_1(%arg0: i32, %arg1: i32) -> (i32, i32, i32) {
    %c0_i32 = arith.constant 0 : i32
    %c0_i32_0 = arith.constant 0 : i32
    return %arg1, %arg0, %c0_i32 : i32, i32, i32
  }
  func.func @transform_2(%arg0: i32, %arg1: i32) -> (i32, i32) {
    %c0_i32 = arith.constant 0 : i32
    %c0_i32_0 = arith.constant 0 : i32
    %c0_i32_1 = arith.constant 0 : i32
    return %c0_i32, %c0_i32_0 : i32, i32
  }
  func.func @transform_3(%arg0: i32, %arg1: i32) -> (i32, i32) {
    %c0_i32 = arith.constant 0 : i32
    %c0_i32_0 = arith.constant 0 : i32
    %c0_i32_1 = arith.constant 0 : i32
    return %c0_i32, %c0_i32_0 : i32, i32
  }
  func.func @transform_4(%arg0: i32, %arg1: i32) -> (i32, i32, i32) {
    %c0_i32 = arith.constant 0 : i32
    %c0_i32_0 = arith.constant 0 : i32
    return %arg1, %arg0, %c0_i32 : i32, i32, i32
  }
}

</mosaic_0001>

<llo_original>
// kernel: tpu_custom_call.1
$region0: #{tpu_custom_call.1}
  #allocation0 [shape = 'u32[]', space=smem, size = 0x4, offset = 0x4, fixed_abs, tag = 'smem constant byte address 0x4 - core index']
  #allocation1 [shape = 'u32[144,128]{1,0:T(1,128)}', space=vmem, size = 0x12000, scoped, tag = 'internal scratch']
  #allocation2 [shape = 'f32[8,128]{1,0:T(8,128)}', space=vmem, size = 0x1000, scoped, tag = 'scratch operand']
  %s0 = inlined_call_operand.hbm [shape: f32[8,128], index: 0, kind: input, shape index: {}]
  %s1 = inlined_call_operand.hbm [shape: f32[8,8,384], index: 1, kind: input, shape index: {}]
  %s2 = inlined_call_operand.hbm [shape: bf16[128,256], index: 2, kind: input, shape index: {}]
  %s3 = inlined_call_operand.hbm [shape: bf16[128,128], index: 3, kind: input, shape index: {}]
  %s4 = inlined_call_operand.hbm [shape: f32[8,8,128], index: 4, kind: output, shape index: {}]
  %s5 = sld [smem:[#allocation0]]
  $region46: #{tpu_custom_call.1} parent=0
    _
  %s7 = ssub.s32 1, %s5
  %s8 = scalar_select 0, %s7, %s5
  $region1: #{tpu_custom_call.1} parent=0
    #allocation3 [shape = 'u8[4096]{0}', space=vmem, size = 0x1000, scoped, tag = 'input window, operand 0, single buffered']
    #allocation4 [shape = 's32[1]{0}', space=sflag, size = 0x4, scoped, tag = 'scoped memory for tpu_custom_call.1']
    #allocation5 [shape = 's32[1]{0}', space=sflag, size = 0x4, scoped, tag = 'scoped memory for tpu_custom_call.1']
    #allocation6 [shape = 'u8[98304]{0}', space=vmem, size = 0x18000, scoped, tag = 'input window, operand 1, single buffered']
    #allocation7 [shape = 's32[1]{0}', space=sflag, size = 0x4, scoped, tag = 'scoped memory for tpu_custom_call.1']
    #allocation8 [shape = 'u8[65536]{0}', space=vmem, size = 0x10000, scoped, tag = 'input window, operand 2, single buffered']
    #allocation9 [shape = 'u8[32768]{0}', space=vmem, size = 0x8000, scoped, tag = 'input window, operand 3, single buffered']
    #allocation10 [shape = 's32[1]{0}', space=sflag, size = 0x4, scoped, tag = 'scoped memory for tpu_custom_call.1']
    #allocation11 [shape = 'u8[32768]{0}', space=vmem, size = 0x8000, scoped, tag = 'output window, operand 0, single buffered']
    %9 = vsyncpa [#allocation4], 0
    %10 = vsyncpa [#allocation7], 0
    %11 = vsyncpa [#allocation10], 0
    %12 = vsyncpa [#allocation5], 0
    // Predicated region
    $region2: #{tpu_custom_call.1} parent=1 // pred_check
      _
    $region3: #{tpu_custom_call.1} parent=1 // pred_check_branch
      %14 = sbr.rel (0) target = $region5
    $region4: #{tpu_custom_call.1} parent=1 // pred_region
      %s16 = ssub.s32 128, 128
      %17 = vsyncadd [#allocation4], %s16
      %s19 = sshll.u32 [#allocation3], 4
      %s20 = int_to_ptr.vmem [resolvable:$true] %s19
      %22 = dma.hbm_to_vmem [thread:$0]  %s0, 128, %s20, [#allocation4]
    $region5: #{tpu_custom_call.1} parent=1 // pred_fallthru
      _
    // Predicated region
    $region6: #{tpu_custom_call.1} parent=1 // pred_check
      _
    $region7: #{tpu_custom_call.1} parent=1 // pred_check_branch
      %24 = sbr.rel (0) target = $region9
    $region8: #{tpu_custom_call.1} parent=1 // pred_region
      %s26 = ssub.s32 3072, 3072
      %27 = vsyncadd [#allocation7], %s26
      %s28 = sshll.u32 [#allocation6], 4
      %s29 = int_to_ptr.vmem [resolvable:$true] %s28
      %34 = dma.hbm_to_vmem [thread:$0]  %s1, 3072, %s29, [#allocation7], 384, 384, 24
    $region9: #{tpu_custom_call.1} parent=1 // pred_fallthru
      _
    // Predicated region
    $region10: #{tpu_custom_call.1} parent=1 // pred_check
      _
    $region11: #{tpu_custom_call.1} parent=1 // pred_check_branch
      %36 = sbr.rel (0) target = $region13
    $region12: #{tpu_custom_call.1} parent=1 // pred_region
      %s38 = ssub.s32 2048, 2048
      %39 = vsyncadd [#allocation7], %s38
      %s40 = sshll.u32 [#allocation8], 4
      %s41 = int_to_ptr.vmem [resolvable:$true] %s40
      %46 = dma.hbm_to_vmem [thread:$0]  %s2, 2048, %s41, [#allocation7], 128, 128, 8
    $region13: #{tpu_custom_call.1} parent=1 // pred_fallthru
      _
    // Predicated region
    $region14: #{tpu_custom_call.1} parent=1 // pred_check
      _
    $region15: #{tpu_custom_call.1} parent=1 // pred_check_branch
      %48 = sbr.rel (0) target = $region17
    $region16: #{tpu_custom_call.1} parent=1 // pred_region
      %s50 = ssub.s32 1024, 1024
      %51 = vsyncadd [#allocation10], %s50
      %s52 = sshll.u32 [#allocation9], 4
      %s53 = int_to_ptr.vmem [resolvable:$true] %s52
      %58 = dma.hbm_to_vmem [thread:$0]  %s3, 1024, %s53, [#allocation10], 64, 64, 4
    $region17: #{tpu_custom_call.1} parent=1 // pred_fallthru
      _
    // Predicated region
    $region18: #{tpu_custom_call.1} parent=1 // pred_check
      _
    $region19: #{tpu_custom_call.1} parent=1 // pred_check_branch
      %60 = sbr.rel (0) target = $region21
    $region20: #{tpu_custom_call.1} parent=1 // pred_region
      %61 = dma.done [#allocation4], 128
    $region21: #{tpu_custom_call.1} parent=1 // pred_fallthru
      _
    // Predicated region
    $region22: #{tpu_custom_call.1} parent=1 // pred_check
      _
    $region23: #{tpu_custom_call.1} parent=1 // pred_check_branch
      %63 = sbr.rel (0) target = $region25
    $region24: #{tpu_custom_call.1} parent=1 // pred_region
      %64 = dma.done [#allocation7], 3072
    $region25: #{tpu_custom_call.1} parent=1 // pred_fallthru
      _
    // Predicated region
    $region26: #{tpu_custom_call.1} parent=1 // pred_check
      _
    $region27: #{tpu_custom_call.1} parent=1 // pred_check_branch
      %66 = sbr.rel (0) target = $region29
    $region28: #{tpu_custom_call.1} parent=1 // pred_region
      %67 = dma.done [#allocation7], 2048
    $region29: #{tpu_custom_call.1} parent=1 // pred_fallthru
      _
    // Predicated region
    $region30: #{tpu_custom_call.1} parent=1 // pred_check
      _
    $region31: #{tpu_custom_call.1} parent=1 // pred_check_branch
      %69 = sbr.rel (0) target = $region33
    $region32: #{tpu_custom_call.1} parent=1 // pred_region
      %70 = dma.done [#allocation10], 1024
    $region33: #{tpu_custom_call.1} parent=1 // pred_fallthru
      _
    %p72 = scmp.eq.s32.totalorder 0, 0
    // Predicated region
    $region34: #{tpu_custom_call.1} parent=1 // pred_check
      %p73 = pneg %p72
    $region35: #{tpu_custom_call.1} parent=1 // pred_check_branch
      %75 = sbr.rel (%p73) target = $region37
    $region36: #{tpu_custom_call.1} parent=1 // pred_region
      %v76 = vld [vmem:[#allocation3] sm:$0xff]
      %77 = vst [vmem:[#allocation2] sm:$0xff] %v76
    $region37: #{tpu_custom_call.1} parent=1 // pred_fallthru
      _
    %v78 = vld [vmem:[#allocation2] sm:$0xff]
    %v79 = vld [vmem:[#allocation6] sm:$0xff]
    %v80 = vld [vmem:[#allocation6 + $0x8] sm:$0xff]
    %v81 = vld [vmem:[#allocation6 + $0x10] sm:$0xff]
    %v82 = vpack.c.bf16 %v78, %v78
    %v83 = vld [vmem:[#allocation8] sm:$0xff]
    %v84 = vld [vmem:[#allocation8 + $0x8] sm:$0xff]
    %v85 = vld [vmem:[#allocation8 + $0x10] sm:$0xff]
    %v86 = vld [vmem:[#allocation8 + $0x18] sm:$0xff]
    %v87 = vld [vmem:[#allocation8 + $0x20] sm:$0xff]
    %v88 = vld [vmem:[#allocation8 + $0x28] sm:$0xff]
    %v89 = vld [vmem:[#allocation8 + $0x30] sm:$0xff]
    %v90 = vld [vmem:[#allocation8 + $0x38] sm:$0xff]
    %v91 = vld [vmem:[#allocation8 + $0x40] sm:$0xff]
    %v92 = vld [vmem:[#allocation8 + $0x48] sm:$0xff]
    %v93 = vld [vmem:[#allocation8 + $0x50] sm:$0xff]
    %v94 = vld [vmem:[#allocation8 + $0x58] sm:$0xff]
    %v95 = vld [vmem:[#allocation8 + $0x60] sm:$0xff]
    %v96 = vld [vmem:[#allocation8 + $0x68] sm:$0xff]
    %v97 = vld [vmem:[#allocation8 + $0x70] sm:$0xff]
    %v98 = vld [vmem:[#allocation8 + $0x78] sm:$0xff]
    %v115 = vunpack.c.l.b16 %v83
    %v116 = vunpack.c.h.b16 %v83
    %v117 = vunpack.c.l.b16 %v84
    %v118 = vunpack.c.h.b16 %v84
    %v119 = vunpack.c.l.b16 %v85
    %v120 = vunpack.c.h.b16 %v85
    %v121 = vunpack.c.l.b16 %v86
    %v122 = vunpack.c.h.b16 %v86
    %v123 = vunpack.c.l.b16 %v87
    %v124 = vunpack.c.h.b16 %v87
    %v125 = vunpack.c.l.b16 %v88
    %v126 = vunpack.c.h.b16 %v88
    %v127 = vunpack.c.l.b16 %v89
    %v128 = vunpack.c.h.b16 %v89
    %v129 = vunpack.c.l.b16 %v90
    %v130 = vunpack.c.h.b16 %v90
    %v131 = vunpack.c.l.b16 %v91
    %v132 = vunpack.c.h.b16 %v91
    %v133 = vunpack.c.l.b16 %v92
    %v134 = vunpack.c.h.b16 %v92
    %v135 = vunpack.c.l.b16 %v93
    %v136 = vunpack.c.h.b16 %v93
    %v137 = vunpack.c.l.b16 %v94
    %v138 = vunpack.c.h.b16 %v94
    %v139 = vunpack.c.l.b16 %v95
    %v140 = vunpack.c.h.b16 %v95
    %v141 = vunpack.c.l.b16 %v96
    %v142 = vunpack.c.h.b16 %v96
    %v143 = vunpack.c.l.b16 %v97
    %v144 = vunpack.c.h.b16 %v97
    %v145 = vunpack.c.l.b16 %v98
    %v146 = vunpack.c.h.b16 %v98
    %v147 = vpack.c.b16 %v117, %v115
    %v148 = vpack.c.b16 %v118, %v116
    %v149 = vpack.c.b16 %v121, %v119
    %v150 = vpack.c.b16 %v122, %v120
    %v151 = vpack.c.b16 %v125, %v123
    %v152 = vpack.c.b16 %v126, %v124
    %v153 = vpack.c.b16 %v129, %v127
    %v154 = vpack.c.b16 %v130, %v128
    %v155 = vpack.c.b16 %v133, %v131
    %v156 = vpack.c.b16 %v134, %v132
    %v157 = vpack.c.b16 %v137, %v135
    %v158 = vpack.c.b16 %v138, %v136
    %v159 = vpack.c.b16 %v141, %v139
    %v160 = vpack.c.b16 %v142, %v140
    %v161 = vpack.c.b16 %v145, %v143
    %v162 = vpack.c.b16 %v146, %v144
    %179 = vmatprep.subr.bf16.mxu0 %v148
    %180 = vmatpush1.bf16.msra.mxu0 %v147
    %181 = vmatprep.subr.bf16.mxu0 %v150
    %182 = vmatpush1.bf16.msra.mxu0 %v149
    %183 = vmatprep.subr.bf16.mxu0 %v152
    %184 = vmatpush1.bf16.msra.mxu0 %v151
    %185 = vmatprep.subr.bf16.mxu0 %v154
    %186 = vmatpush1.bf16.msra.mxu0 %v153
    %187 = vmatprep.subr.bf16.mxu0 %v156
    %188 = vmatpush1.bf16.msra.mxu0 %v155
    %189 = vmatprep.subr.bf16.mxu0 %v158
    %190 = vmatpush1.bf16.msra.mxu0 %v157
    %191 = vmatprep.subr.bf16.mxu0 %v160
    %192 = vmatpush1.bf16.msra.mxu0 %v159
    %193 = vmatprep.subr.bf16.mxu0 %v162
    %194 = vmatpush1.bf16.msra.mxu0 %v161
    %195 = vmatprep.subr.bf16.mxu0 0
    %196 = vmatpush1.bf16.msra.mxu0 0
    %197 = vmatprep.subr.bf16.mxu0 0
    %198 = vmatpush1.bf16.msra.mxu0 0
    %199 = vmatprep.subr.bf16.mxu0 0
    %200 = vmatpush1.bf16.msra.mxu0 0
    %201 = vmatprep.subr.bf16.mxu0 0
    %202 = vmatpush1.bf16.msra.mxu0 0
    %203 = vmatprep.subr.bf16.mxu0 0
    %204 = vmatpush1.bf16.msra.mxu0 0
    %205 = vmatprep.subr.bf16.mxu0 0
    %206 = vmatpush1.bf16.msra.mxu0 0
    %207 = vmatprep.subr.bf16.mxu0 0
    %208 = vmatpush1.bf16.msra.mxu0 0
    %209 = vmatprep.subr.bf16.mxu0 0
    %210 = vmatpush1.bf16.msra.mxu0 0
    %211 = vmatprep.mubr.bf16.mxu0 0
    %212 = vmatmul.mubr.bf16.gmra.mrb[0].mxu0 %v82
    %v213 = vpop.f32.mrb[0].mxu0
    %v214 = vadd.f32 0.0, %v213
    %v215 = vpop.f32.mrb[0].mxu0
    %v216 = vadd.f32 0.0, %v215
    %v217 = vpop.f32.mrb[0].mxu0
    %v218 = vpop.f32.mrb[0].mxu0
    %219 = vdwg.mxu0
    %v220 = vadd.f32 %v79, %v214
    %v221 = vxor.u32 %v220, 2147483648
    %v222 = vmul.f32 %v221, 1.442695
    %v223 = vpow.pop %v222
    %v224 = vadd.f32 %v223, 1.0
    %v225 = vrcp.pop %v224
    %v226 = vmul.f32 1.0, %v225
    %v227 = vadd.f32 %v80, %v216
    %v228 = vxor.u32 %v227, 2147483648
    %v229 = vmul.f32 %v228, 1.442695
    %v230 = vpow.pop %v229
    %v231 = vadd.f32 %v230, 1.0
    %v232 = vrcp.pop %v231
    %v233 = vmul.f32 1.0, %v232
    %v234 = vmul.f32 %v226, %v78
    %v235 = vpack.c.bf16 %v234, %v234
    %v236 = vld [vmem:[#allocation9] sm:$0xf]
    %v237 = vld [vmem:[#allocation9 + $0x4] sm:$0xf]
    %v238 = vld [vmem:[#allocation9 + $0x8] sm:$0xf]
    %v239 = vld [vmem:[#allocation9 + $0xc] sm:$0xf]
    %v240 = vld [vmem:[#allocation9 + $0x10] sm:$0xf]
    %v241 = vld [vmem:[#allocation9 + $0x14] sm:$0xf]
    %v242 = vld [vmem:[#allocation9 + $0x18] sm:$0xf]
    %v243 = vld [vmem:[#allocation9 + $0x1c] sm:$0xf]
    %v244 = vld [vmem:[#allocation9 + $0x20] sm:$0xf]
    %v245 = vld [vmem:[#allocation9 + $0x24] sm:$0xf]
    %v246 = vld [vmem:[#allocation9 + $0x28] sm:$0xf]
    %v247 = vld [vmem:[#allocation9 + $0x2c] sm:$0xf]
    %v248 = vld [vmem:[#allocation9 + $0x30] sm:$0xf]
    %v249 = vld [vmem:[#allocation9 + $0x34] sm:$0xf]
    %v250 = vld [vmem:[#allocation9 + $0x38] sm:$0xf]
    %v251 = vld [vmem:[#allocation9 + $0x3c] sm:$0xf]
    %v268 = vunpack.c.l.b16 %v236
    %v269 = vunpack.c.l.b16 %v237
    %v270 = vunpack.c.l.b16 %v238
    %v271 = vunpack.c.l.b16 %v239
    %v272 = vunpack.c.l.b16 %v240
    %v273 = vunpack.c.l.b16 %v241
    %v274 = vunpack.c.l.b16 %v242
    %v275 = vunpack.c.l.b16 %v243
    %v276 = vunpack.c.l.b16 %v244
    %v277 = vunpack.c.l.b16 %v245
    %v278 = vunpack.c.l.b16 %v246
    %v279 = vunpack.c.l.b16 %v247
    %v280 = vunpack.c.l.b16 %v248
    %v281 = vunpack.c.l.b16 %v249
    %v282 = vunpack.c.l.b16 %v250
    %v283 = vunpack.c.l.b16 %v251
    %v284 = vpack.c.b16 %v269, %v268
    %v285 = vpack.c.b16 %v271, %v270
    %v286 = vpack.c.b16 %v273, %v272
    %v287 = vpack.c.b16 %v275, %v274
    %v288 = vpack.c.b16 %v277, %v276
    %v289 = vpack.c.b16 %v279, %v278
    %v290 = vpack.c.b16 %v281, %v280
    %v291 = vpack.c.b16 %v283, %v282
    %300 = vmatprep.subr.bf16.mxu0 0
    %301 = vmatpush1.bf16.msra.mxu0 %v284
    %302 = vmatprep.subr.bf16.mxu0 0
    %303 = vmatpush1.bf16.msra.mxu0 %v285
    %304 = vmatprep.subr.bf16.mxu0 0
    %305 = vmatpush1.bf16.msra.mxu0 %v286
    %306 = vmatprep.subr.bf16.mxu0 0
    %307 = vmatpush1.bf16.msra.mxu0 %v287
    %308 = vmatprep.subr.bf16.mxu0 0
    %309 = vmatpush1.bf16.msra.mxu0 %v288
    %310 = vmatprep.subr.bf16.mxu0 0
    %311 = vmatpush1.bf16.msra.mxu0 %v289
    %312 = vmatprep.subr.bf16.mxu0 0
    %313 = vmatpush1.bf16.msra.mxu0 %v290
    %314 = vmatprep.subr.bf16.mxu0 0
    %315 = vmatpush1.bf16.msra.mxu0 %v291
    %316 = vmatprep.subr.bf16.mxu0 0
    %317 = vmatpush1.bf16.msra.mxu0 0
    %318 = vmatprep.subr.bf16.mxu0 0
    %319 = vmatpush1.bf16.msra.mxu0 0
    %320 = vmatprep.subr.bf16.mxu0 0
    %321 = vmatpush1.bf16.msra.mxu0 0
    %322 = vmatprep.subr.bf16.mxu0 0
    %323 = vmatpush1.bf16.msra.mxu0 0
    %324 = vmatprep.subr.bf16.mxu0 0
    %325 = vmatpush1.bf16.msra.mxu0 0
    %326 = vmatprep.subr.bf16.mxu0 0
    %327 = vmatpush1.bf16.msra.mxu0 0
    %328 = vmatprep.subr.bf16.mxu0 0
    %329 = vmatpush1.bf16.msra.mxu0 0
    %330 = vmatprep.subr.bf16.mxu0 0
    %331 = vmatpush1.bf16.msra.mxu0 0
    %332 = vmatprep.mubr.bf16.mxu0 0
    %333 = vmatmul.mubr.bf16.gmra.mrb[0].mxu0 %v235
    %v334 = vpop.f32.mrb[0].mxu0
    %v335 = vadd.f32 0.0, %v334
    %v336 = vpop.f32.mrb[0].mxu0
    %v337 = vpop.f32.mrb[0].mxu0
    %v338 = vpop.f32.mrb[0].mxu0
    %339 = vdwg.mxu0
    %v340 = vadd.f32 %v81, %v335
    %v341 = vtanh.pop %v340
    %v342 = vsub.f32 1.0, %v233
    %v343 = vmul.f32 %v342, %v78
    %v344 = vmul.f32 %v233, %v341
    %v345 = vadd.f32 %v343, %v344
    %346 = vst [vmem:[#allocation11] sm:$0xff] %v345
    %s347 = scalar_lea.vmem [#allocation6], 24
    %v348 = vld [vmem:[%s347] sm:$0xff]
    %v349 = vld [vmem:[%s347 + $0x8] sm:$0xff]
    %v350 = vld [vmem:[%s347 + $0x10] sm:$0xff]
    %v351 = vpack.c.bf16 %v345, %v345
    %v352 = vld [vmem:[#allocation8] sm:$0xff]
    %v353 = vld [vmem:[#allocation8 + $0x8] sm:$0xff]
    %v354 = vld [vmem:[#allocation8 + $0x10] sm:$0xff]
    %v355 = vld [vmem:[#allocation8 + $0x18] sm:$0xff]
    %v356 = vld [vmem:[#allocation8 + $0x20] sm:$0xff]
    %v357 = vld [vmem:[#allocation8 + $0x28] sm:$0xff]
    %v358 = vld [vmem:[#allocation8 + $0x30] sm:$0xff]
    %v359 = vld [vmem:[#allocation8 + $0x38] sm:$0xff]
    %v360 = vld [vmem:[#allocation8 + $0x40] sm:$0xff]
    %v361 = vld [vmem:[#allocation8 + $0x48] sm:$0xff]
    %v362 = vld [vmem:[#allocation8 + $0x50] sm:$0xff]
    %v363 = vld [vmem:[#allocation8 + $0x58] sm:$0xff]
    %v364 = vld [vmem:[#allocation8 + $0x60] sm:$0xff]
    %v365 = vld [vmem:[#allocation8 + $0x68] sm:$0xff]
    %v366 = vld [vmem:[#allocation8 + $0x70] sm:$0xff]
    %v367 = vld [vmem:[#allocation8 + $0x78] sm:$0xff]
    %v384 = vunpack.c.l.b16 %v352
    %v385 = vunpack.c.h.b16 %v352
    %v386 = vunpack.c.l.b16 %v353
    %v387 = vunpack.c.h.b16 %v353
    %v388 = vunpack.c.l.b16 %v354
    %v389 = vunpack.c.h.b16 %v354
    %v390 = vunpack.c.l.b16 %v355
    %v391 = vunpack.c.h.b16 %v355
    %v392 = vunpack.c.l.b16 %v356
    %v393 = vunpack.c.h.b16 %v356
    %v394 = vunpack.c.l.b16 %v357
    %v395 = vunpack.c.h.b16 %v357
    %v396 = vunpack.c.l.b16 %v358
    %v397 = vunpack.c.h.b16 %v358
    %v398 = vunpack.c.l.b16 %v359
    %v399 = vunpack.c.h.b16 %v359
    %v400 = vunpack.c.l.b16 %v360
    %v401 = vunpack.c.h.b16 %v360
    %v402 = vunpack.c.l.b16 %v361
    %v403 = vunpack.c.h.b16 %v361
    %v404 = vunpack.c.l.b16 %v362
    %v405 = vunpack.c.h.b16 %v362
    %v406 = vunpack.c.l.b16 %v363
    %v407 = vunpack.c.h.b16 %v363
    %v408 = vunpack.c.l.b16 %v364
    %v409 = vunpack.c.h.b16 %v364
    %v410 = vunpack.c.l.b16 %v365
    %v411 = vunpack.c.h.b16 %v365
    %v412 = vunpack.c.l.b16 %v366
    %v413 = vunpack.c.h.b16 %v366
    %v414 = vunpack.c.l.b16 %v367
    %v415 = vunpack.c.h.b16 %v367
    %v416 = vpack.c.b16 %v386, %v384
    %v417 = vpack.c.b16 %v387, %v385
    %v418 = vpack.c.b16 %v390, %v388
    %v419 = vpack.c.b16 %v391, %v389
    %v420 = vpack.c.b16 %v394, %v392
    %v421 = vpack.c.b16 %v395, %v393
    %v422 = vpack.c.b16 %v398, %v396
    %v423 = vpack.c.b16 %v399, %v397
    %v424 = vpack.c.b16 %v402, %v400
    %v425 = vpack.c.b16 %v403, %v401
    %v426 = vpack.c.b16 %v406, %v404
    %v427 = vpack.c.b16 %v407, %v405
    %v428 = vpack.c.b16 %v410, %v408
    %v429 = vpack.c.b16 %v411, %v409
    %v430 = vpack.c.b16 %v414, %v412
    %v431 = vpack.c.b16 %v415, %v413
    %448 = vmatprep.subr.bf16.mxu0 %v417
    %449 = vmatpush1.bf16.msra.mxu0 %v416
    %450 = vmatprep.subr.bf16.mxu0 %v419
    %451 = vmatpush1.bf16.msra.mxu0 %v418
    %452 = vmatprep.subr.bf16.mxu0 %v421
    %453 = vmatpush1.bf16.msra.mxu0 %v420
    %454 = vmatprep.subr.bf16.mxu0 %v423
    %455 = vmatpush1.bf16.msra.mxu0 %v422
    %456 = vmatprep.subr.bf16.mxu0 %v425
    %457 = vmatpush1.bf16.msra.mxu0 %v424
    %458 = vmatprep.subr.bf16.mxu0 %v427
    %459 = vmatpush1.bf16.msra.mxu0 %v426
    %460 = vmatprep.subr.bf16.mxu0 %v429
    %461 = vmatpush1.bf16.msra.mxu0 %v428
    %462 = vmatprep.subr.bf16.mxu0 %v431
    %463 = vmatpush1.bf16.msra.mxu0 %v430
    %464 = vmatprep.subr.bf16.mxu0 0
    %465 = vmatpush1.bf16.msra.mxu0 0
    %466 = vmatprep.subr.bf16.mxu0 0
    %467 = vmatpush1.bf16.msra.mxu0 0
    %468 = vmatprep.subr.bf16.mxu0 0
    %469 = vmatpush1.bf16.msra.mxu0 0
    %470 = vmatprep.subr.bf16.mxu0 0
    %471 = vmatpush1.bf16.msra.mxu0 0
    %472 = vmatprep.subr.bf16.mxu0 0
    %473 = vmatpush1.bf16.msra.mxu0 0
    %474 = vmatprep.subr.bf16.mxu0 0
    %475 = vmatpush1.bf16.msra.mxu0 0
    %476 = vmatprep.subr.bf16.mxu0 0
    %477 = vmatpush1.bf16.msra.mxu0 0
    %478 = vmatprep.subr.bf16.mxu0 0
    %479 = vmatpush1.bf16.msra.mxu0 0
    %480 = vmatprep.mubr.bf16.mxu0 0
    %481 = vmatmul.mubr.bf16.gmra.mrb[0].mxu0 %v351
    %v482 = vpop.f32.mrb[0].mxu0
    %v483 = vadd.f32 0.0, %v482
    %v484 = vpop.f32.mrb[0].mxu0
    %v485 = vadd.f32 0.0, %v484
    %v486 = vpop.f32.mrb[0].mxu0
    %v487 = vpop.f32.mrb[0].mxu0
    %488 = vdwg.mxu0
    %v489 = vadd.f32 %v348, %v483
    %v490 = vxor.u32 %v489, 2147483648
    %v491 = vmul.f32 %v490, 1.442695
    %v492 = vpow.pop %v491
    %v493 = vadd.f32 %v492, 1.0
    %v494 = vrcp.pop %v493
    %v495 = vmul.f32 1.0, %v494
    %v496 = vadd.f32 %v349, %v485
    %v497 = vxor.u32 %v496, 2147483648
    %v498 = vmul.f32 %v497, 1.442695
    %v499 = vpow.pop %v498
    %v500 = vadd.f32 %v499, 1.0
    %v501 = vrcp.pop %v500
    %v502 = vmul.f32 1.0, %v501
    %v503 = vmul.f32 %v495, %v345
    %v504 = vpack.c.bf16 %v503, %v503
    %v505 = vld [vmem:[#allocation9] sm:$0xf]
    %v506 = vld [vmem:[#allocation9 + $0x4] sm:$0xf]
    %v507 = vld [vmem:[#allocation9 + $0x8] sm:$0xf]
    %v508 = vld [vmem:[#allocation9 + $0xc] sm:$0xf]
    %v509 = vld [vmem:[#allocation9 + $0x10] sm:$0xf]
    %v510 = vld [vmem:[#allocation9 + $0x14] sm:$0xf]
    %v511 = vld [vmem:[#allocation9 + $0x18] sm:$0xf]
    %v512 = vld [vmem:[#allocation9 + $0x1c] sm:$0xf]
    %v513 = vld [vmem:[#allocation9 + $0x20] sm:$0xf]
    %v514 = vld [vmem:[#allocation9 + $0x24] sm:$0xf]
    %v515 = vld [vmem:[#allocation9 + $0x28] sm:$0xf]
    %v516 = vld [vmem:[#allocation9 + $0x2c] sm:$0xf]
    %v517 = vld [vmem:[#allocation9 + $0x30] sm:$0xf]
    %v518 = vld [vmem:[#allocation9 + $0x34] sm:$0xf]
    %v519 = vld [vmem:[#allocation9 + $0x38] sm:$0xf]
    %v520 = vld [vmem:[#allocation9 + $0x3c] sm:$0xf]
    %v537 = vunpack.c.l.b16 %v505
    %v538 = vunpack.c.l.b16 %v506
    %v539 = vunpack.c.l.b16 %v507
    %v540 = vunpack.c.l.b16 %v508
    %v541 = vunpack.c.l.b16 %v509
    %v542 = vunpack.c.l.b16 %v510
    %v543 = vunpack.c.l.b16 %v511
    %v544 = vunpack.c.l.b16 %v512
    %v545 = vunpack.c.l.b16 %v513
    %v546 = vunpack.c.l.b16 %v514
    %v547 = vunpack.c.l.b16 %v515
    %v548 = vunpack.c.l.b16 %v516
    %v549 = vunpack.c.l.b16 %v517
    %v550 = vunpack.c.l.b16 %v518
    %v551 = vunpack.c.l.b16 %v519
    %v552 = vunpack.c.l.b16 %v520
    %v553 = vpack.c.b16 %v538, %v537
    %v554 = vpack.c.b16 %v540, %v539
    %v555 = vpack.c.b16 %v542, %v541
    %v556 = vpack.c.b16 %v544, %v543
    %v557 = vpack.c.b16 %v546, %v545
    %v558 = vpack.c.b16 %v548, %v547
    %v559 = vpack.c.b16 %v550, %v549
    %v560 = vpack.c.b16 %v552, %v551
    %569 = vmatprep.subr.bf16.mxu0 0
    %570 = vmatpush1.bf16.msra.mxu0 %v553
    %571 = vmatprep.subr.bf16.mxu0 0
    %572 = vmatpush1.bf16.msra.mxu0 %v554
    %573 = vmatprep.subr.bf16.mxu0 0
    %574 = vmatpush1.bf16.msra.mxu0 %v555
    %575 = vmatprep.subr.bf16.mxu0 0
    %576 = vmatpush1.bf16.msra.mxu0 %v556
    %577 = vmatprep.subr.bf16.mxu0 0
    %578 = vmatpush1.bf16.msra.mxu0 %v557
    %579 = vmatprep.subr.bf16.mxu0 0
    %580 = vmatpush1.bf16.msra.mxu0 %v558
    %581 = vmatprep.subr.bf16.mxu0 0
    %582 = vmatpush1.bf16.msra.mxu0 %v559
    %583 = vmatprep.subr.bf16.mxu0 0
    %584 = vmatpush1.bf16.msra.mxu0 %v560
    %585 = vmatprep.subr.bf16.mxu0 0
    %586 = vmatpush1.bf16.msra.mxu0 0
    %587 = vmatprep.subr.bf16.mxu0 0
    %588 = vmatpush1.bf16.msra.mxu0 0
    %589 = vmatprep.subr.bf16.mxu0 0
    %590 = vmatpush1.bf16.msra.mxu0 0
    %591 = vmatprep.subr.bf16.mxu0 0
    %592 = vmatpush1.bf16.msra.mxu0 0
    %593 = vmatprep.subr.bf16.mxu0 0
    %594 = vmatpush1.bf16.msra.mxu0 0
    %595 = vmatprep.subr.bf16.mxu0 0
    %596 = vmatpush1.bf16.msra.mxu0 0
    %597 = vmatprep.subr.bf16.mxu0 0
    %598 = vmatpush1.bf16.msra.mxu0 0
    %599 = vmatprep.subr.bf16.mxu0 0
    %600 = vmatpush1.bf16.msra.mxu0 0
    %601 = vmatprep.mubr.bf16.mxu0 0
    %602 = vmatmul.mubr.bf16.gmra.mrb[0].mxu0 %v504
    %v603 = vpop.f32.mrb[0].mxu0
    %v604 = vadd.f32 0.0, %v603
    %v605 = vpop.f32.mrb[0].mxu0
    %v606 = vpop.f32.mrb[0].mxu0
    %v607 = vpop.f32.mrb[0].mxu0
    %608 = vdwg.mxu0
    %v609 = vadd.f32 %v350, %v604
    %v610 = vtanh.pop %v609
    %v611 = vsub.f32 1.0, %v502
    %v612 = vmul.f32 %v611, %v345
    %v613 = vmul.f32 %v502, %v610
    %v614 = vadd.f32 %v612, %v613
    %s615 = scalar_lea.vmem [#allocation11], 8
    %616 = vst [vmem:[%s615] sm:$0xff] %v614
    %s617 = scalar_lea.vmem [#allocation6], 48
    %v618 = vld [vmem:[%s617] sm:$0xff]
    %v619 = vld [vmem:[%s617 + $0x8] sm:$0xff]
    %v620 = vld [vmem:[%s617 + $0x10] sm:$0xff]
    %v621 = vpack.c.bf16 %v614, %v614
    %v622 = vld [vmem:[#allocation8] sm:$0xff]
    %v623 = vld [vmem:[#allocation8 + $0x8] sm:$0xff]
    %v624 = vld [vmem:[#allocation8 + $0x10] sm:$0xff]
    %v625 = vld [vmem:[#allocation8 + $0x18] sm:$0xff]
    %v626 = vld [vmem:[#allocation8 + $0x20] sm:$0xff]
    %v627 = vld [vmem:[#allocation8 + $0x28] sm:$0xff]
    %v628 = vld [vmem:[#allocation8 + $0x30] sm:$0xff]
    %v629 = vld [vmem:[#allocation8 + $0x38] sm:$0xff]
    %v630 = vld [vmem:[#allocation8 + $0x40] sm:$0xff]
    %v631 = vld [vmem:[#allocation8 + $0x48] sm:$0xff]
    %v632 = vld [vmem:[#allocation8 + $0x50] sm:$0xff]
    %v633 = vld [vmem:[#allocation8 + $0x58] sm:$0xff]
    %v634 = vld [vmem:[#allocation8 + $0x60] sm:$0xff]
    %v635 = vld [vmem:[#allocation8 + $0x68] sm:$0xff]
    %v636 = vld [vmem:[#allocation8 + $0x70] sm:$0xff]
    %v637 = vld [vmem:[#allocation8 + $0x78] sm:$0xff]
    %v654 = vunpack.c.l.b16 %v622
    %v655 = vunpack.c.h.b16 %v622
    %v656 = vunpack.c.l.b16 %v623
    %v657 = vunpack.c.h.b16 %v623
    %v658 = vunpack.c.l.b16 %v624
    %v659 = vunpack.c.h.b16 %v624
    %v660 = vunpack.c.l.b16 %v625
    %v661 = vunpack.c.h.b16 %v625
    %v662 = vunpack.c.l.b16 %v626
    %v663 = vunpack.c.h.b16 %v626
    %v664 = vunpack.c.l.b16 %v627
    %v665 = vunpack.c.h.b16 %v627
    %v666 = vunpack.c.l.b16 %v628
    %v667 = vunpack.c.h.b16 %v628
    %v668 = vunpack.c.l.b16 %v629
    %v669 = vunpack.c.h.b16 %v629
    %v670 = vunpack.c.l.b16 %v630
    %v671 = vunpack.c.h.b16 %v630
    %v672 = vunpack.c.l.b16 %v631
    %v673 = vunpack.c.h.b16 %v631
    %v674 = vunpack.c.l.b16 %v632
    %v675 = vunpack.c.h.b16 %v632
    %v676 = vunpack.c.l.b16 %v633
    %v677 = vunpack.c.h.b16 %v633
    %v678 = vunpack.c.l.b16 %v634
    %v679 = vunpack.c.h.b16 %v634
    %v680 = vunpack.c.l.b16 %v635
    %v681 = vunpack.c.h.b16 %v635
    %v682 = vunpack.c.l.b16 %v636
    %v683 = vunpack.c.h.b16 %v636
    %v684 = vunpack.c.l.b16 %v637
    %v685 = vunpack.c.h.b16 %v637
    %v686 = vpack.c.b16 %v656, %v654
    %v687 = vpack.c.b16 %v657, %v655
    %v688 = vpack.c.b16 %v660, %v658
    %v689 = vpack.c.b16 %v661, %v659
    %v690 = vpack.c.b16 %v664, %v662
    %v691 = vpack.c.b16 %v665, %v663
    %v692 = vpack.c.b16 %v668, %v666
    %v693 = vpack.c.b16 %v669, %v667
    %v694 = vpack.c.b16 %v672, %v670
    %v695 = vpack.c.b16 %v673, %v671
    %v696 = vpack.c.b16 %v676, %v674
    %v697 = vpack.c.b16 %v677, %v675
    %v698 = vpack.c.b16 %v680, %v678
    %v699 = vpack.c.b16 %v681, %v679
    %v700 = vpack.c.b16 %v684, %v682
    %v701 = vpack.c.b16 %v685, %v683
    %718 = vmatprep.subr.bf16.mxu0 %v687
    %719 = vmatpush1.bf16.msra.mxu0 %v686
    %720 = vmatprep.subr.bf16.mxu0 %v689
    %721 = vmatpush1.bf16.msra.mxu0 %v688
    %722 = vmatprep.subr.bf16.mxu0 %v691
    %723 = vmatpush1.bf16.msra.mxu0 %v690
    %724 = vmatprep.subr.bf16.mxu0 %v693
    %725 = vmatpush1.bf16.msra.mxu0 %v692
    %726 = vmatprep.subr.bf16.mxu0 %v695
    %727 = vmatpush1.bf16.msra.mxu0 %v694
    %728 = vmatprep.subr.bf16.mxu0 %v697
    %729 = vmatpush1.bf16.msra.mxu0 %v696
    %730 = vmatprep.subr.bf16.mxu0 %v699
    %731 = vmatpush1.bf16.msra.mxu0 %v698
    %732 = vmatprep.subr.bf16.mxu0 %v701
    %733 = vmatpush1.bf16.msra.mxu0 %v700
    %734 = vmatprep.subr.bf16.mxu0 0
    %735 = vmatpush1.bf16.msra.mxu0 0
    %736 = vmatprep.subr.bf16.mxu0 0
    %737 = vmatpush1.bf16.msra.mxu0 0
    %738 = vmatprep.subr.bf16.mxu0 0
    %739 = vmatpush1.bf16.msra.mxu0 0
    %740 = vmatprep.subr.bf16.mxu0 0
    %741 = vmatpush1.bf16.msra.mxu0 0
    %742 = vmatprep.subr.bf16.mxu0 0
    %743 = vmatpush1.bf16.msra.mxu0 0
    %744 = vmatprep.subr.bf16.mxu0 0
    %745 = vmatpush1.bf16.msra.mxu0 0
    %746 = vmatprep.subr.bf16.mxu0 0
    %747 = vmatpush1.bf16.msra.mxu0 0
    %748 = vmatprep.subr.bf16.mxu0 0
    %749 = vmatpush1.bf16.msra.mxu0 0
    %750 = vmatprep.mubr.bf16.mxu0 0
    %751 = vmatmul.mubr.bf16.gmra.mrb[0].mxu0 %v621
    %v752 = vpop.f32.mrb[0].mxu0
    %v753 = vadd.f32 0.0, %v752
    %v754 = vpop.f32.mrb[0].mxu0
    %v755 = vadd.f32 0.0, %v754
    %v756 = vpop.f32.mrb[0].mxu0
    %v757 = vpop.f32.mrb[0].mxu0
    %758 = vdwg.mxu0
    %v759 = vadd.f32 %v618, %v753
    %v760 = vxor.u32 %v759, 2147483648
    %v761 = vmul.f32 %v760, 1.442695
    %v762 = vpow.pop %v761
    %v763 = vadd.f32 %v762, 1.0
    %v764 = vrcp.pop %v763
    %v765 = vmul.f32 1.0, %v764
    %v766 = vadd.f32 %v619, %v755
    %v767 = vxor.u32 %v766, 2147483648
    %v768 = vmul.f32 %v767, 1.442695
    %v769 = vpow.pop %v768
    %v770 = vadd.f32 %v769, 1.0
    %v771 = vrcp.pop %v770
    %v772 = vmul.f32 1.0, %v771
    %v773 = vmul.f32 %v765, %v614
    %v774 = vpack.c.bf16 %v773, %v773
    %v775 = vld [vmem:[#allocation9] sm:$0xf]
    %v776 = vld [vmem:[#allocation9 + $0x4] sm:$0xf]
    %v777 = vld [vmem:[#allocation9 + $0x8] sm:$0xf]
    %v778 = vld [vmem:[#allocation9 + $0xc] sm:$0xf]
    %v779 = vld [vmem:[#allocation9 + $0x10] sm:$0xf]
    %v780 = vld [vmem:[#allocation9 + $0x14] sm:$0xf]
    %v781 = vld [vmem:[#allocation9 + $0x18] sm:$0xf]
    %v782 = vld [vmem:[#allocation9 + $0x1c] sm:$0xf]
    %v783 = vld [vmem:[#allocation9 + $0x20] sm:$0xf]
    %v784 = vld [vmem:[#allocation9 + $0x24] sm:$0xf]
    %v785 = vld [vmem:[#allocation9 + $0x28] sm:$0xf]
    %v786 = vld [vmem:[#allocation9 + $0x2c] sm:$0xf]
    %v787 = vld [vmem:[#allocation9 + $0x30] sm:$0xf]
    %v788 = vld [vmem:[#allocation9 + $0x34] sm:$0xf]
    %v789 = vld [vmem:[#allocation9 + $0x38] sm:$0xf]
    %v790 = vld [vmem:[#allocation9 + $0x3c] sm:$0xf]
    %v807 = vunpack.c.l.b16 %v775
    %v808 = vunpack.c.l.b16 %v776
    %v809 = vunpack.c.l.b16 %v777
    %v810 = vunpack.c.l.b16 %v778
    %v811 = vunpack.c.l.b16 %v779
    %v812 = vunpack.c.l.b16 %v780
    %v813 = vunpack.c.l.b16 %v781
    %v814 = vunpack.c.l.b16 %v782
    %v815 = vunpack.c.l.b16 %v783
    %v816 = vunpack.c.l.b16 %v784
    %v817 = vunpack.c.l.b16 %v785
    %v818 = vunpack.c.l.b16 %v786
    %v819 = vunpack.c.l.b16 %v787
    %v820 = vunpack.c.l.b16 %v788
    %v821 = vunpack.c.l.b16 %v789
    %v822 = vunpack.c.l.b16 %v790
    %v823 = vpack.c.b16 %v808, %v807
    %v824 = vpack.c.b16 %v810, %v809
    %v825 = vpack.c.b16 %v812, %v811
    %v826 = vpack.c.b16 %v814, %v813
    %v827 = vpack.c.b16 %v816, %v815
    %v828 = vpack.c.b16 %v818, %v817
    %v829 = vpack.c.b16 %v820, %v819
    %v830 = vpack.c.b16 %v822, %v821
    %839 = vmatprep.subr.bf16.mxu0 0
    %840 = vmatpush1.bf16.msra.mxu0 %v823
    %841 = vmatprep.subr.bf16.mxu0 0
    %842 = vmatpush1.bf16.msra.mxu0 %v824
    %843 = vmatprep.subr.bf16.mxu0 0
    %844 = vmatpush1.bf16.msra.mxu0 %v825
    %845 = vmatprep.subr.bf16.mxu0 0
    %846 = vmatpush1.bf16.msra.mxu0 %v826
    %847 = vmatprep.subr.bf16.mxu0 0
    %848 = vmatpush1.bf16.msra.mxu0 %v827
    %849 = vmatprep.subr.bf16.mxu0 0
    %850 = vmatpush1.bf16.msra.mxu0 %v828
    %851 = vmatprep.subr.bf16.mxu0 0
    %852 = vmatpush1.bf16.msra.mxu0 %v829
    %853 = vmatprep.subr.bf16.mxu0 0
    %854 = vmatpush1.bf16.msra.mxu0 %v830
    %855 = vmatprep.subr.bf16.mxu0 0
    %856 = vmatpush1.bf16.msra.mxu0 0
    %857 = vmatprep.subr.bf16.mxu0 0
    %858 = vmatpush1.bf16.msra.mxu0 0
    %859 = vmatprep.subr.bf16.mxu0 0
    %860 = vmatpush1.bf16.msra.mxu0 0
    %861 = vmatprep.subr.bf16.mxu0 0
    %862 = vmatpush1.bf16.msra.mxu0 0
    %863 = vmatprep.subr.bf16.mxu0 0
    %864 = vmatpush1.bf16.msra.mxu0 0
    %865 = vmatprep.subr.bf16.mxu0 0
    %866 = vmatpush1.bf16.msra.mxu0 0
    %867 = vmatprep.subr.bf16.mxu0 0
    %868 = vmatpush1.bf16.msra.mxu0 0
    %869 = vmatprep.subr.bf16.mxu0 0
    %870 = vmatpush1.bf16.msra.mxu0 0
    %871 = vmatprep.mubr.bf16.mxu0 0
    %872 = vmatmul.mubr.bf16.gmra.mrb[0].mxu0 %v774
    %v873 = vpop.f32.mrb[0].mxu0
    %v874 = vadd.f32 0.0, %v873
    %v875 = vpop.f32.mrb[0].mxu0
    %v876 = vpop.f32.mrb[0].mxu0
    %v877 = vpop.f32.mrb[0].mxu0
    %878 = vdwg.mxu0
    %v879 = vadd.f32 %v620, %v874
    %v880 = vtanh.pop %v879
    %v881 = vsub.f32 1.0, %v772
    %v882 = vmul.f32 %v881, %v614
    %v883 = vmul.f32 %v772, %v880
    %v884 = vadd.f32 %v882, %v883
    %s885 = scalar_lea.vmem [#allocation11], 16
    %886 = vst [vmem:[%s885] sm:$0xff] %v884
    %s887 = scalar_lea.vmem [#allocation6], 72
    %v888 = vld [vmem:[%s887] sm:$0xff]
    %v889 = vld [vmem:[%s887 + $0x8] sm:$0xff]
    %v890 = vld [vmem:[%s887 + $0x10] sm:$0xff]
    %v891 = vpack.c.bf16 %v884, %v884
    %v892 = vld [vmem:[#allocation8] sm:$0xff]
    %v893 = vld [vmem:[#allocation8 + $0x8] sm:$0xff]
    %v894 = vld [vmem:[#allocation8 + $0x10] sm:$0xff]
    %v895 = vld [vmem:[#allocation8 + $0x18] sm:$0xff]
    %v896 = vld [vmem:[#allocation8 + $0x20] sm:$0xff]
    %v897 = vld [vmem:[#allocation8 + $0x28] sm:$0xff]
    %v898 = vld [vmem:[#allocation8 + $0x30] sm:$0xff]
    %v899 = vld [vmem:[#allocation8 + $0x38] sm:$0xff]
    %v900 = vld [vmem:[#allocation8 + $0x40] sm:$0xff]
    %v901 = vld [vmem:[#allocation8 + $0x48] sm:$0xff]
    %v902 = vld [vmem:[#allocation8 + $0x50] sm:$0xff]
    %v903 = vld [vmem:[#allocation8 + $0x58] sm:$0xff]
    %v904 = vld [vmem:[#allocation8 + $0x60] sm:$0xff]
    %v905 = vld [vmem:[#allocation8 + $0x68] sm:$0xff]
    %v906 = vld [vmem:[#allocation8 + $0x70] sm:$0xff]
    %v907 = vld [vmem:[#allocation8 + $0x78] sm:$0xff]
    %v924 = vunpack.c.l.b16 %v892
    %v925 = vunpack.c.h.b16 %v892
    %v926 = vunpack.c.l.b16 %v893
    %v927 = vunpack.c.h.b16 %v893
    %v928 = vunpack.c.l.b16 %v894
    %v929 = vunpack.c.h.b16 %v894
    %v930 = vunpack.c.l.b16 %v895
    %v931 = vunpack.c.h.b16 %v895
    %v932 = vunpack.c.l.b16 %v896
    %v933 = vunpack.c.h.b16 %v896
    %v934 = vunpack.c.l.b16 %v897
    %v935 = vunpack.c.h.b16 %v897
    %v936 = vunpack.c.l.b16 %v898
    %v937 = vunpack.c.h.b16 %v898
    %v938 = vunpack.c.l.b16 %v899
    %v939 = vunpack.c.h.b16 %v899
    %v940 = vunpack.c.l.b16 %v900
    %v941 = vunpack.c.h.b16 %v900
    %v942 = vunpack.c.l.b16 %v901
    %v943 = vunpack.c.h.b16 %v901
    %v944 = vunpack.c.l.b16 %v902
    %v945 = vunpack.c.h.b16 %v902
    %v946 = vunpack.c.l.b16 %v903
    %v947 = vunpack.c.h.b16 %v903
    %v948 = vunpack.c.l.b16 %v904
    %v949 = vunpack.c.h.b16 %v904
    %v950 = vunpack.c.l.b16 %v905
    %v951 = vunpack.c.h.b16 %v905
    %v952 = vunpack.c.l.b16 %v906
    %v953 = vunpack.c.h.b16 %v906
    %v954 = vunpack.c.l.b16 %v907
    %v955 = vunpack.c.h.b16 %v907
    %v956 = vpack.c.b16 %v926, %v924
    %v957 = vpack.c.b16 %v927, %v925
    %v958 = vpack.c.b16 %v930, %v928
    %v959 = vpack.c.b16 %v931, %v929
    %v960 = vpack.c.b16 %v934, %v932
    %v961 = vpack.c.b16 %v935, %v933
    %v962 = vpack.c.b16 %v938, %v936
    %v963 = vpack.c.b16 %v939, %v937
    %v964 = vpack.c.b16 %v942, %v940
    %v965 = vpack.c.b16 %v943, %v941
    %v966 = vpack.c.b16 %v946, %v944
    %v967 = vpack.c.b16 %v947, %v945
    %v968 = vpack.c.b16 %v950, %v948
    %v969 = vpack.c.b16 %v951, %v949
    %v970 = vpack.c.b16 %v954, %v952
    %v971 = vpack.c.b16 %v955, %v953
    %988 = vmatprep.subr.bf16.mxu0 %v957
    %989 = vmatpush1.bf16.msra.mxu0 %v956
    %990 = vmatprep.subr.bf16.mxu0 %v959
    %991 = vmatpush1.bf16.msra.mxu0 %v958
    %992 = vmatprep.subr.bf16.mxu0 %v961
    %993 = vmatpush1.bf16.msra.mxu0 %v960
    %994 = vmatprep.subr.bf16.mxu0 %v963
    %995 = vmatpush1.bf16.msra.mxu0 %v962
    %996 = vmatprep.subr.bf16.mxu0 %v965
    %997 = vmatpush1.bf16.msra.mxu0 %v964
    %998 = vmatprep.subr.bf16.mxu0 %v967
    %999 = vmatpush1.bf16.msra.mxu0 %v966
    %1000 = vmatprep.subr.bf16.mxu0 %v969
    %1001 = vmatpush1.bf16.msra.mxu0 %v968
    %1002 = vmatprep.subr.bf16.mxu0 %v971
    %1003 = vmatpush1.bf16.msra.mxu0 %v970
    %1004 = vmatprep.subr.bf16.mxu0 0
    %1005 = vmatpush1.bf16.msra.mxu0 0
    %1006 = vmatprep.subr.bf16.mxu0 0
    %1007 = vmatpush1.bf16.msra.mxu0 0
    %1008 = vmatprep.subr.bf16.mxu0 0
    %1009 = vmatpush1.bf16.msra.mxu0 0
    %1010 = vmatprep.subr.bf16.mxu0 0
    %1011 = vmatpush1.bf16.msra.mxu0 0
    %1012 = vmatprep.subr.bf16.mxu0 0
    %1013 = vmatpush1.bf16.msra.mxu0 0
    %1014 = vmatprep.subr.bf16.mxu0 0
    %1015 = vmatpush1.bf16.msra.mxu0 0
    %1016 = vmatprep.subr.bf16.mxu0 0
    %1017 = vmatpush1.bf16.msra.mxu0 0
    %1018 = vmatprep.subr.bf16.mxu0 0
    %1019 = vmatpush1.bf16.msra.mxu0 0
    %1020 = vmatprep.mubr.bf16.mxu0 0
    %1021 = vmatmul.mubr.bf16.gmra.mrb[0].mxu0 %v891
    %v1022 = vpop.f32.mrb[0].mxu0
    %v1023 = vadd.f32 0.0, %v1022
    %v1024 = vpop.f32.mrb[0].mxu0
    %v1025 = vadd.f32 0.0, %v1024
    %v1026 = vpop.f32.mrb[0].mxu0
    %v1027 = vpop.f32.mrb[0].mxu0
    %1028 = vdwg.mxu0
    %v1029 = vadd.f32 %v888, %v1023
    %v1030 = vxor.u32 %v1029, 2147483648
    %v1031 = vmul.f32 %v1030, 1.442695
    %v1032 = vpow.pop %v1031
    %v1033 = vadd.f32 %v1032, 1.0
    %v1034 = vrcp.pop %v1033
    %v1035 = vmul.f32 1.0, %v1034
    %v1036 = vadd.f32 %v889, %v1025
    %v1037 = vxor.u32 %v1036, 2147483648
    %v1038 = vmul.f32 %v1037, 1.442695
    %v1039 = vpow.pop %v1038
    %v1040 = vadd.f32 %v1039, 1.0
    %v1041 = vrcp.pop %v1040
    %v1042 = vmul.f32 1.0, %v1041
    %v1043 = vmul.f32 %v1035, %v884
    %v1044 = vpack.c.bf16 %v1043, %v1043
    %v1045 = vld [vmem:[#allocation9] sm:$0xf]
    %v1046 = vld [vmem:[#allocation9 + $0x4] sm:$0xf]
    %v1047 = vld [vmem:[#allocation9 + $0x8] sm:$0xf]
    %v1048 = vld [vmem:[#allocation9 + $0xc] sm:$0xf]
    %v1049 = vld [vmem:[#allocation9 + $0x10] sm:$0xf]
    %v1050 = vld [vmem:[#allocation9 + $0x14] sm:$0xf]
    %v1051 = vld [vmem:[#allocation9 + $0x18] sm:$0xf]
    %v1052 = vld [vmem:[#allocation9 + $0x1c] sm:$0xf]
    %v1053 = vld [vmem:[#allocation9 + $0x20] sm:$0xf]
    %v1054 = vld [vmem:[#allocation9 + $0x24] sm:$0xf]
    %v1055 = vld [vmem:[#allocation9 + $0x28] sm:$0xf]
    %v1056 = vld [vmem:[#allocation9 + $0x2c] sm:$0xf]
    %v1057 = vld [vmem:[#allocation9 + $0x30] sm:$0xf]
    %v1058 = vld [vmem:[#allocation9 + $0x34] sm:$0xf]
    %v1059 = vld [vmem:[#allocation9 + $0x38] sm:$0xf]
    %v1060 = vld [vmem:[#allocation9 + $0x3c] sm:$0xf]
    %v1077 = vunpack.c.l.b16 %v1045
    %v1078 = vunpack.c.l.b16 %v1046
    %v1079 = vunpack.c.l.b16 %v1047
    %v1080 = vunpack.c.l.b16 %v1048
    %v1081 = vunpack.c.l.b16 %v1049
    %v1082 = vunpack.c.l.b16 %v1050
    %v1083 = vunpack.c.l.b16 %v1051
    %v1084 = vunpack.c.l.b16 %v1052
    %v1085 = vunpack.c.l.b16 %v1053
    %v1086 = vunpack.c.l.b16 %v1054
    %v1087 = vunpack.c.l.b16 %v1055
    %v1088 = vunpack.c.l.b16 %v1056
    %v1089 = vunpack.c.l.b16 %v1057
    %v1090 = vunpack.c.l.b16 %v1058
    %v1091 = vunpack.c.l.b16 %v1059
    %v1092 = vunpack.c.l.b16 %v1060
    %v1093 = vpack.c.b16 %v1078, %v1077
    %v1094 = vpack.c.b16 %v1080, %v1079
    %v1095 = vpack.c.b16 %v1082, %v1081
    %v1096 = vpack.c.b16 %v1084, %v1083
    %v1097 = vpack.c.b16 %v1086, %v1085
    %v1098 = vpack.c.b16 %v1088, %v1087
    %v1099 = vpack.c.b16 %v1090, %v1089
    %v1100 = vpack.c.b16 %v1092, %v1091
    %1109 = vmatprep.subr.bf16.mxu0 0
    %1110 = vmatpush1.bf16.msra.mxu0 %v1093
    %1111 = vmatprep.subr.bf16.mxu0 0
    %1112 = vmatpush1.bf16.msra.mxu0 %v1094
    %1113 = vmatprep.subr.bf16.mxu0 0
    %1114 = vmatpush1.bf16.msra.mxu0 %v1095
    %1115 = vmatprep.subr.bf16.mxu0 0
    %1116 = vmatpush1.bf16.msra.mxu0 %v1096
    %1117 = vmatprep.subr.bf16.mxu0 0
    %1118 = vmatpush1.bf16.msra.mxu0 %v1097
    %1119 = vmatprep.subr.bf16.mxu0 0
    %1120 = vmatpush1.bf16.msra.mxu0 %v1098
    %1121 = vmatprep.subr.bf16.mxu0 0
    %1122 = vmatpush1.bf16.msra.mxu0 %v1099
    %1123 = vmatprep.subr.bf16.mxu0 0
    %1124 = vmatpush1.bf16.msra.mxu0 %v1100
    %1125 = vmatprep.subr.bf16.mxu0 0
    %1126 = vmatpush1.bf16.msra.mxu0 0
    %1127 = vmatprep.subr.bf16.mxu0 0
    %1128 = vmatpush1.bf16.msra.mxu0 0
    %1129 = vmatprep.subr.bf16.mxu0 0
    %1130 = vmatpush1.bf16.msra.mxu0 0
    %1131 = vmatprep.subr.bf16.mxu0 0
    %1132 = vmatpush1.bf16.msra.mxu0 0
    %1133 = vmatprep.subr.bf16.mxu0 0
    %1134 = vmatpush1.bf16.msra.mxu0 0
    %1135 = vmatprep.subr.bf16.mxu0 0
    %1136 = vmatpush1.bf16.msra.mxu0 0
    %1137 = vmatprep.subr.bf16.mxu0 0
    %1138 = vmatpush1.bf16.msra.mxu0 0
    %1139 = vmatprep.subr.bf16.mxu0 0
    %1140 = vmatpush1.bf16.msra.mxu0 0
    %1141 = vmatprep.mubr.bf16.mxu0 0
    %1142 = vmatmul.mubr.bf16.gmra.mrb[0].mxu0 %v1044
    %v1143 = vpop.f32.mrb[0].mxu0
    %v1144 = vadd.f32 0.0, %v1143
    %v1145 = vpop.f32.mrb[0].mxu0
    %v1146 = vpop.f32.mrb[0].mxu0
    %v1147 = vpop.f32.mrb[0].mxu0
    %1148 = vdwg.mxu0
    %v1149 = vadd.f32 %v890, %v1144
    %v1150 = vtanh.pop %v1149
    %v1151 = vsub.f32 1.0, %v1042
    %v1152 = vmul.f32 %v1151, %v884
    %v1153 = vmul.f32 %v1042, %v1150
    %v1154 = vadd.f32 %v1152, %v1153
    %s1155 = scalar_lea.vmem [#allocation11], 24
    %1156 = vst [vmem:[%s1155] sm:$0xff] %v1154
    %s1157 = scalar_lea.vmem [#allocation6], 96
    %v1158 = vld [vmem:[%s1157] sm:$0xff]
    %v1159 = vld [vmem:[%s1157 + $0x8] sm:$0xff]
    %v1160 = vld [vmem:[%s1157 + $0x10] sm:$0xff]
    %v1161 = vpack.c.bf16 %v1154, %v1154
    %v1162 = vld [vmem:[#allocation8] sm:$0xff]
    %v1163 = vld [vmem:[#allocation8 + $0x8] sm:$0xff]
    %v1164 = vld [vmem:[#allocation8 + $0x10] sm:$0xff]
    %v1165 = vld [vmem:[#allocation8 + $0x18] sm:$0xff]
    %v1166 = vld [vmem:[#allocation8 + $0x20] sm:$0xff]
    %v1167 = vld [vmem:[#allocation8 + $0x28] sm:$0xff]
    %v1168 = vld [vmem:[#allocation8 + $0x30] sm:$0xff]
    %v1169 = vld [vmem:[#allocation8 + $0x38] sm:$0xff]
    %v1170 = vld [vmem:[#allocation8 + $0x40] sm:$0xff]
    %v1171 = vld [vmem:[#allocation8 + $0x48] sm:$0xff]
    %v1172 = vld [vmem:[#allocation8 + $0x50] sm:$0xff]
    %v1173 = vld [vmem:[#allocation8 + $0x58] sm:$0xff]
    %v1174 = vld [vmem:[#allocation8 + $0x60] sm:$0xff]
    %v1175 = vld [vmem:[#allocation8 + $0x68] sm:$0xff]
    %v1176 = vld [vmem:[#allocation8 + $0x70] sm:$0xff]
    %v1177 = vld [vmem:[#allocation8 + $0x78] sm:$0xff]
    %v1194 = vunpack.c.l.b16 %v1162
    %v1195 = vunpack.c.h.b16 %v1162
    %v1196 = vunpack.c.l.b16 %v1163
    %v1197 = vunpack.c.h.b16 %v1163
    %v1198 = vunpack.c.l.b16 %v1164
    %v1199 = vunpack.c.h.b16 %v1164
    %v1200 = vunpack.c.l.b16 %v1165
    %v1201 = vunpack.c.h.b16 %v1165
    %v1202 = vunpack.c.l.b16 %v1166
    %v1203 = vunpack.c.h.b16 %v1166
    %v1204 = vunpack.c.l.b16 %v1167
    %v1205 = vunpack.c.h.b16 %v1167
    %v1206 = vunpack.c.l.b16 %v1168
    %v1207 = vunpack.c.h.b16 %v1168
    %v1208 = vunpack.c.l.b16 %v1169
    %v1209 = vunpack.c.h.b16 %v1169
    %v1210 = vunpack.c.l.b16 %v1170
    %v1211 = vunpack.c.h.b16 %v1170
    %v1212 = vunpack.c.l.b16 %v1171
    %v1213 = vunpack.c.h.b16 %v1171
    %v1214 = vunpack.c.l.b16 %v1172
    %v1215 = vunpack.c.h.b16 %v1172
    %v1216 = vunpack.c.l.b16 %v1173
    %v1217 = vunpack.c.h.b16 %v1173
    %v1218 = vunpack.c.l.b16 %v1174
    %v1219 = vunpack.c.h.b16 %v1174
    %v1220 = vunpack.c.l.b16 %v1175
    %v1221 = vunpack.c.h.b16 %v1175
    %v1222 = vunpack.c.l.b16 %v1176
    %v1223 = vunpack.c.h.b16 %v1176
    %v1224 = vunpack.c.l.b16 %v1177
    %v1225 = vunpack.c.h.b16 %v1177
    %v1226 = vpack.c.b16 %v1196, %v1194
    %v1227 = vpack.c.b16 %v1197, %v1195
    %v1228 = vpack.c.b16 %v1200, %v1198
    %v1229 = vpack.c.b16 %v1201, %v1199
    %v1230 = vpack.c.b16 %v1204, %v1202
    %v1231 = vpack.c.b16 %v1205, %v1203
    %v1232 = vpack.c.b16 %v1208, %v1206
    %v1233 = vpack.c.b16 %v1209, %v1207
    %v1234 = vpack.c.b16 %v1212, %v1210
    %v1235 = vpack.c.b16 %v1213, %v1211
    %v1236 = vpack.c.b16 %v1216, %v1214
    %v1237 = vpack.c.b16 %v1217, %v1215
    %v1238 = vpack.c.b16 %v1220, %v1218
    %v1239 = vpack.c.b16 %v1221, %v1219
    %v1240 = vpack.c.b16 %v1224, %v1222
    %v1241 = vpack.c.b16 %v1225, %v1223
    %1258 = vmatprep.subr.bf16.mxu0 %v1227
    %1259 = vmatpush1.bf16.msra.mxu0 %v1226
    %1260 = vmatprep.subr.bf16.mxu0 %v1229
    %1261 = vmatpush1.bf16.msra.mxu0 %v1228
    %1262 = vmatprep.subr.bf16.mxu0 %v1231
    %1263 = vmatpush1.bf16.msra.mxu0 %v1230
    %1264 = vmatprep.subr.bf16.mxu0 %v1233
    %1265 = vmatpush1.bf16.msra.mxu0 %v1232
    %1266 = vmatprep.subr.bf16.mxu0 %v1235
    %1267 = vmatpush1.bf16.msra.mxu0 %v1234
    %1268 = vmatprep.subr.bf16.mxu0 %v1237
    %1269 = vmatpush1.bf16.msra.mxu0 %v1236
    %1270 = vmatprep.subr.bf16.mxu0 %v1239
    %1271 = vmatpush1.bf16.msra.mxu0 %v1238
    %1272 = vmatprep.subr.bf16.mxu0 %v1241
    %1273 = vmatpush1.bf16.msra.mxu0 %v1240
    %1274 = vmatprep.subr.bf16.mxu0 0
    %1275 = vmatpush1.bf16.msra.mxu0 0
    %1276 = vmatprep.subr.bf16.mxu0 0
    %1277 = vmatpush1.bf16.msra.mxu0 0
    %1278 = vmatprep.subr.bf16.mxu0 0
    %1279 = vmatpush1.bf16.msra.mxu0 0
    %1280 = vmatprep.subr.bf16.mxu0 0
    %1281 = vmatpush1.bf16.msra.mxu0 0
    %1282 = vmatprep.subr.bf16.mxu0 0
    %1283 = vmatpush1.bf16.msra.mxu0 0
    %1284 = vmatprep.subr.bf16.mxu0 0
    %1285 = vmatpush1.bf16.msra.mxu0 0
    %1286 = vmatprep.subr.bf16.mxu0 0
    %1287 = vmatpush1.bf16.msra.mxu0 0
    %1288 = vmatprep.subr.bf16.mxu0 0
    %1289 = vmatpush1.bf16.msra.mxu0 0
    %1290 = vmatprep.mubr.bf16.mxu0 0
    %1291 = vmatmul.mubr.bf16.gmra.mrb[0].mxu0 %v1161
    %v1292 = vpop.f32.mrb[0].mxu0
    %v1293 = vadd.f32 0.0, %v1292
    %v1294 = vpop.f32.mrb[0].mxu0
    %v1295 = vadd.f32 0.0, %v1294
    %v1296 = vpop.f32.mrb[0].mxu0
    %v1297 = vpop.f32.mrb[0].mxu0
    %1298 = vdwg.mxu0
    %v1299 = vadd.f32 %v1158, %v1293
    %v1300 = vxor.u32 %v1299, 2147483648
    %v1301 = vmul.f32 %v1300, 1.442695
    %v1302 = vpow.pop %v1301
    %v1303 = vadd.f32 %v1302, 1.0
    %v1304 = vrcp.pop %v1303
    %v1305 = vmul.f32 1.0, %v1304
    %v1306 = vadd.f32 %v1159, %v1295
    %v1307 = vxor.u32 %v1306, 2147483648
    %v1308 = vmul.f32 %v1307, 1.442695
    %v1309 = vpow.pop %v1308
    %v1310 = vadd.f32 %v1309, 1.0
    %v1311 = vrcp.pop %v1310
    %v1312 = vmul.f32 1.0, %v1311
    %v1313 = vmul.f32 %v1305, %v1154
    %v1314 = vpack.c.bf16 %v1313, %v1313
    %v1315 = vld [vmem:[#allocation9] sm:$0xf]
    %v1316 = vld [vmem:[#allocation9 + $0x4] sm:$0xf]
    %v1317 = vld [vmem:[#allocation9 + $0x8] sm:$0xf]
    %v1318 = vld [vmem:[#allocation9 + $0xc] sm:$0xf]
    %v1319 = vld [vmem:[#allocation9 + $0x10] sm:$0xf]
    %v1320 = vld [vmem:[#allocation9 + $0x14] sm:$0xf]
    %v1321 = vld [vmem:[#allocation9 + $0x18] sm:$0xf]
    %v1322 = vld [vmem:[#allocation9 + $0x1c] sm:$0xf]
    %v1323 = vld [vmem:[#allocation9 + $0x20] sm:$0xf]
    %v1324 = vld [vmem:[#allocation9 + $0x24] sm:$0xf]
    %v1325 = vld [vmem:[#allocation9 + $0x28] sm:$0xf]
    %v1326 = vld [vmem:[#allocation9 + $0x2c] sm:$0xf]
    %v1327 = vld [vmem:[#allocation9 + $0x30] sm:$0xf]
    %v1328 = vld [vmem:[#allocation9 + $0x34] sm:$0xf]
    %v1329 = vld [vmem:[#allocation9 + $0x38] sm:$0xf]
    %v1330 = vld [vmem:[#allocation9 + $0x3c] sm:$0xf]
    %v1347 = vunpack.c.l.b16 %v1315
    %v1348 = vunpack.c.l.b16 %v1316
    %v1349 = vunpack.c.l.b16 %v1317
    %v1350 = vunpack.c.l.b16 %v1318
    %v1351 = vunpack.c.l.b16 %v1319
    %v1352 = vunpack.c.l.b16 %v1320
    %v1353 = vunpack.c.l.b16 %v1321
    %v1354 = vunpack.c.l.b16 %v1322
    %v1355 = vunpack.c.l.b16 %v1323
    %v1356 = vunpack.c.l.b16 %v1324
    %v1357 = vunpack.c.l.b16 %v1325
    %v1358 = vunpack.c.l.b16 %v1326
    %v1359 = vunpack.c.l.b16 %v1327
    %v1360 = vunpack.c.l.b16 %v1328
    %v1361 = vunpack.c.l.b16 %v1329
    %v1362 = vunpack.c.l.b16 %v1330
    %v1363 = vpack.c.b16 %v1348, %v1347
    %v1364 = vpack.c.b16 %v1350, %v1349
    %v1365 = vpack.c.b16 %v1352, %v1351
    %v1366 = vpack.c.b16 %v1354, %v1353
    %v1367 = vpack.c.b16 %v1356, %v1355
    %v1368 = vpack.c.b16 %v1358, %v1357
    %v1369 = vpack.c.b16 %v1360, %v1359
    %v1370 = vpack.c.b16 %v1362, %v1361
    %1379 = vmatprep.subr.bf16.mxu0 0
    %1380 = vmatpush1.bf16.msra.mxu0 %v1363
    %1381 = vmatprep.subr.bf16.mxu0 0
    %1382 = vmatpush1.bf16.msra.mxu0 %v1364
    %1383 = vmatprep.subr.bf16.mxu0 0
    %1384 = vmatpush1.bf16.msra.mxu0 %v1365
    %1385 = vmatprep.subr.bf16.mxu0 0
    %1386 = vmatpush1.bf16.msra.mxu0 %v1366
    %1387 = vmatprep.subr.bf16.mxu0 0
    %1388 = vmatpush1.bf16.msra.mxu0 %v1367
    %1389 = vmatprep.subr.bf16.mxu0 0
    %1390 = vmatpush1.bf16.msra.mxu0 %v1368
    %1391 = vmatprep.subr.bf16.mxu0 0
    %1392 = vmatpush1.bf16.msra.mxu0 %v1369
    %1393 = vmatprep.subr.bf16.mxu0 0
    %1394 = vmatpush1.bf16.msra.mxu0 %v1370
    %1395 = vmatprep.subr.bf16.mxu0 0
    %1396 = vmatpush1.bf16.msra.mxu0 0
    %1397 = vmatprep.subr.bf16.mxu0 0
    %1398 = vmatpush1.bf16.msra.mxu0 0
    %1399 = vmatprep.subr.bf16.mxu0 0
    %1400 = vmatpush1.bf16.msra.mxu0 0
    %1401 = vmatprep.subr.bf16.mxu0 0
    %1402 = vmatpush1.bf16.msra.mxu0 0
    %1403 = vmatprep.subr.bf16.mxu0 0
    %1404 = vmatpush1.bf16.msra.mxu0 0
    %1405 = vmatprep.subr.bf16.mxu0 0
    %1406 = vmatpush1.bf16.msra.mxu0 0
    %1407 = vmatprep.subr.bf16.mxu0 0
    %1408 = vmatpush1.bf16.msra.mxu0 0
    %1409 = vmatprep.subr.bf16.mxu0 0
    %1410 = vmatpush1.bf16.msra.mxu0 0
    %1411 = vmatprep.mubr.bf16.mxu0 0
    %1412 = vmatmul.mubr.bf16.gmra.mrb[0].mxu0 %v1314
    %v1413 = vpop.f32.mrb[0].mxu0
    %v1414 = vadd.f32 0.0, %v1413
    %v1415 = vpop.f32.mrb[0].mxu0
    %v1416 = vpop.f32.mrb[0].mxu0
    %v1417 = vpop.f32.mrb[0].mxu0
    %1418 = vdwg.mxu0
    %v1419 = vadd.f32 %v1160, %v1414
    %v1420 = vtanh.pop %v1419
    %v1421 = vsub.f32 1.0, %v1312
    %v1422 = vmul.f32 %v1421, %v1154
    %v1423 = vmul.f32 %v1312, %v1420
    %v1424 = vadd.f32 %v1422, %v1423
    %s1425 = scalar_lea.vmem [#allocation11], 32
    %1426 = vst [vmem:[%s1425] sm:$0xff] %v1424
    %s1427 = scalar_lea.vmem [#allocation6], 120
    %v1428 = vld [vmem:[%s1427] sm:$0xff]
    %v1429 = vld [vmem:[%s1427 + $0x8] sm:$0xff]
    %v1430 = vld [vmem:[%s1427 + $0x10] sm:$0xff]
    %v1431 = vpack.c.bf16 %v1424, %v1424
    %v1432 = vld [vmem:[#allocation8] sm:$0xff]
    %v1433 = vld [vmem:[#allocation8 + $0x8] sm:$0xff]
    %v1434 = vld [vmem:[#allocation8 + $0x10] sm:$0xff]
    %v1435 = vld [vmem:[#allocation8 + $0x18] sm:$0xff]
    %v1436 = vld [vmem:[#allocation8 + $0x20] sm:$0xff]
    %v1437 = vld [vmem:[#allocation8 + $0x28] sm:$0xff]
    %v1438 = vld [vmem:[#allocation8 + $0x30] sm:$0xff]
    %v1439 = vld [vmem:[#allocation8 + $0x38] sm:$0xff]
    %v1440 = vld [vmem:[#allocation8 + $0x40] sm:$0xff]
    %v1441 = vld [vmem:[#allocation8 + $0x48] sm:$0xff]
    %v1442 = vld [vmem:[#allocation8 + $0x50] sm:$0xff]
    %v1443 = vld [vmem:[#allocation8 + $0x58] sm:$0xff]
    %v1444 = vld [vmem:[#allocation8 + $0x60] sm:$0xff]
    %v1445 = vld [vmem:[#allocation8 + $0x68] sm:$0xff]
    %v1446 = vld [vmem:[#allocation8 + $0x70] sm:$0xff]
    %v1447 = vld [vmem:[#allocation8 + $0x78] sm:$0xff]
    %v1464 = vunpack.c.l.b16 %v1432
    %v1465 = vunpack.c.h.b16 %v1432
    %v1466 = vunpack.c.l.b16 %v1433
    %v1467 = vunpack.c.h.b16 %v1433
    %v1468 = vunpack.c.l.b16 %v1434
    %v1469 = vunpack.c.h.b16 %v1434
    %v1470 = vunpack.c.l.b16 %v1435
    %v1471 = vunpack.c.h.b16 %v1435
    %v1472 = vunpack.c.l.b16 %v1436
    %v1473 = vunpack.c.h.b16 %v1436
    %v1474 = vunpack.c.l.b16 %v1437
    %v1475 = vunpack.c.h.b16 %v1437
    %v1476 = vunpack.c.l.b16 %v1438
    %v1477 = vunpack.c.h.b16 %v1438
    %v1478 = vunpack.c.l.b16 %v1439
    %v1479 = vunpack.c.h.b16 %v1439
    %v1480 = vunpack.c.l.b16 %v1440
    %v1481 = vunpack.c.h.b16 %v1440
    %v1482 = vunpack.c.l.b16 %v1441
    %v1483 = vunpack.c.h.b16 %v1441
    %v1484 = vunpack.c.l.b16 %v1442
    %v1485 = vunpack.c.h.b16 %v1442
    %v1486 = vunpack.c.l.b16 %v1443
    %v1487 = vunpack.c.h.b16 %v1443
    %v1488 = vunpack.c.l.b16 %v1444
    %v1489 = vunpack.c.h.b16 %v1444
    %v1490 = vunpack.c.l.b16 %v1445
    %v1491 = vunpack.c.h.b16 %v1445
    %v1492 = vunpack.c.l.b16 %v1446
    %v1493 = vunpack.c.h.b16 %v1446
    %v1494 = vunpack.c.l.b16 %v1447
    %v1495 = vunpack.c.h.b16 %v1447
    %v1496 = vpack.c.b16 %v1466, %v1464
    %v1497 = vpack.c.b16 %v1467, %v1465
    %v1498 = vpack.c.b16 %v1470, %v1468
    %v1499 = vpack.c.b16 %v1471, %v1469
    %v1500 = vpack.c.b16 %v1474, %v1472
    %v1501 = vpack.c.b16 %v1475, %v1473
    %v1502 = vpack.c.b16 %v1478, %v1476
    %v1503 = vpack.c.b16 %v1479, %v1477
    %v1504 = vpack.c.b16 %v1482, %v1480
    %v1505 = vpack.c.b16 %v1483, %v1481
    %v1506 = vpack.c.b16 %v1486, %v1484
    %v1507 = vpack.c.b16 %v1487, %v1485
    %v1508 = vpack.c.b16 %v1490, %v1488
    %v1509 = vpack.c.b16 %v1491, %v1489
    %v1510 = vpack.c.b16 %v1494, %v1492
    %v1511 = vpack.c.b16 %v1495, %v1493
    %1528 = vmatprep.subr.bf16.mxu0 %v1497
    %1529 = vmatpush1.bf16.msra.mxu0 %v1496
    %1530 = vmatprep.subr.bf16.mxu0 %v1499
    %1531 = vmatpush1.bf16.msra.mxu0 %v1498
    %1532 = vmatprep.subr.bf16.mxu0 %v1501
    %1533 = vmatpush1.bf16.msra.mxu0 %v1500
    %1534 = vmatprep.subr.bf16.mxu0 %v1503
    %1535 = vmatpush1.bf16.msra.mxu0 %v1502
    %1536 = vmatprep.subr.bf16.mxu0 %v1505
    %1537 = vmatpush1.bf16.msra.mxu0 %v1504
    %1538 = vmatprep.subr.bf16.mxu0 %v1507
    %1539 = vmatpush1.bf16.msra.mxu0 %v1506
    %1540 = vmatprep.subr.bf16.mxu0 %v1509
    %1541 = vmatpush1.bf16.msra.mxu0 %v1508
    %1542 = vmatprep.subr.bf16.mxu0 %v1511
    %1543 = vmatpush1.bf16.msra.mxu0 %v1510
    %1544 = vmatprep.subr.bf16.mxu0 0
    %1545 = vmatpush1.bf16.msra.mxu0 0
    %1546 = vmatprep.subr.bf16.mxu0 0
    %1547 = vmatpush1.bf16.msra.mxu0 0
    %1548 = vmatprep.subr.bf16.mxu0 0
    %1549 = vmatpush1.bf16.msra.mxu0 0
    %1550 = vmatprep.subr.bf16.mxu0 0
    %1551 = vmatpush1.bf16.msra.mxu0 0
    %1552 = vmatprep.subr.bf16.mxu0 0
    %1553 = vmatpush1.bf16.msra.mxu0 0
    %1554 = vmatprep.subr.bf16.mxu0 0
    %1555 = vmatpush1.bf16.msra.mxu0 0
    %1556 = vmatprep.subr.bf16.mxu0 0
    %1557 = vmatpush1.bf16.msra.mxu0 0
    %1558 = vmatprep.subr.bf16.mxu0 0
    %1559 = vmatpush1.bf16.msra.mxu0 0
    %1560 = vmatprep.mubr.bf16.mxu0 0
    %1561 = vmatmul.mubr.bf16.gmra.mrb[0].mxu0 %v1431
    %v1562 = vpop.f32.mrb[0].mxu0
    %v1563 = vadd.f32 0.0, %v1562
    %v1564 = vpop.f32.mrb[0].mxu0
    %v1565 = vadd.f32 0.0, %v1564
    %v1566 = vpop.f32.mrb[0].mxu0
    %v1567 = vpop.f32.mrb[0].mxu0
    %1568 = vdwg.mxu0
    %v1569 = vadd.f32 %v1428, %v1563
    %v1570 = vxor.u32 %v1569, 2147483648
    %v1571 = vmul.f32 %v1570, 1.442695
    %v1572 = vpow.pop %v1571
    %v1573 = vadd.f32 %v1572, 1.0
    %v1574 = vrcp.pop %v1573
    %v1575 = vmul.f32 1.0, %v1574
    %v1576 = vadd.f32 %v1429, %v1565
    %v1577 = vxor.u32 %v1576, 2147483648
    %v1578 = vmul.f32 %v1577, 1.442695
    %v1579 = vpow.pop %v1578
    %v1580 = vadd.f32 %v1579, 1.0
    %v1581 = vrcp.pop %v1580
    %v1582 = vmul.f32 1.0, %v1581
    %v1583 = vmul.f32 %v1575, %v1424
    %v1584 = vpack.c.bf16 %v1583, %v1583
    %v1585 = vld [vmem:[#allocation9] sm:$0xf]
    %v1586 = vld [vmem:[#allocation9 + $0x4] sm:$0xf]
    %v1587 = vld [vmem:[#allocation9 + $0x8] sm:$0xf]
    %v1588 = vld [vmem:[#allocation9 + $0xc] sm:$0xf]
    %v1589 = vld [vmem:[#allocation9 + $0x10] sm:$0xf]
    %v1590 = vld [vmem:[#allocation9 + $0x14] sm:$0xf]
    %v1591 = vld [vmem:[#allocation9 + $0x18] sm:$0xf]
    %v1592 = vld [vmem:[#allocation9 + $0x1c] sm:$0xf]
    %v1593 = vld [vmem:[#allocation9 + $0x20] sm:$0xf]
    %v1594 = vld [vmem:[#allocation9 + $0x24] sm:$0xf]
    %v1595 = vld [vmem:[#allocation9 + $0x28] sm:$0xf]
    %v1596 = vld [vmem:[#allocation9 + $0x2c] sm:$0xf]
    %v1597 = vld [vmem:[#allocation9 + $0x30] sm:$0xf]
    %v1598 = vld [vmem:[#allocation9 + $0x34] sm:$0xf]
    %v1599 = vld [vmem:[#allocation9 + $0x38] sm:$0xf]
    %v1600 = vld [vmem:[#allocation9 + $0x3c] sm:$0xf]
    %v1617 = vunpack.c.l.b16 %v1585
    %v1618 = vunpack.c.l.b16 %v1586
    %v1619 = vunpack.c.l.b16 %v1587
    %v1620 = vunpack.c.l.b16 %v1588
    %v1621 = vunpack.c.l.b16 %v1589
    %v1622 = vunpack.c.l.b16 %v1590
    %v1623 = vunpack.c.l.b16 %v1591
    %v1624 = vunpack.c.l.b16 %v1592
    %v1625 = vunpack.c.l.b16 %v1593
    %v1626 = vunpack.c.l.b16 %v1594
    %v1627 = vunpack.c.l.b16 %v1595
    %v1628 = vunpack.c.l.b16 %v1596
    %v1629 = vunpack.c.l.b16 %v1597
    %v1630 = vunpack.c.l.b16 %v1598
    %v1631 = vunpack.c.l.b16 %v1599
    %v1632 = vunpack.c.l.b16 %v1600
    %v1633 = vpack.c.b16 %v1618, %v1617
    %v1634 = vpack.c.b16 %v1620, %v1619
    %v1635 = vpack.c.b16 %v1622, %v1621
    %v1636 = vpack.c.b16 %v1624, %v1623
    %v1637 = vpack.c.b16 %v1626, %v1625
    %v1638 = vpack.c.b16 %v1628, %v1627
    %v1639 = vpack.c.b16 %v1630, %v1629
    %v1640 = vpack.c.b16 %v1632, %v1631
    %1649 = vmatprep.subr.bf16.mxu0 0
    %1650 = vmatpush1.bf16.msra.mxu0 %v1633
    %1651 = vmatprep.subr.bf16.mxu0 0
    %1652 = vmatpush1.bf16.msra.mxu0 %v1634
    %1653 = vmatprep.subr.bf16.mxu0 0
    %1654 = vmatpush1.bf16.msra.mxu0 %v1635
    %1655 = vmatprep.subr.bf16.mxu0 0
    %1656 = vmatpush1.bf16.msra.mxu0 %v1636
    %1657 = vmatprep.subr.bf16.mxu0 0
    %1658 = vmatpush1.bf16.msra.mxu0 %v1637
    %1659 = vmatprep.subr.bf16.mxu0 0
    %1660 = vmatpush1.bf16.msra.mxu0 %v1638
    %1661 = vmatprep.subr.bf16.mxu0 0
    %1662 = vmatpush1.bf16.msra.mxu0 %v1639
    %1663 = vmatprep.subr.bf16.mxu0 0
    %1664 = vmatpush1.bf16.msra.mxu0 %v1640
    %1665 = vmatprep.subr.bf16.mxu0 0
    %1666 = vmatpush1.bf16.msra.mxu0 0
    %1667 = vmatprep.subr.bf16.mxu0 0
    %1668 = vmatpush1.bf16.msra.mxu0 0
    %1669 = vmatprep.subr.bf16.mxu0 0
    %1670 = vmatpush1.bf16.msra.mxu0 0
    %1671 = vmatprep.subr.bf16.mxu0 0
    %1672 = vmatpush1.bf16.msra.mxu0 0
    %1673 = vmatprep.subr.bf16.mxu0 0
    %1674 = vmatpush1.bf16.msra.mxu0 0
    %1675 = vmatprep.subr.bf16.mxu0 0
    %1676 = vmatpush1.bf16.msra.mxu0 0
    %1677 = vmatprep.subr.bf16.mxu0 0
    %1678 = vmatpush1.bf16.msra.mxu0 0
    %1679 = vmatprep.subr.bf16.mxu0 0
    %1680 = vmatpush1.bf16.msra.mxu0 0
    %1681 = vmatprep.mubr.bf16.mxu0 0
    %1682 = vmatmul.mubr.bf16.gmra.mrb[0].mxu0 %v1584
    %v1683 = vpop.f32.mrb[0].mxu0
    %v1684 = vadd.f32 0.0, %v1683
    %v1685 = vpop.f32.mrb[0].mxu0
    %v1686 = vpop.f32.mrb[0].mxu0
    %v1687 = vpop.f32.mrb[0].mxu0
    %1688 = vdwg.mxu0
    %v1689 = vadd.f32 %v1430, %v1684
    %v1690 = vtanh.pop %v1689
    %v1691 = vsub.f32 1.0, %v1582
    %v1692 = vmul.f32 %v1691, %v1424
    %v1693 = vmul.f32 %v1582, %v1690
    %v1694 = vadd.f32 %v1692, %v1693
    %s1695 = scalar_lea.vmem [#allocation11], 40
    %1696 = vst [vmem:[%s1695] sm:$0xff] %v1694
    %s1697 = scalar_lea.vmem [#allocation6], 144
    %v1698 = vld [vmem:[%s1697] sm:$0xff]
    %v1699 = vld [vmem:[%s1697 + $0x8] sm:$0xff]
    %v1700 = vld [vmem:[%s1697 + $0x10] sm:$0xff]
    %v1701 = vpack.c.bf16 %v1694, %v1694
    %v1702 = vld [vmem:[#allocation8] sm:$0xff]
    %v1703 = vld [vmem:[#allocation8 + $0x8] sm:$0xff]
    %v1704 = vld [vmem:[#allocation8 + $0x10] sm:$0xff]
    %v1705 = vld [vmem:[#allocation8 + $0x18] sm:$0xff]
    %v1706 = vld [vmem:[#allocation8 + $0x20] sm:$0xff]
    %v1707 = vld [vmem:[#allocation8 + $0x28] sm:$0xff]
    %v1708 = vld [vmem:[#allocation8 + $0x30] sm:$0xff]
    %v1709 = vld [vmem:[#allocation8 + $0x38] sm:$0xff]
    %v1710 = vld [vmem:[#allocation8 + $0x40] sm:$0xff]
    %v1711 = vld [vmem:[#allocation8 + $0x48] sm:$0xff]
    %v1712 = vld [vmem:[#allocation8 + $0x50] sm:$0xff]
    %v1713 = vld [vmem:[#allocation8 + $0x58] sm:$0xff]
    %v1714 = vld [vmem:[#allocation8 + $0x60] sm:$0xff]
    %v1715 = vld [vmem:[#allocation8 + $0x68] sm:$0xff]
    %v1716 = vld [vmem:[#allocation8 + $0x70] sm:$0xff]
    %v1717 = vld [vmem:[#allocation8 + $0x78] sm:$0xff]
    %v1734 = vunpack.c.l.b16 %v1702
    %v1735 = vunpack.c.h.b16 %v1702
    %v1736 = vunpack.c.l.b16 %v1703
    %v1737 = vunpack.c.h.b16 %v1703
    %v1738 = vunpack.c.l.b16 %v1704
    %v1739 = vunpack.c.h.b16 %v1704
    %v1740 = vunpack.c.l.b16 %v1705
    %v1741 = vunpack.c.h.b16 %v1705
    %v1742 = vunpack.c.l.b16 %v1706
    %v1743 = vunpack.c.h.b16 %v1706
    %v1744 = vunpack.c.l.b16 %v1707
    %v1745 = vunpack.c.h.b16 %v1707
    %v1746 = vunpack.c.l.b16 %v1708
    %v1747 = vunpack.c.h.b16 %v1708
    %v1748 = vunpack.c.l.b16 %v1709
    %v1749 = vunpack.c.h.b16 %v1709
    %v1750 = vunpack.c.l.b16 %v1710
    %v1751 = vunpack.c.h.b16 %v1710
    %v1752 = vunpack.c.l.b16 %v1711
    %v1753 = vunpack.c.h.b16 %v1711
    %v1754 = vunpack.c.l.b16 %v1712
    %v1755 = vunpack.c.h.b16 %v1712
    %v1756 = vunpack.c.l.b16 %v1713
    %v1757 = vunpack.c.h.b16 %v1713
    %v1758 = vunpack.c.l.b16 %v1714
    %v1759 = vunpack.c.h.b16 %v1714
    %v1760 = vunpack.c.l.b16 %v1715
    %v1761 = vunpack.c.h.b16 %v1715
    %v1762 = vunpack.c.l.b16 %v1716
    %v1763 = vunpack.c.h.b16 %v1716
    %v1764 = vunpack.c.l.b16 %v1717
    %v1765 = vunpack.c.h.b16 %v1717
    %v1766 = vpack.c.b16 %v1736, %v1734
    %v1767 = vpack.c.b16 %v1737, %v1735
    %v1768 = vpack.c.b16 %v1740, %v1738
    %v1769 = vpack.c.b16 %v1741, %v1739
    %v1770 = vpack.c.b16 %v1744, %v1742
    %v1771 = vpack.c.b16 %v1745, %v1743
    %v1772 = vpack.c.b16 %v1748, %v1746
    %v1773 = vpack.c.b16 %v1749, %v1747
    %v1774 = vpack.c.b16 %v1752, %v1750
    %v1775 = vpack.c.b16 %v1753, %v1751
    %v1776 = vpack.c.b16 %v1756, %v1754
    %v1777 = vpack.c.b16 %v1757, %v1755
    %v1778 = vpack.c.b16 %v1760, %v1758
    %v1779 = vpack.c.b16 %v1761, %v1759
    %v1780 = vpack.c.b16 %v1764, %v1762
    %v1781 = vpack.c.b16 %v1765, %v1763
    %1798 = vmatprep.subr.bf16.mxu0 %v1767
    %1799 = vmatpush1.bf16.msra.mxu0 %v1766
    %1800 = vmatprep.subr.bf16.mxu0 %v1769
    %1801 = vmatpush1.bf16.msra.mxu0 %v1768
    %1802 = vmatprep.subr.bf16.mxu0 %v1771
    %1803 = vmatpush1.bf16.msra.mxu0 %v1770
    %1804 = vmatprep.subr.bf16.mxu0 %v1773
    %1805 = vmatpush1.bf16.msra.mxu0 %v1772
    %1806 = vmatprep.subr.bf16.mxu0 %v1775
    %1807 = vmatpush1.bf16.msra.mxu0 %v1774
    %1808 = vmatprep.subr.bf16.mxu0 %v1777
    %1809 = vmatpush1.bf16.msra.mxu0 %v1776
    %1810 = vmatprep.subr.bf16.mxu0 %v1779
    %1811 = vmatpush1.bf16.msra.mxu0 %v1778
    %1812 = vmatprep.subr.bf16.mxu0 %v1781
    %1813 = vmatpush1.bf16.msra.mxu0 %v1780
    %1814 = vmatprep.subr.bf16.mxu0 0
    %1815 = vmatpush1.bf16.msra.mxu0 0
    %1816 = vmatprep.subr.bf16.mxu0 0
    %1817 = vmatpush1.bf16.msra.mxu0 0
    %1818 = vmatprep.subr.bf16.mxu0 0
    %1819 = vmatpush1.bf16.msra.mxu0 0
    %1820 = vmatprep.subr.bf16.mxu0 0
    %1821 = vmatpush1.bf16.msra.mxu0 0
    %1822 = vmatprep.subr.bf16.mxu0 0
    %1823 = vmatpush1.bf16.msra.mxu0 0
    %1824 = vmatprep.subr.bf16.mxu0 0
    %1825 = vmatpush1.bf16.msra.mxu0 0
    %1826 = vmatprep.subr.bf16.mxu0 0
    %1827 = vmatpush1.bf16.msra.mxu0 0
    %1828 = vmatprep.subr.bf16.mxu0 0
    %1829 = vmatpush1.bf16.msra.mxu0 0
    %1830 = vmatprep.mubr.bf16.mxu0 0
    %1831 = vmatmul.mubr.bf16.gmra.mrb[0].mxu0 %v1701
    %v1832 = vpop.f32.mrb[0].mxu0
    %v1833 = vadd.f32 0.0, %v1832
    %v1834 = vpop.f32.mrb[0].mxu0
    %v1835 = vadd.f32 0.0, %v1834
    %v1836 = vpop.f32.mrb[0].mxu0
    %v1837 = vpop.f32.mrb[0].mxu0
    %1838 = vdwg.mxu0
    %v1839 = vadd.f32 %v1698, %v1833
    %v1840 = vxor.u32 %v1839, 2147483648
    %v1841 = vmul.f32 %v1840, 1.442695
    %v1842 = vpow.pop %v1841
    %v1843 = vadd.f32 %v1842, 1.0
    %v1844 = vrcp.pop %v1843
    %v1845 = vmul.f32 1.0, %v1844
    %v1846 = vadd.f32 %v1699, %v1835
    %v1847 = vxor.u32 %v1846, 2147483648
    %v1848 = vmul.f32 %v1847, 1.442695
    %v1849 = vpow.pop %v1848
    %v1850 = vadd.f32 %v1849, 1.0
    %v1851 = vrcp.pop %v1850
    %v1852 = vmul.f32 1.0, %v1851
    %v1853 = vmul.f32 %v1845, %v1694
    %v1854 = vpack.c.bf16 %v1853, %v1853
    %v1855 = vld [vmem:[#allocation9] sm:$0xf]
    %v1856 = vld [vmem:[#allocation9 + $0x4] sm:$0xf]
    %v1857 = vld [vmem:[#allocation9 + $0x8] sm:$0xf]
    %v1858 = vld [vmem:[#allocation9 + $0xc] sm:$0xf]
    %v1859 = vld [vmem:[#allocation9 + $0x10] sm:$0xf]
    %v1860 = vld [vmem:[#allocation9 + $0x14] sm:$0xf]
    %v1861 = vld [vmem:[#allocation9 + $0x18] sm:$0xf]
    %v1862 = vld [vmem:[#allocation9 + $0x1c] sm:$0xf]
    %v1863 = vld [vmem:[#allocation9 + $0x20] sm:$0xf]
    %v1864 = vld [vmem:[#allocation9 + $0x24] sm:$0xf]
    %v1865 = vld [vmem:[#allocation9 + $0x28] sm:$0xf]
    %v1866 = vld [vmem:[#allocation9 + $0x2c] sm:$0xf]
    %v1867 = vld [vmem:[#allocation9 + $0x30] sm:$0xf]
    %v1868 = vld [vmem:[#allocation9 + $0x34] sm:$0xf]
    %v1869 = vld [vmem:[#allocation9 + $0x38] sm:$0xf]
    %v1870 = vld [vmem:[#allocation9 + $0x3c] sm:$0xf]
    %v1887 = vunpack.c.l.b16 %v1855
    %v1888 = vunpack.c.l.b16 %v1856
    %v1889 = vunpack.c.l.b16 %v1857
    %v1890 = vunpack.c.l.b16 %v1858
    %v1891 = vunpack.c.l.b16 %v1859
    %v1892 = vunpack.c.l.b16 %v1860
    %v1893 = vunpack.c.l.b16 %v1861
    %v1894 = vunpack.c.l.b16 %v1862
    %v1895 = vunpack.c.l.b16 %v1863
    %v1896 = vunpack.c.l.b16 %v1864
    %v1897 = vunpack.c.l.b16 %v1865
    %v1898 = vunpack.c.l.b16 %v1866
    %v1899 = vunpack.c.l.b16 %v1867
    %v1900 = vunpack.c.l.b16 %v1868
    %v1901 = vunpack.c.l.b16 %v1869
    %v1902 = vunpack.c.l.b16 %v1870
    %v1903 = vpack.c.b16 %v1888, %v1887
    %v1904 = vpack.c.b16 %v1890, %v1889
    %v1905 = vpack.c.b16 %v1892, %v1891
    %v1906 = vpack.c.b16 %v1894, %v1893
    %v1907 = vpack.c.b16 %v1896, %v1895
    %v1908 = vpack.c.b16 %v1898, %v1897
    %v1909 = vpack.c.b16 %v1900, %v1899
    %v1910 = vpack.c.b16 %v1902, %v1901
    %1919 = vmatprep.subr.bf16.mxu0 0
    %1920 = vmatpush1.bf16.msra.mxu0 %v1903
    %1921 = vmatprep.subr.bf16.mxu0 0
    %1922 = vmatpush1.bf16.msra.mxu0 %v1904
    %1923 = vmatprep.subr.bf16.mxu0 0
    %1924 = vmatpush1.bf16.msra.mxu0 %v1905
    %1925 = vmatprep.subr.bf16.mxu0 0
    %1926 = vmatpush1.bf16.msra.mxu0 %v1906
    %1927 = vmatprep.subr.bf16.mxu0 0
    %1928 = vmatpush1.bf16.msra.mxu0 %v1907
    %1929 = vmatprep.subr.bf16.mxu0 0
    %1930 = vmatpush1.bf16.msra.mxu0 %v1908
    %1931 = vmatprep.subr.bf16.mxu0 0
    %1932 = vmatpush1.bf16.msra.mxu0 %v1909
    %1933 = vmatprep.subr.bf16.mxu0 0
    %1934 = vmatpush1.bf16.msra.mxu0 %v1910
    %1935 = vmatprep.subr.bf16.mxu0 0
    %1936 = vmatpush1.bf16.msra.mxu0 0
    %1937 = vmatprep.subr.bf16.mxu0 0
    %1938 = vmatpush1.bf16.msra.mxu0 0
    %1939 = vmatprep.subr.bf16.mxu0 0
    %1940 = vmatpush1.bf16.msra.mxu0 0
    %1941 = vmatprep.subr.bf16.mxu0 0
    %1942 = vmatpush1.bf16.msra.mxu0 0
    %1943 = vmatprep.subr.bf16.mxu0 0
    %1944 = vmatpush1.bf16.msra.mxu0 0
    %1945 = vmatprep.subr.bf16.mxu0 0
    %1946 = vmatpush1.bf16.msra.mxu0 0
    %1947 = vmatprep.subr.bf16.mxu0 0
    %1948 = vmatpush1.bf16.msra.mxu0 0
    %1949 = vmatprep.subr.bf16.mxu0 0
    %1950 = vmatpush1.bf16.msra.mxu0 0
    %1951 = vmatprep.mubr.bf16.mxu0 0
    %1952 = vmatmul.mubr.bf16.gmra.mrb[0].mxu0 %v1854
    %v1953 = vpop.f32.mrb[0].mxu0
    %v1954 = vadd.f32 0.0, %v1953
    %v1955 = vpop.f32.mrb[0].mxu0
    %v1956 = vpop.f32.mrb[0].mxu0
    %v1957 = vpop.f32.mrb[0].mxu0
    %1958 = vdwg.mxu0
    %v1959 = vadd.f32 %v1700, %v1954
    %v1960 = vtanh.pop %v1959
    %v1961 = vsub.f32 1.0, %v1852
    %v1962 = vmul.f32 %v1961, %v1694
    %v1963 = vmul.f32 %v1852, %v1960
    %v1964 = vadd.f32 %v1962, %v1963
    %s1965 = scalar_lea.vmem [#allocation11], 48
    %1966 = vst [vmem:[%s1965] sm:$0xff] %v1964
    %s1967 = scalar_lea.vmem [#allocation6], 168
    %v1968 = vld [vmem:[%s1967] sm:$0xff]
    %v1969 = vld [vmem:[%s1967 + $0x8] sm:$0xff]
    %v1970 = vld [vmem:[%s1967 + $0x10] sm:$0xff]
    %v1971 = vpack.c.bf16 %v1964, %v1964
    %v1972 = vld [vmem:[#allocation8] sm:$0xff]
    %v1973 = vld [vmem:[#allocation8 + $0x8] sm:$0xff]
    %v1974 = vld [vmem:[#allocation8 + $0x10] sm:$0xff]
    %v1975 = vld [vmem:[#allocation8 + $0x18] sm:$0xff]
    %v1976 = vld [vmem:[#allocation8 + $0x20] sm:$0xff]
    %v1977 = vld [vmem:[#allocation8 + $0x28] sm:$0xff]
    %v1978 = vld [vmem:[#allocation8 + $0x30] sm:$0xff]
    %v1979 = vld [vmem:[#allocation8 + $0x38] sm:$0xff]
    %v1980 = vld [vmem:[#allocation8 + $0x40] sm:$0xff]
    %v1981 = vld [vmem:[#allocation8 + $0x48] sm:$0xff]
    %v1982 = vld [vmem:[#allocation8 + $0x50] sm:$0xff]
    %v1983 = vld [vmem:[#allocation8 + $0x58] sm:$0xff]
    %v1984 = vld [vmem:[#allocation8 + $0x60] sm:$0xff]
    %v1985 = vld [vmem:[#allocation8 + $0x68] sm:$0xff]
    %v1986 = vld [vmem:[#allocation8 + $0x70] sm:$0xff]
    %v1987 = vld [vmem:[#allocation8 + $0x78] sm:$0xff]
    %v2004 = vunpack.c.l.b16 %v1972
    %v2005 = vunpack.c.h.b16 %v1972
    %v2006 = vunpack.c.l.b16 %v1973
    %v2007 = vunpack.c.h.b16 %v1973
    %v2008 = vunpack.c.l.b16 %v1974
    %v2009 = vunpack.c.h.b16 %v1974
    %v2010 = vunpack.c.l.b16 %v1975
    %v2011 = vunpack.c.h.b16 %v1975
    %v2012 = vunpack.c.l.b16 %v1976
    %v2013 = vunpack.c.h.b16 %v1976
    %v2014 = vunpack.c.l.b16 %v1977
    %v2015 = vunpack.c.h.b16 %v1977
    %v2016 = vunpack.c.l.b16 %v1978
    %v2017 = vunpack.c.h.b16 %v1978
    %v2018 = vunpack.c.l.b16 %v1979
    %v2019 = vunpack.c.h.b16 %v1979
    %v2020 = vunpack.c.l.b16 %v1980
    %v2021 = vunpack.c.h.b16 %v1980
    %v2022 = vunpack.c.l.b16 %v1981
    %v2023 = vunpack.c.h.b16 %v1981
    %v2024 = vunpack.c.l.b16 %v1982
    %v2025 = vunpack.c.h.b16 %v1982
    %v2026 = vunpack.c.l.b16 %v1983
    %v2027 = vunpack.c.h.b16 %v1983
    %v2028 = vunpack.c.l.b16 %v1984
    %v2029 = vunpack.c.h.b16 %v1984
    %v2030 = vunpack.c.l.b16 %v1985
    %v2031 = vunpack.c.h.b16 %v1985
    %v2032 = vunpack.c.l.b16 %v1986
    %v2033 = vunpack.c.h.b16 %v1986
    %v2034 = vunpack.c.l.b16 %v1987
    %v2035 = vunpack.c.h.b16 %v1987
    %v2036 = vpack.c.b16 %v2006, %v2004
    %v2037 = vpack.c.b16 %v2007, %v2005
    %v2038 = vpack.c.b16 %v2010, %v2008
    %v2039 = vpack.c.b16 %v2011, %v2009
    %v2040 = vpack.c.b16 %v2014, %v2012
    %v2041 = vpack.c.b16 %v2015, %v2013
    %v2042 = vpack.c.b16 %v2018, %v2016
    %v2043 = vpack.c.b16 %v2019, %v2017
    %v2044 = vpack.c.b16 %v2022, %v2020
    %v2045 = vpack.c.b16 %v2023, %v2021
    %v2046 = vpack.c.b16 %v2026, %v2024
    %v2047 = vpack.c.b16 %v2027, %v2025
    %v2048 = vpack.c.b16 %v2030, %v2028
    %v2049 = vpack.c.b16 %v2031, %v2029
    %v2050 = vpack.c.b16 %v2034, %v2032
    %v2051 = vpack.c.b16 %v2035, %v2033
    %2068 = vmatprep.subr.bf16.mxu0 %v2037
    %2069 = vmatpush1.bf16.msra.mxu0 %v2036
    %2070 = vmatprep.subr.bf16.mxu0 %v2039
    %2071 = vmatpush1.bf16.msra.mxu0 %v2038
    %2072 = vmatprep.subr.bf16.mxu0 %v2041
    %2073 = vmatpush1.bf16.msra.mxu0 %v2040
    %2074 = vmatprep.subr.bf16.mxu0 %v2043
    %2075 = vmatpush1.bf16.msra.mxu0 %v2042
    %2076 = vmatprep.subr.bf16.mxu0 %v2045
    %2077 = vmatpush1.bf16.msra.mxu0 %v2044
    %2078 = vmatprep.subr.bf16.mxu0 %v2047
    %2079 = vmatpush1.bf16.msra.mxu0 %v2046
    %2080 = vmatprep.subr.bf16.mxu0 %v2049
    %2081 = vmatpush1.bf16.msra.mxu0 %v2048
    %2082 = vmatprep.subr.bf16.mxu0 %v2051
    %2083 = vmatpush1.bf16.msra.mxu0 %v2050
    %2084 = vmatprep.subr.bf16.mxu0 0
    %2085 = vmatpush1.bf16.msra.mxu0 0
    %2086 = vmatprep.subr.bf16.mxu0 0
    %2087 = vmatpush1.bf16.msra.mxu0 0
    %2088 = vmatprep.subr.bf16.mxu0 0
    %2089 = vmatpush1.bf16.msra.mxu0 0
    %2090 = vmatprep.subr.bf16.mxu0 0
    %2091 = vmatpush1.bf16.msra.mxu0 0
    %2092 = vmatprep.subr.bf16.mxu0 0
    %2093 = vmatpush1.bf16.msra.mxu0 0
    %2094 = vmatprep.subr.bf16.mxu0 0
    %2095 = vmatpush1.bf16.msra.mxu0 0
    %2096 = vmatprep.subr.bf16.mxu0 0
    %2097 = vmatpush1.bf16.msra.mxu0 0
    %2098 = vmatprep.subr.bf16.mxu0 0
    %2099 = vmatpush1.bf16.msra.mxu0 0
    %2100 = vmatprep.mubr.bf16.mxu0 0
    %2101 = vmatmul.mubr.bf16.gmra.mrb[0].mxu0 %v1971
    %v2102 = vpop.f32.mrb[0].mxu0
    %v2103 = vadd.f32 0.0, %v2102
    %v2104 = vpop.f32.mrb[0].mxu0
    %v2105 = vadd.f32 0.0, %v2104
    %v2106 = vpop.f32.mrb[0].mxu0
    %v2107 = vpop.f32.mrb[0].mxu0
    %2108 = vdwg.mxu0
    %v2109 = vadd.f32 %v1968, %v2103
    %v2110 = vxor.u32 %v2109, 2147483648
    %v2111 = vmul.f32 %v2110, 1.442695
    %v2112 = vpow.pop %v2111
    %v2113 = vadd.f32 %v2112, 1.0
    %v2114 = vrcp.pop %v2113
    %v2115 = vmul.f32 1.0, %v2114
    %v2116 = vadd.f32 %v1969, %v2105
    %v2117 = vxor.u32 %v2116, 2147483648
    %v2118 = vmul.f32 %v2117, 1.442695
    %v2119 = vpow.pop %v2118
    %v2120 = vadd.f32 %v2119, 1.0
    %v2121 = vrcp.pop %v2120
    %v2122 = vmul.f32 1.0, %v2121
    %v2123 = vmul.f32 %v2115, %v1964
    %v2124 = vpack.c.bf16 %v2123, %v2123
    %v2125 = vld [vmem:[#allocation9] sm:$0xf]
    %v2126 = vld [vmem:[#allocation9 + $0x4] sm:$0xf]
    %v2127 = vld [vmem:[#allocation9 + $0x8] sm:$0xf]
    %v2128 = vld [vmem:[#allocation9 + $0xc] sm:$0xf]
    %v2129 = vld [vmem:[#allocation9 + $0x10] sm:$0xf]
    %v2130 = vld [vmem:[#allocation9 + $0x14] sm:$0xf]
    %v2131 = vld [vmem:[#allocation9 + $0x18] sm:$0xf]
    %v2132 = vld [vmem:[#allocation9 + $0x1c] sm:$0xf]
    %v2133 = vld [vmem:[#allocation9 + $0x20] sm:$0xf]
    %v2134 = vld [vmem:[#allocation9 + $0x24] sm:$0xf]
    %v2135 = vld [vmem:[#allocation9 + $0x28] sm:$0xf]
    %v2136 = vld [vmem:[#allocation9 + $0x2c] sm:$0xf]
    %v2137 = vld [vmem:[#allocation9 + $0x30] sm:$0xf]
    %v2138 = vld [vmem:[#allocation9 + $0x34] sm:$0xf]
    %v2139 = vld [vmem:[#allocation9 + $0x38] sm:$0xf]
    %v2140 = vld [vmem:[#allocation9 + $0x3c] sm:$0xf]
    %v2157 = vunpack.c.l.b16 %v2125
    %v2158 = vunpack.c.l.b16 %v2126
    %v2159 = vunpack.c.l.b16 %v2127
    %v2160 = vunpack.c.l.b16 %v2128
    %v2161 = vunpack.c.l.b16 %v2129
    %v2162 = vunpack.c.l.b16 %v2130
    %v2163 = vunpack.c.l.b16 %v2131
    %v2164 = vunpack.c.l.b16 %v2132
    %v2165 = vunpack.c.l.b16 %v2133
    %v2166 = vunpack.c.l.b16 %v2134
    %v2167 = vunpack.c.l.b16 %v2135
    %v2168 = vunpack.c.l.b16 %v2136
    %v2169 = vunpack.c.l.b16 %v2137
    %v2170 = vunpack.c.l.b16 %v2138
    %v2171 = vunpack.c.l.b16 %v2139
    %v2172 = vunpack.c.l.b16 %v2140
    %v2173 = vpack.c.b16 %v2158, %v2157
    %v2174 = vpack.c.b16 %v2160, %v2159
    %v2175 = vpack.c.b16 %v2162, %v2161
    %v2176 = vpack.c.b16 %v2164, %v2163
    %v2177 = vpack.c.b16 %v2166, %v2165
    %v2178 = vpack.c.b16 %v2168, %v2167
    %v2179 = vpack.c.b16 %v2170, %v2169
    %v2180 = vpack.c.b16 %v2172, %v2171
    %2189 = vmatprep.subr.bf16.mxu0 0
    %2190 = vmatpush1.bf16.msra.mxu0 %v2173
    %2191 = vmatprep.subr.bf16.mxu0 0
    %2192 = vmatpush1.bf16.msra.mxu0 %v2174
    %2193 = vmatprep.subr.bf16.mxu0 0
    %2194 = vmatpush1.bf16.msra.mxu0 %v2175
    %2195 = vmatprep.subr.bf16.mxu0 0
    %2196 = vmatpush1.bf16.msra.mxu0 %v2176
    %2197 = vmatprep.subr.bf16.mxu0 0
    %2198 = vmatpush1.bf16.msra.mxu0 %v2177
    %2199 = vmatprep.subr.bf16.mxu0 0
    %2200 = vmatpush1.bf16.msra.mxu0 %v2178
    %2201 = vmatprep.subr.bf16.mxu0 0
    %2202 = vmatpush1.bf16.msra.mxu0 %v2179
    %2203 = vmatprep.subr.bf16.mxu0 0
    %2204 = vmatpush1.bf16.msra.mxu0 %v2180
    %2205 = vmatprep.subr.bf16.mxu0 0
    %2206 = vmatpush1.bf16.msra.mxu0 0
    %2207 = vmatprep.subr.bf16.mxu0 0
    %2208 = vmatpush1.bf16.msra.mxu0 0
    %2209 = vmatprep.subr.bf16.mxu0 0
    %2210 = vmatpush1.bf16.msra.mxu0 0
    %2211 = vmatprep.subr.bf16.mxu0 0
    %2212 = vmatpush1.bf16.msra.mxu0 0
    %2213 = vmatprep.subr.bf16.mxu0 0
    %2214 = vmatpush1.bf16.msra.mxu0 0
    %2215 = vmatprep.subr.bf16.mxu0 0
    %2216 = vmatpush1.bf16.msra.mxu0 0
    %2217 = vmatprep.subr.bf16.mxu0 0
    %2218 = vmatpush1.bf16.msra.mxu0 0
    %2219 = vmatprep.subr.bf16.mxu0 0
    %2220 = vmatpush1.bf16.msra.mxu0 0
    %2221 = vmatprep.mubr.bf16.mxu0 0
    %2222 = vmatmul.mubr.bf16.gmra.mrb[0].mxu0 %v2124
    %v2223 = vpop.f32.mrb[0].mxu0
    %v2224 = vadd.f32 0.0, %v2223
    %v2225 = vpop.f32.mrb[0].mxu0
    %v2226 = vpop.f32.mrb[0].mxu0
    %v2227 = vpop.f32.mrb[0].mxu0
    %2228 = vdwg.mxu0
    %v2229 = vadd.f32 %v1970, %v2224
    %v2230 = vtanh.pop %v2229
    %v2231 = vsub.f32 1.0, %v2122
    %v2232 = vmul.f32 %v2231, %v1964
    %v2233 = vmul.f32 %v2122, %v2230
    %v2234 = vadd.f32 %v2232, %v2233
    %s2235 = scalar_lea.vmem [#allocation11], 56
    %2236 = vst [vmem:[%s2235] sm:$0xff] %v2234
    %2237 = vst [vmem:[#allocation2] sm:$0xff] %v2234
    // Predicated region
    $region38: #{tpu_custom_call.1} parent=1 // pred_check
      _
    $region39: #{tpu_custom_call.1} parent=1 // pred_check_branch
      %2239 = sbr.rel (0) target = $region41
    $region40: #{tpu_custom_call.1} parent=1 // pred_region
      %s2241 = ssub.s32 1024, 1024
      %2242 = vsyncadd [#allocation5], %s2241
      %s2243 = sshll.u32 [#allocation11], 4
      %s2244 = int_to_ptr.vmem [resolvable:$true] %s2243
      %2249 = dma.vmem_to_hbm [thread:$0]  %s2244, 1024, %s4, [#allocation5], 128, 128, 8
    $region41: #{tpu_custom_call.1} parent=1 // pred_fallthru
      _
    // Predicated region
    $region42: #{tpu_custom_call.1} parent=1 // pred_check
      _
    $region43: #{tpu_custom_call.1} parent=1 // pred_check_branch
      %2251 = sbr.rel (0) target = $region45
    $region44: #{tpu_custom_call.1} parent=1 // pred_region
      %2252 = dma.done [#allocation5], 1024
    $region45: #{tpu_custom_call.1} parent=1 // pred_fallthru
      _
    %2253 = vsyncpa [#allocation4], 1
    %2254 = vsyncpa [#allocation7], 1
    %2255 = vsyncpa [#allocation10], 1
    %2256 = vsyncpa [#allocation5], 1

// kernel: tpu_custom_call.1
$region0: #{tpu_custom_call.1}
  #allocation0 [shape = 'u32[]', space=smem, size = 0x4, offset = 0x4, fixed_abs, tag = 'smem constant byte address 0x4 - core index']
  #allocation1 [shape = 'u32[144,128]{1,0:T(1,128)}', space=vmem, size = 0x12000, scoped, tag = 'internal scratch']
  #allocation2 [shape = 'f32[8,128]{1,0:T(8,128)}', space=vmem, size = 0x1000, scoped, tag = 'scratch operand']
  %s0 = inlined_call_operand.hbm [shape: f32[8,128], index: 0, kind: input, shape index: {}]
  %s1 = inlined_call_operand.hbm [shape: f32[8,8,384], index: 1, kind: input, shape index: {}]
  %s2 = inlined_call_operand.hbm [shape: bf16[128,256], index: 2, kind: input, shape index: {}]
  %s3 = inlined_call_operand.hbm [shape: bf16[128,128], index: 3, kind: input, shape index: {}]
  %s4 = inlined_call_operand.hbm [shape: f32[8,8,128], index: 4, kind: output, shape index: {}]
  %s5 = sld [smem:[#allocation0]]
  $region46: #{tpu_custom_call.1} parent=0
    _
  %s7 = ssub.s32 1, %s5
  %s8 = scalar_select 0, %s7, %s5
  $region1: #{tpu_custom_call.1} parent=0
    #allocation3 [shape = 'u8[4096]{0}', space=vmem, size = 0x1000, scoped, tag = 'input window, operand 0, single buffered']
    #allocation4 [shape = 's32[1]{0}', space=sflag, size = 0x4, scoped, tag = 'scoped memory for tpu_custom_call.1']
    #allocation5 [shape = 's32[1]{0}', space=sflag, size = 0x4, scoped, tag = 'scoped memory for tpu_custom_call.1']
    #allocation6 [shape = 'u8[98304]{0}', space=vmem, size = 0x18000, scoped, tag = 'input window, operand 1, single buffered']
    #allocation7 [shape = 's32[1]{0}', space=sflag, size = 0x4, scoped, tag = 'scoped memory for tpu_custom_call.1']
    #allocation8 [shape = 'u8[65536]{0}', space=vmem, size = 0x10000, scoped, tag = 'input window, operand 2, single buffered']
    #allocation9 [shape = 'u8[32768]{0}', space=vmem, size = 0x8000, scoped, tag = 'input window, operand 3, single buffered']
    #allocation10 [shape = 's32[1]{0}', space=sflag, size = 0x4, scoped, tag = 'scoped memory for tpu_custom_call.1']
    #allocation11 [shape = 'u8[32768]{0}', space=vmem, size = 0x8000, scoped, tag = 'output window, operand 0, single buffered']
    %9 = vsyncpa [#allocation4], 0
    %10 = vsyncpa [#allocation7], 0
    %11 = vsyncpa [#allocation10], 0
    %12 = vsyncpa [#allocation5], 0
    // Predicated region
    $region2: #{tpu_custom_call.1} parent=1 // pred_check
      _
    $region3: #{tpu_custom_call.1} parent=1 // pred_check_branch
      %14 = sbr.rel (0) target = $region5
    $region4: #{tpu_custom_call.1} parent=1 // pred_region
      %s16 = ssub.s32 128, 128
      %17 = vsyncadd [#allocation4], %s16
      %s19 = sshll.u32 [#allocation3], 4
      %s20 = int_to_ptr.vmem [resolvable:$true] %s19
      %22 = dma.hbm_to_vmem [thread:$0]  %s0, 128, %s20, [#allocation4]
    $region5: #{tpu_custom_call.1} parent=1 // pred_fallthru
      _
    // Predicated region
    $region6: #{tpu_custom_call.1} parent=1 // pred_check
      _
    $region7: #{tpu_custom_call.1} parent=1 // pred_check_branch
      %24 = sbr.rel (0) target = $region9
    $region8: #{tpu_custom_call.1} parent=1 // pred_region
      %s26 = ssub.s32 3072, 3072
      %27 = vsyncadd [#allocation7], %s26
      %s28 = sshll.u32 [#allocation6], 4
      %s29 = int_to_ptr.vmem [resolvable:$true] %s28
      %34 = dma.hbm_to_vmem [thread:$0]  %s1, 3072, %s29, [#allocation7], 384, 384, 24
    $region9: #{tpu_custom_call.1} parent=1 // pred_fallthru
      _
    // Predicated region
    $region10: #{tpu_custom_call.1} parent=1 // pred_check
      _
    $region11: #{tpu_custom_call.1} parent=1 // pred_check_branch
      %36 = sbr.rel (0) target = $region13
    $region12: #{tpu_custom_call.1} parent=1 // pred_region
      %s38 = ssub.s32 2048, 2048
      %39 = vsyncadd [#allocation7], %s38
      %s40 = sshll.u32 [#allocation8], 4
      %s41 = int_to_ptr.vmem [resolvable:$true] %s40
      %46 = dma.hbm_to_vmem [thread:$0]  %s2, 2048, %s41, [#allocation7], 128, 128, 8
    $region13: #{tpu_custom_call.1} parent=1 // pred_fallthru
      _
    // Predicated region
    $region14: #{tpu_custom_call.1} parent=1 // pred_check
      _
    $region15: #{tpu_custom_call.1} parent=1 // pred_check_branch
      %48 = sbr.rel (0) target = $region17
    $region16: #{tpu_custom_call.1} parent=1 // pred_region
      %s50 = ssub.s32 1024, 1024
      %51 = vsyncadd [#allocation10], %s50
      %s52 = sshll.u32 [#allocation9], 4
      %s53 = int_to_ptr.vmem [resolvable:$true] %s52
      %58 = dma.hbm_to_vmem [thread:$0]  %s3, 1024, %s53, [#allocation10], 64, 64, 4
    $region17: #{tpu_custom_call.1} parent=1 // pred_fallthru
      _
    // Predicated region
    $region18: #{tpu_custom_call.1} parent=1 // pred_check
      _
    $region19: #{tpu_custom_call.1} parent=1 // pred_check_branch
      %60 = sbr.rel (0) target = $region21
    $region20: #{tpu_custom_call.1} parent=1 // pred_region
      %61 = dma.done [#allocation4], 128
    $region21: #{tpu_custom_call.1} parent=1 // pred_fallthru
      _
    // Predicated region
    $region22: #{tpu_custom_call.1} parent=1 // pred_check
      _
    $region23: #{tpu_custom_call.1} parent=1 // pred_check_branch
      %63 = sbr.rel (0) target = $region25
    $region24: #{tpu_custom_call.1} parent=1 // pred_region
      %64 = dma.done [#allocation7], 3072
    $region25: #{tpu_custom_call.1} parent=1 // pred_fallthru
      _
    // Predicated region
    $region26: #{tpu_custom_call.1} parent=1 // pred_check
      _
    $region27: #{tpu_custom_call.1} parent=1 // pred_check_branch
      %66 = sbr.rel (0) target = $region29
    $region28: #{tpu_custom_call.1} parent=1 // pred_region
      %67 = dma.done [#allocation7], 2048
    $region29: #{tpu_custom_call.1} parent=1 // pred_fallthru
      _
    // Predicated region
    $region30: #{tpu_custom_call.1} parent=1 // pred_check
      _
    $region31: #{tpu_custom_call.1} parent=1 // pred_check_branch
      %69 = sbr.rel (0) target = $region33
    $region32: #{tpu_custom_call.1} parent=1 // pred_region
      %70 = dma.done [#allocation10], 1024
    $region33: #{tpu_custom_call.1} parent=1 // pred_fallthru
      _
    %p72 = scmp.eq.s32.totalorder 0, 0
    // Predicated region
    $region34: #{tpu_custom_call.1} parent=1 // pred_check
      %p73 = pneg %p72
    $region35: #{tpu_custom_call.1} parent=1 // pred_check_branch
      %75 = sbr.rel (%p73) target = $region37
    $region36: #{tpu_custom_call.1} parent=1 // pred_region
      %v76 = vld [vmem:[#allocation3] sm:$0xff]
      %77 = vst [vmem:[#allocation2] sm:$0xff] %v76
    $region37: #{tpu_custom_call.1} parent=1 // pred_fallthru
      _
    %v78 = vld [vmem:[#allocation2] sm:$0xff]
    %v79 = vld [vmem:[#allocation6] sm:$0xff]
    %v80 = vld [vmem:[#allocation6 + $0x8] sm:$0xff]
    %v81 = vld [vmem:[#allocation6 + $0x10] sm:$0xff]
    %v82 = vpack.c.bf16 %v78, %v78
    %v83 = vld [vmem:[#allocation8] sm:$0xff]
    %v84 = vld [vmem:[#allocation8 + $0x8] sm:$0xff]
    %v85 = vld [vmem:[#allocation8 + $0x10] sm:$0xff]
    %v86 = vld [vmem:[#allocation8 + $0x18] sm:$0xff]
    %v87 = vld [vmem:[#allocation8 + $0x20] sm:$0xff]
    %v88 = vld [vmem:[#allocation8 + $0x28] sm:$0xff]
    %v89 = vld [vmem:[#allocation8 + $0x30] sm:$0xff]
    %v90 = vld [vmem:[#allocation8 + $0x38] sm:$0xff]
    %v91 = vld [vmem:[#allocation8 + $0x40] sm:$0xff]
    %v92 = vld [vmem:[#allocation8 + $0x48] sm:$0xff]
    %v93 = vld [vmem:[#allocation8 + $0x50] sm:$0xff]
    %v94 = vld [vmem:[#allocation8 + $0x58] sm:$0xff]
    %v95 = vld [vmem:[#allocation8 + $0x60] sm:$0xff]
    %v96 = vld [vmem:[#allocation8 + $0x68] sm:$0xff]
    %v97 = vld [vmem:[#allocation8 + $0x70] sm:$0xff]
    %v98 = vld [vmem:[#allocation8 + $0x78] sm:$0xff]
    %v115 = vunpack.c.l.b16 %v83
    %v116 = vunpack.c.h.b16 %v83
    %v117 = vunpack.c.l.b16 %v84
    %v118 = vunpack.c.h.b16 %v84
    %v119 = vunpack.c.l.b16 %v85
    %v120 = vunpack.c.h.b16 %v85
    %v121 = vunpack.c.l.b16 %v86
    %v122 = vunpack.c.h.b16 %v86
    %v123 = vunpack.c.l.b16 %v87
    %v124 = vunpack.c.h.b16 %v87
    %v125 = vunpack.c.l.b16 %v88
    %v126 = vunpack.c.h.b16 %v88
    %v127 = vunpack.c.l.b16 %v89
    %v128 = vunpack.c.h.b16 %v89
    %v129 = vunpack.c.l.b16 %v90
    %v130 = vunpack.c.h.b16 %v90
    %v131 = vunpack.c.l.b16 %v91
    %v132 = vunpack.c.h.b16 %v91
    %v133 = vunpack.c.l.b16 %v92
    %v134 = vunpack.c.h.b16 %v92
    %v135 = vunpack.c.l.b16 %v93
    %v136 = vunpack.c.h.b16 %v93
    %v137 = vunpack.c.l.b16 %v94
    %v138 = vunpack.c.h.b16 %v94
    %v139 = vunpack.c.l.b16 %v95
    %v140 = vunpack.c.h.b16 %v95
    %v141 = vunpack.c.l.b16 %v96
    %v142 = vunpack.c.h.b16 %v96
    %v143 = vunpack.c.l.b16 %v97
    %v144 = vunpack.c.h.b16 %v97
    %v145 = vunpack.c.l.b16 %v98
    %v146 = vunpack.c.h.b16 %v98
    %v147 = vpack.c.b16 %v117, %v115
    %v148 = vpack.c.b16 %v118, %v116
    %v149 = vpack.c.b16 %v121, %v119
    %v150 = vpack.c.b16 %v122, %v120
    %v151 = vpack.c.b16 %v125, %v123
    %v152 = vpack.c.b16 %v126, %v124
    %v153 = vpack.c.b16 %v129, %v127
    %v154 = vpack.c.b16 %v130, %v128
    %v155 = vpack.c.b16 %v133, %v131
    %v156 = vpack.c.b16 %v134, %v132
    %v157 = vpack.c.b16 %v137, %v135
    %v158 = vpack.c.b16 %v138, %v136
    %v159 = vpack.c.b16 %v141, %v139
    %v160 = vpack.c.b16 %v142, %v140
    %v161 = vpack.c.b16 %v145, %v143
    %v162 = vpack.c.b16 %v146, %v144
    %179 = vmatprep.subr.bf16.mxu0 %v148
    %180 = vmatpush1.bf16.msra.mxu0 %v147
    %181 = vmatprep.subr.bf16.mxu0 %v150
    %182 = vmatpush1.bf16.msra.mxu0 %v149
    %183 = vmatprep.subr.bf16.mxu0 %v152
    %184 = vmatpush1.bf16.msra.mxu0 %v151
    %185 = vmatprep.subr.bf16.mxu0 %v154
    %186 = vmatpush1.bf16.msra.mxu0 %v153
    %187 = vmatprep.subr.bf16.mxu0 %v156
    %188 = vmatpush1.bf16.msra.mxu0 %v155
    %189 = vmatprep.subr.bf16.mxu0 %v158
    %190 = vmatpush1.bf16.msra.mxu0 %v157
    %191 = vmatprep.subr.bf16.mxu0 %v160
    %192 = vmatpush1.bf16.msra.mxu0 %v159
    %193 = vmatprep.subr.bf16.mxu0 %v162
    %194 = vmatpush1.bf16.msra.mxu0 %v161
    %195 = vmatprep.subr.bf16.mxu0 0
    %196 = vmatpush1.bf16.msra.mxu0 0
    %197 = vmatprep.subr.bf16.mxu0 0
    %198 = vmatpush1.bf16.msra.mxu0 0
    %199 = vmatprep.subr.bf16.mxu0 0
    %200 = vmatpush1.bf16.msra.mxu0 0
    %201 = vmatprep.subr.bf16.mxu0 0
    %202 = vmatpush1.bf16.msra.mxu0 0
    %203 = vmatprep.subr.bf16.mxu0 0
    %204 = vmatpush1.bf16.msra.mxu0 0
    %205 = vmatprep.subr.bf16.mxu0 0
    %206 = vmatpush1.bf16.msra.mxu0 0
    %207 = vmatprep.subr.bf16.mxu0 0
    %208 = vmatpush1.bf16.msra.mxu0 0
    %209 = vmatprep.subr.bf16.mxu0 0
    %210 = vmatpush1.bf16.msra.mxu0 0
    %211 = vmatprep.mubr.bf16.mxu0 0
    %212 = vmatmul.mubr.bf16.gmra.mrb[0].mxu0 %v82
    %v213 = vpop.f32.mrb[0].mxu0
    %v214 = vadd.f32 0.0, %v213
    %v215 = vpop.f32.mrb[0].mxu0
    %v216 = vadd.f32 0.0, %v215
    %v217 = vpop.f32.mrb[0].mxu0
    %v218 = vpop.f32.mrb[0].mxu0
    %219 = vdwg.mxu0
    %v220 = vadd.f32 %v79, %v214
    %v221 = vxor.u32 %v220, 2147483648
    %v222 = vmul.f32 %v221, 1.442695
    %v223 = vpow.pop %v222
    %v224 = vadd.f32 %v223, 1.0
    %v225 = vrcp.pop %v224
    %v226 = vmul.f32 1.0, %v225
    %v227 = vadd.f32 %v80, %v216
    %v228 = vxor.u32 %v227, 2147483648
    %v229 = vmul.f32 %v228, 1.442695
    %v230 = vpow.pop %v229
    %v231 = vadd.f32 %v230, 1.0
    %v232 = vrcp.pop %v231
    %v233 = vmul.f32 1.0, %v232
    %v234 = vmul.f32 %v226, %v78
    %v235 = vpack.c.bf16 %v234, %v234
    %v236 = vld [vmem:[#allocation9] sm:$0xf]
    %v237 = vld [vmem:[#allocation9 + $0x4] sm:$0xf]
    %v238 = vld [vmem:[#allocation9 + $0x8] sm:$0xf]
    %v239 = vld [vmem:[#allocation9 + $0xc] sm:$0xf]
    %v240 = vld [vmem:[#allocation9 + $0x10] sm:$0xf]
    %v241 = vld [vmem:[#allocation9 + $0x14] sm:$0xf]
    %v242 = vld [vmem:[#allocation9 + $0x18] sm:$0xf]
    %v243 = vld [vmem:[#allocation9 + $0x1c] sm:$0xf]
    %v244 = vld [vmem:[#allocation9 + $0x20] sm:$0xf]
    %v245 = vld [vmem:[#allocation9 + $0x24] sm:$0xf]
    %v246 = vld [vmem:[#allocation9 + $0x28] sm:$0xf]
    %v247 = vld [vmem:[#allocation9 + $0x2c] sm:$0xf]
    %v248 = vld [vmem:[#allocation9 + $0x30] sm:$0xf]
    %v249 = vld [vmem:[#allocation9 + $0x34] sm:$0xf]
    %v250 = vld [vmem:[#allocation9 + $0x38] sm:$0xf]
    %v251 = vld [vmem:[#allocation9 + $0x3c] sm:$0xf]
    %v268 = vunpack.c.l.b16 %v236
    %v269 = vunpack.c.l.b16 %v237
    %v270 = vunpack.c.l.b16 %v238
    %v271 = vunpack.c.l.b16 %v239
    %v272 = vunpack.c.l.b16 %v240
    %v273 = vunpack.c.l.b16 %v241
    %v274 = vunpack.c.l.b16 %v242
    %v275 = vunpack.c.l.b16 %v243
    %v276 = vunpack.c.l.b16 %v244
    %v277 = vunpack.c.l.b16 %v245
    %v278 = vunpack.c.l.b16 %v246
    %v279 = vunpack.c.l.b16 %v247
    %v280 = vunpack.c.l.b16 %v248
    %v281 = vunpack.c.l.b16 %v249
    %v282 = vunpack.c.l.b16 %v250
    %v283 = vunpack.c.l.b16 %v251
    %v284 = vpack.c.b16 %v269, %v268
    %v285 = vpack.c.b16 %v271, %v270
    %v286 = vpack.c.b16 %v273, %v272
    %v287 = vpack.c.b16 %v275, %v274
    %v288 = vpack.c.b16 %v277, %v276
    %v289 = vpack.c.b16 %v279, %v278
    %v290 = vpack.c.b16 %v281, %v280
    %v291 = vpack.c.b16 %v283, %v282
    %300 = vmatprep.subr.bf16.mxu0 0
    %301 = vmatpush1.bf16.msra.mxu0 %v284
    %302 = vmatprep.subr.bf16.mxu0 0
    %303 = vmatpush1.bf16.msra.mxu0 %v285
    %304 = vmatprep.subr.bf16.mxu0 0
    %305 = vmatpush1.bf16.msra.mxu0 %v286
    %306 = vmatprep.subr.bf16.mxu0 0
    %307 = vmatpush1.bf16.msra.mxu0 %v287
    %308 = vmatprep.subr.bf16.mxu0 0
    %309 = vmatpush1.bf16.msra.mxu0 %v288
    %310 = vmatprep.subr.bf16.mxu0 0
    %311 = vmatpush1.bf16.msra.mxu0 %v289
    %312 = vmatprep.subr.bf16.mxu0 0
    %313 = vmatpush1.bf16.msra.mxu0 %v290
    %314 = vmatprep.subr.bf16.mxu0 0
    %315 = vmatpush1.bf16.msra.mxu0 %v291
    %316 = vmatprep.subr.bf16.mxu0 0
    %317 = vmatpush1.bf16.msra.mxu0 0
    %318 = vmatprep.subr.bf16.mxu0 0
    %319 = vmatpush1.bf16.msra.mxu0 0
    %320 = vmatprep.subr.bf16.mxu0 0
    %321 = vmatpush1.bf16.msra.mxu0 0
    %322 = vmatprep.subr.bf16.mxu0 0
    %323 = vmatpush1.bf16.msra.mxu0 0
    %324 = vmatprep.subr.bf16.mxu0 0
    %325 = vmatpush1.bf16.msra.mxu0 0
    %326 = vmatprep.subr.bf16.mxu0 0
    %327 = vmatpush1.bf16.msra.mxu0 0
    %328 = vmatprep.subr.bf16.mxu0 0
    %329 = vmatpush1.bf16.msra.mxu0 0
    %330 = vmatprep.subr.bf16.mxu0 0
    %331 = vmatpush1.bf16.msra.mxu0 0
    %332 = vmatprep.mubr.bf16.mxu0 0
    %333 = vmatmul.mubr.bf16.gmra.mrb[0].mxu0 %v235
    %v334 = vpop.f32.mrb[0].mxu0
    %v335 = vadd.f32 0.0, %v334
    %v336 = vpop.f32.mrb[0].mxu0
    %v337 = vpop.f32.mrb[0].mxu0
    %v338 = vpop.f32.mrb[0].mxu0
    %339 = vdwg.mxu0
    %v340 = vadd.f32 %v81, %v335
    %v341 = vtanh.pop %v340
    %v342 = vsub.f32 1.0, %v233
    %v343 = vmul.f32 %v342, %v78
    %v344 = vmul.f32 %v233, %v341
    %v345 = vadd.f32 %v343, %v344
    %346 = vst [vmem:[#allocation11] sm:$0xff] %v345
    %s347 = scalar_lea.vmem [#allocation6], 24
    %v348 = vld [vmem:[%s347] sm:$0xff]
    %v349 = vld [vmem:[%s347 + $0x8] sm:$0xff]
    %v350 = vld [vmem:[%s347 + $0x10] sm:$0xff]
    %v351 = vpack.c.bf16 %v345, %v345
    %v352 = vld [vmem:[#allocation8] sm:$0xff]
    %v353 = vld [vmem:[#allocation8 + $0x8] sm:$0xff]
    %v354 = vld [vmem:[#allocation8 + $0x10] sm:$0xff]
    %v355 = vld [vmem:[#allocation8 + $0x18] sm:$0xff]
    %v356 = vld [vmem:[#allocation8 + $0x20] sm:$0xff]
    %v357 = vld [vmem:[#allocation8 + $0x28] sm:$0xff]
    %v358 = vld [vmem:[#allocation8 + $0x30] sm:$0xff]
    %v359 = vld [vmem:[#allocation8 + $0x38] sm:$0xff]
    %v360 = vld [vmem:[#allocation8 + $0x40] sm:$0xff]
    %v361 = vld [vmem:[#allocation8 + $0x48] sm:$0xff]
    %v362 = vld [vmem:[#allocation8 + $0x50] sm:$0xff]
    %v363 = vld [vmem:[#allocation8 + $0x58] sm:$0xff]
    %v364 = vld [vmem:[#allocation8 + $0x60] sm:$0xff]
    %v365 = vld [vmem:[#allocation8 + $0x68] sm:$0xff]
    %v366 = vld [vmem:[#allocation8 + $0x70] sm:$0xff]
    %v367 = vld [vmem:[#allocation8 + $0x78] sm:$0xff]
    %v384 = vunpack.c.l.b16 %v352
    %v385 = vunpack.c.h.b16 %v352
    %v386 = vunpack.c.l.b16 %v353
    %v387 = vunpack.c.h.b16 %v353
    %v388 = vunpack.c.l.b16 %v354
    %v389 = vunpack.c.h.b16 %v354
    %v390 = vunpack.c.l.b16 %v355
    %v391 = vunpack.c.h.b16 %v355
    %v392 = vunpack.c.l.b16 %v356
    %v393 = vunpack.c.h.b16 %v356
    %v394 = vunpack.c.l.b16 %v357
    %v395 = vunpack.c.h.b16 %v357
    %v396 = vunpack.c.l.b16 %v358
    %v397 = vunpack.c.h.b16 %v358
    %v398 = vunpack.c.l.b16 %v359
    %v399 = vunpack.c.h.b16 %v359
    %v400 = vunpack.c.l.b16 %v360
    %v401 = vunpack.c.h.b16 %v360
    %v402 = vunpack.c.l.b16 %v361
    %v403 = vunpack.c.h.b16 %v361
    %v404 = vunpack.c.l.b16 %v362
    %v405 = vunpack.c.h.b16 %v362
    %v406 = vunpack.c.l.b16 %v363
    %v407 = vunpack.c.h.b16 %v363
    %v408 = vunpack.c.l.b16 %v364
    %v409 = vunpack.c.h.b16 %v364
    %v410 = vunpack.c.l.b16 %v365
    %v411 = vunpack.c.h.b16 %v365
    %v412 = vunpack.c.l.b16 %v366
    %v413 = vunpack.c.h.b16 %v366
    %v414 = vunpack.c.l.b16 %v367
    %v415 = vunpack.c.h.b16 %v367
    %v416 = vpack.c.b16 %v386, %v384
    %v417 = vpack.c.b16 %v387, %v385
    %v418 = vpack.c.b16 %v390, %v388
    %v419 = vpack.c.b16 %v391, %v389
    %v420 = vpack.c.b16 %v394, %v392
    %v421 = vpack.c.b16 %v395, %v393
    %v422 = vpack.c.b16 %v398, %v396
    %v423 = vpack.c.b16 %v399, %v397
    %v424 = vpack.c.b16 %v402, %v400
    %v425 = vpack.c.b16 %v403, %v401
    %v426 = vpack.c.b16 %v406, %v404
    %v427 = vpack.c.b16 %v407, %v405
    %v428 = vpack.c.b16 %v410, %v408
    %v429 = vpack.c.b16 %v411, %v409
    %v430 = vpack.c.b16 %v414, %v412
    %v431 = vpack.c.b16 %v415, %v413
    %448 = vmatprep.subr.bf16.mxu0 %v417
    %449 = vmatpush1.bf16.msra.mxu0 %v416
    %450 = vmatprep.subr.bf16.mxu0 %v419
    %451 = vmatpush1.bf16.msra.mxu0 %v418
    %452 = vmatprep.subr.bf16.mxu0 %v421
    %453 = vmatpush1.bf16.msra.mxu0 %v420
    %454 = vmatprep.subr.bf16.mxu0 %v423
    %455 = vmatpush1.bf16.msra.mxu0 %v422
    %456 = vmatprep.subr.bf16.mxu0 %v425
    %457 = vmatpush1.bf16.msra.mxu0 %v424
    %458 = vmatprep.subr.bf16.mxu0 %v427
    %459 = vmatpush1.bf16.msra.mxu0 %v426
    %460 = vmatprep.subr.bf16.mxu0 %v429
    %461 = vmatpush1.bf16.msra.mxu0 %v428
    %462 = vmatprep.subr.bf16.mxu0 %v431
    %463 = vmatpush1.bf16.msra.mxu0 %v430
    %464 = vmatprep.subr.bf16.mxu0 0
    %465 = vmatpush1.bf16.msra.mxu0 0
    %466 = vmatprep.subr.bf16.mxu0 0
    %467 = vmatpush1.bf16.msra.mxu0 0
    %468 = vmatprep.subr.bf16.mxu0 0
    %469 = vmatpush1.bf16.msra.mxu0 0
    %470 = vmatprep.subr.bf16.mxu0 0
    %471 = vmatpush1.bf16.msra.mxu0 0
    %472 = vmatprep.subr.bf16.mxu0 0
    %473 = vmatpush1.bf16.msra.mxu0 0
    %474 = vmatprep.subr.bf16.mxu0 0
    %475 = vmatpush1.bf16.msra.mxu0 0
    %476 = vmatprep.subr.bf16.mxu0 0
    %477 = vmatpush1.bf16.msra.mxu0 0
    %478 = vmatprep.subr.bf16.mxu0 0
    %479 = vmatpush1.bf16.msra.mxu0 0
    %480 = vmatprep.mubr.bf16.mxu0 0
    %481 = vmatmul.mubr.bf16.gmra.mrb[0].mxu0 %v351
    %v482 = vpop.f32.mrb[0].mxu0
    %v483 = vadd.f32 0.0, %v482
    %v484 = vpop.f32.mrb[0].mxu0
    %v485 = vadd.f32 0.0, %v484
    %v486 = vpop.f32.mrb[0].mxu0
    %v487 = vpop.f32.mrb[0].mxu0
    %488 = vdwg.mxu0
    %v489 = vadd.f32 %v348, %v483
    %v490 = vxor.u32 %v489, 2147483648
    %v491 = vmul.f32 %v490, 1.442695
    %v492 = vpow.pop %v491
    %v493 = vadd.f32 %v492, 1.0
    %v494 = vrcp.pop %v493
    %v495 = vmul.f32 1.0, %v494
    %v496 = vadd.f32 %v349, %v485
    %v497 = vxor.u32 %v496, 2147483648
    %v498 = vmul.f32 %v497, 1.442695
    %v499 = vpow.pop %v498
    %v500 = vadd.f32 %v499, 1.0
    %v501 = vrcp.pop %v500
    %v502 = vmul.f32 1.0, %v501
    %v503 = vmul.f32 %v495, %v345
    %v504 = vpack.c.bf16 %v503, %v503
    %v505 = vld [vmem:[#allocation9] sm:$0xf]
    %v506 = vld [vmem:[#allocation9 + $0x4] sm:$0xf]
    %v507 = vld [vmem:[#allocation9 + $0x8] sm:$0xf]
    %v508 = vld [vmem:[#allocation9 + $0xc] sm:$0xf]
    %v509 = vld [vmem:[#allocation9 + $0x10] sm:$0xf]
    %v510 = vld [vmem:[#allocation9 + $0x14] sm:$0xf]
    %v511 = vld [vmem:[#allocation9 + $0x18] sm:$0xf]
    %v512 = vld [vmem:[#allocation9 + $0x1c] sm:$0xf]
    %v513 = vld [vmem:[#allocation9 + $0x20] sm:$0xf]
    %v514 = vld [vmem:[#allocation9 + $0x24] sm:$0xf]
    %v515 = vld [vmem:[#allocation9 + $0x28] sm:$0xf]
    %v516 = vld [vmem:[#allocation9 + $0x2c] sm:$0xf]
    %v517 = vld [vmem:[#allocation9 + $0x30] sm:$0xf]
    %v518 = vld [vmem:[#allocation9 + $0x34] sm:$0xf]
    %v519 = vld [vmem:[#allocation9 + $0x38] sm:$0xf]
    %v520 = vld [vmem:[#allocation9 + $0x3c] sm:$0xf]
    %v537 = vunpack.c.l.b16 %v505
    %v538 = vunpack.c.l.b16 %v506
    %v539 = vunpack.c.l.b16 %v507
    %v540 = vunpack.c.l.b16 %v508
    %v541 = vunpack.c.l.b16 %v509
    %v542 = vunpack.c.l.b16 %v510
    %v543 = vunpack.c.l.b16 %v511
    %v544 = vunpack.c.l.b16 %v512
    %v545 = vunpack.c.l.b16 %v513
    %v546 = vunpack.c.l.b16 %v514
    %v547 = vunpack.c.l.b16 %v515
    %v548 = vunpack.c.l.b16 %v516
    %v549 = vunpack.c.l.b16 %v517
    %v550 = vunpack.c.l.b16 %v518
    %v551 = vunpack.c.l.b16 %v519
    %v552 = vunpack.c.l.b16 %v520
    %v553 = vpack.c.b16 %v538, %v537
    %v554 = vpack.c.b16 %v540, %v539
    %v555 = vpack.c.b16 %v542, %v541
    %v556 = vpack.c.b16 %v544, %v543
    %v557 = vpack.c.b16 %v546, %v545
    %v558 = vpack.c.b16 %v548, %v547
    %v559 = vpack.c.b16 %v550, %v549
    %v560 = vpack.c.b16 %v552, %v551
    %569 = vmatprep.subr.bf16.mxu0 0
    %570 = vmatpush1.bf16.msra.mxu0 %v553
    %571 = vmatprep.subr.bf16.mxu0 0
    %572 = vmatpush1.bf16.msra.mxu0 %v554
    %573 = vmatprep.subr.bf16.mxu0 0
    %574 = vmatpush1.bf16.msra.mxu0 %v555
    %575 = vmatprep.subr.bf16.mxu0 0
    %576 = vmatpush1.bf16.msra.mxu0 %v556
    %577 = vmatprep.subr.bf16.mxu0 0
    %578 = vmatpush1.bf16.msra.mxu0 %v557
    %579 = vmatprep.subr.bf16.mxu0 0
    %580 = vmatpush1.bf16.msra.mxu0 %v558
    %581 = vmatprep.subr.bf16.mxu0 0
    %582 = vmatpush1.bf16.msra.mxu0 %v559
    %583 = vmatprep.subr.bf16.mxu0 0
    %584 = vmatpush1.bf16.msra.mxu0 %v560
    %585 = vmatprep.subr.bf16.mxu0 0
    %586 = vmatpush1.bf16.msra.mxu0 0
    %587 = vmatprep.subr.bf16.mxu0 0
    %588 = vmatpush1.bf16.msra.mxu0 0
    %589 = vmatprep.subr.bf16.mxu0 0
    %590 = vmatpush1.bf16.msra.mxu0 0
    %591 = vmatprep.subr.bf16.mxu0 0
    %592 = vmatpush1.bf16.msra.mxu0 0
    %593 = vmatprep.subr.bf16.mxu0 0
    %594 = vmatpush1.bf16.msra.mxu0 0
    %595 = vmatprep.subr.bf16.mxu0 0
    %596 = vmatpush1.bf16.msra.mxu0 0
    %597 = vmatprep.subr.bf16.mxu0 0
    %598 = vmatpush1.bf16.msra.mxu0 0
    %599 = vmatprep.subr.bf16.mxu0 0
    %600 = vmatpush1.bf16.msra.mxu0 0
    %601 = vmatprep.mubr.bf16.mxu0 0
    %602 = vmatmul.mubr.bf16.gmra.mrb[0].mxu0 %v504
    %v603 = vpop.f32.mrb[0].mxu0
    %v604 = vadd.f32 0.0, %v603
    %v605 = vpop.f32.mrb[0].mxu0
    %v606 = vpop.f32.mrb[0].mxu0
    %v607 = vpop.f32.mrb[0].mxu0
    %608 = vdwg.mxu0
    %v609 = vadd.f32 %v350, %v604
    %v610 = vtanh.pop %v609
    %v611 = vsub.f32 1.0, %v502
    %v612 = vmul.f32 %v611, %v345
    %v613 = vmul.f32 %v502, %v610
    %v614 = vadd.f32 %v612, %v613
    %s615 = scalar_lea.vmem [#allocation11], 8
    %616 = vst [vmem:[%s615] sm:$0xff] %v614
    %s617 = scalar_lea.vmem [#allocation6], 48
    %v618 = vld [vmem:[%s617] sm:$0xff]
    %v619 = vld [vmem:[%s617 + $0x8] sm:$0xff]
    %v620 = vld [vmem:[%s617 + $0x10] sm:$0xff]
    %v621 = vpack.c.bf16 %v614, %v614
    %v622 = vld [vmem:[#allocation8] sm:$0xff]
    %v623 = vld [vmem:[#allocation8 + $0x8] sm:$0xff]
    %v624 = vld [vmem:[#allocation8 + $0x10] sm:$0xff]
    %v625 = vld [vmem:[#allocation8 + $0x18] sm:$0xff]
    %v626 = vld [vmem:[#allocation8 + $0x20] sm:$0xff]
    %v627 = vld [vmem:[#allocation8 + $0x28] sm:$0xff]
    %v628 = vld [vmem:[#allocation8 + $0x30] sm:$0xff]
    %v629 = vld [vmem:[#allocation8 + $0x38] sm:$0xff]
    %v630 = vld [vmem:[#allocation8 + $0x40] sm:$0xff]
    %v631 = vld [vmem:[#allocation8 + $0x48] sm:$0xff]
    %v632 = vld [vmem:[#allocation8 + $0x50] sm:$0xff]
    %v633 = vld [vmem:[#allocation8 + $0x58] sm:$0xff]
    %v634 = vld [vmem:[#allocation8 + $0x60] sm:$0xff]
    %v635 = vld [vmem:[#allocation8 + $0x68] sm:$0xff]
    %v636 = vld [vmem:[#allocation8 + $0x70] sm:$0xff]
    %v637 = vld [vmem:[#allocation8 + $0x78] sm:$0xff]
    %v654 = vunpack.c.l.b16 %v622
    %v655 = vunpack.c.h.b16 %v622
    %v656 = vunpack.c.l.b16 %v623
    %v657 = vunpack.c.h.b16 %v623
    %v658 = vunpack.c.l.b16 %v624
    %v659 = vunpack.c.h.b16 %v624
    %v660 = vunpack.c.l.b16 %v625
    %v661 = vunpack.c.h.b16 %v625
    %v662 = vunpack.c.l.b16 %v626
    %v663 = vunpack.c.h.b16 %v626
    %v664 = vunpack.c.l.b16 %v627
    %v665 = vunpack.c.h.b16 %v627
    %v666 = vunpack.c.l.b16 %v628
    %v667 = vunpack.c.h.b16 %v628
    %v668 = vunpack.c.l.b16 %v629
    %v669 = vunpack.c.h.b16 %v629
    %v670 = vunpack.c.l.b16 %v630
    %v671 = vunpack.c.h.b16 %v630
    %v672 = vunpack.c.l.b16 %v631
    %v673 = vunpack.c.h.b16 %v631
    %v674 = vunpack.c.l.b16 %v632
    %v675 = vunpack.c.h.b16 %v632
    %v676 = vunpack.c.l.b16 %v633
    %v677 = vunpack.c.h.b16 %v633
    %v678 = vunpack.c.l.b16 %v634
    %v679 = vunpack.c.h.b16 %v634
    %v680 = vunpack.c.l.b16 %v635
    %v681 = vunpack.c.h.b16 %v635
    %v682 = vunpack.c.l.b16 %v636
    %v683 = vunpack.c.h.b16 %v636
    %v684 = vunpack.c.l.b16 %v637
    %v685 = vunpack.c.h.b16 %v637
    %v686 = vpack.c.b16 %v656, %v654
    %v687 = vpack.c.b16 %v657, %v655
    %v688 = vpack.c.b16 %v660, %v658
    %v689 = vpack.c.b16 %v661, %v659
    %v690 = vpack.c.b16 %v664, %v662
    %v691 = vpack.c.b16 %v665, %v663
    %v692 = vpack.c.b16 %v668, %v666
    %v693 = vpack.c.b16 %v669, %v667
    %v694 = vpack.c.b16 %v672, %v670
    %v695 = vpack.c.b16 %v673, %v671
    %v696 = vpack.c.b16 %v676, %v674
    %v697 = vpack.c.b16 %v677, %v675
    %v698 = vpack.c.b16 %v680, %v678
    %v699 = vpack.c.b16 %v681, %v679
    %v700 = vpack.c.b16 %v684, %v682
    %v701 = vpack.c.b16 %v685, %v683
    %718 = vmatprep.subr.bf16.mxu0 %v687
    %719 = vmatpush1.bf16.msra.mxu0 %v686
    %720 = vmatprep.subr.bf16.mxu0 %v689
    %721 = vmatpush1.bf16.msra.mxu0 %v688
    %722 = vmatprep.subr.bf16.mxu0 %v691
    %723 = vmatpush1.bf16.msra.mxu0 %v690
    %724 = vmatprep.subr.bf16.mxu0 %v693
    %725 = vmatpush1.bf16.msra.mxu0 %v692
    %726 = vmatprep.subr.bf16.mxu0 %v695
    %727 = vmatpush1.bf16.msra.mxu0 %v694
    %728 = vmatprep.subr.bf16.mxu0 %v697
    %729 = vmatpush1.bf16.msra.mxu0 %v696
    %730 = vmatprep.subr.bf16.mxu0 %v699
    %731 = vmatpush1.bf16.msra.mxu0 %v698
    %732 = vmatprep.subr.bf16.mxu0 %v701
    %733 = vmatpush1.bf16.msra.mxu0 %v700
    %734 = vmatprep.subr.bf16.mxu0 0
    %735 = vmatpush1.bf16.msra.mxu0 0
    %736 = vmatprep.subr.bf16.mxu0 0
    %737 = vmatpush1.bf16.msra.mxu0 0
    %738 = vmatprep.subr.bf16.mxu0 0
    %739 = vmatpush1.bf16.msra.mxu0 0
    %740 = vmatprep.subr.bf16.mxu0 0
    %741 = vmatpush1.bf16.msra.mxu0 0
    %742 = vmatprep.subr.bf16.mxu0 0
    %743 = vmatpush1.bf16.msra.mxu0 0
    %744 = vmatprep.subr.bf16.mxu0 0
    %745 = vmatpush1.bf16.msra.mxu0 0
    %746 = vmatprep.subr.bf16.mxu0 0
    %747 = vmatpush1.bf16.msra.mxu0 0
    %748 = vmatprep.subr.bf16.mxu0 0
    %749 = vmatpush1.bf16.msra.mxu0 0
    %750 = vmatprep.mubr.bf16.mxu0 0
    %751 = vmatmul.mubr.bf16.gmra.mrb[0].mxu0 %v621
    %v752 = vpop.f32.mrb[0].mxu0
    %v753 = vadd.f32 0.0, %v752
    %v754 = vpop.f32.mrb[0].mxu0
    %v755 = vadd.f32 0.0, %v754
    %v756 = vpop.f32.mrb[0].mxu0
    %v757 = vpop.f32.mrb[0].mxu0
    %758 = vdwg.mxu0
    %v759 = vadd.f32 %v618, %v753
    %v760 = vxor.u32 %v759, 2147483648
    %v761 = vmul.f32 %v760, 1.442695
    %v762 = vpow.pop %v761
    %v763 = vadd.f32 %v762, 1.0
    %v764 = vrcp.pop %v763
    %v765 = vmul.f32 1.0, %v764
    %v766 = vadd.f32 %v619, %v755
    %v767 = vxor.u32 %v766, 2147483648
    %v768 = vmul.f32 %v767, 1.442695
    %v769 = vpow.pop %v768
    %v770 = vadd.f32 %v769, 1.0
    %v771 = vrcp.pop %v770
    %v772 = vmul.f32 1.0, %v771
    %v773 = vmul.f32 %v765, %v614
    %v774 = vpack.c.bf16 %v773, %v773
    %v775 = vld [vmem:[#allocation9] sm:$0xf]
    %v776 = vld [vmem:[#allocation9 + $0x4] sm:$0xf]
    %v777 = vld [vmem:[#allocation9 + $0x8] sm:$0xf]
    %v778 = vld [vmem:[#allocation9 + $0xc] sm:$0xf]
    %v779 = vld [vmem:[#allocation9 + $0x10] sm:$0xf]
    %v780 = vld [vmem:[#allocation9 + $0x14] sm:$0xf]
    %v781 = vld [vmem:[#allocation9 + $0x18] sm:$0xf]
    %v782 = vld [vmem:[#allocation9 + $0x1c] sm:$0xf]
    %v783 = vld [vmem:[#allocation9 + $0x20] sm:$0xf]
    %v784 = vld [vmem:[#allocation9 + $0x24] sm:$0xf]
    %v785 = vld [vmem:[#allocation9 + $0x28] sm:$0xf]
    %v786 = vld [vmem:[#allocation9 + $0x2c] sm:$0xf]
    %v787 = vld [vmem:[#allocation9 + $0x30] sm:$0xf]
    %v788 = vld [vmem:[#allocation9 + $0x34] sm:$0xf]
    %v789 = vld [vmem:[#allocation9 + $0x38] sm:$0xf]
    %v790 = vld [vmem:[#allocation9 + $0x3c] sm:$0xf]
    %v807 = vunpack.c.l.b16 %v775
    %v808 = vunpack.c.l.b16 %v776
    %v809 = vunpack.c.l.b16 %v777
    %v810 = vunpack.c.l.b16 %v778
    %v811 = vunpack.c.l.b16 %v779
    %v812 = vunpack.c.l.b16 %v780
    %v813 = vunpack.c.l.b16 %v781
    %v814 = vunpack.c.l.b16 %v782
    %v815 = vunpack.c.l.b16 %v783
    %v816 = vunpack.c.l.b16 %v784
    %v817 = vunpack.c.l.b16 %v785
    %v818 = vunpack.c.l.b16 %v786
    %v819 = vunpack.c.l.b16 %v787
    %v820 = vunpack.c.l.b16 %v788
    %v821 = vunpack.c.l.b16 %v789
    %v822 = vunpack.c.l.b16 %v790
    %v823 = vpack.c.b16 %v808, %v807
    %v824 = vpack.c.b16 %v810, %v809
    %v825 = vpack.c.b16 %v812, %v811
    %v826 = vpack.c.b16 %v814, %v813
    %v827 = vpack.c.b16 %v816, %v815
    %v828 = vpack.c.b16 %v818, %v817
    %v829 = vpack.c.b16 %v820, %v819
    %v830 = vpack.c.b16 %v822, %v821
    %839 = vmatprep.subr.bf16.mxu0 0
    %840 = vmatpush1.bf16.msra.mxu0 %v823
    %841 = vmatprep.subr.bf16.mxu0 0
    %842 = vmatpush1.bf16.msra.mxu0 %v824
    %843 = vmatprep.subr.bf16.mxu0 0
    %844 = vmatpush1.bf16.msra.mxu0 %v825
    %845 = vmatprep.subr.bf16.mxu0 0
    %846 = vmatpush1.bf16.msra.mxu0 %v826
    %847 = vmatprep.subr.bf16.mxu0 0
    %848 = vmatpush1.bf16.msra.mxu0 %v827
    %849 = vmatprep.subr.bf16.mxu0 0
    %850 = vmatpush1.bf16.msra.mxu0 %v828
    %851 = vmatprep.subr.bf16.mxu0 0
    %852 = vmatpush1.bf16.msra.mxu0 %v829
    %853 = vmatprep.subr.bf16.mxu0 0
    %854 = vmatpush1.bf16.msra.mxu0 %v830
    %855 = vmatprep.subr.bf16.mxu0 0
    %856 = vmatpush1.bf16.msra.mxu0 0
    %857 = vmatprep.subr.bf16.mxu0 0
    %858 = vmatpush1.bf16.msra.mxu0 0
    %859 = vmatprep.subr.bf16.mxu0 0
    %860 = vmatpush1.bf16.msra.mxu0 0
    %861 = vmatprep.subr.bf16.mxu0 0
    %862 = vmatpush1.bf16.msra.mxu0 0
    %863 = vmatprep.subr.bf16.mxu0 0
    %864 = vmatpush1.bf16.msra.mxu0 0
    %865 = vmatprep.subr.bf16.mxu0 0
    %866 = vmatpush1.bf16.msra.mxu0 0
    %867 = vmatprep.subr.bf16.mxu0 0
    %868 = vmatpush1.bf16.msra.mxu0 0
    %869 = vmatprep.subr.bf16.mxu0 0
    %870 = vmatpush1.bf16.msra.mxu0 0
    %871 = vmatprep.mubr.bf16.mxu0 0
    %872 = vmatmul.mubr.bf16.gmra.mrb[0].mxu0 %v774
    %v873 = vpop.f32.mrb[0].mxu0
    %v874 = vadd.f32 0.0, %v873
    %v875 = vpop.f32.mrb[0].mxu0
    %v876 = vpop.f32.mrb[0].mxu0
    %v877 = vpop.f32.mrb[0].mxu0
    %878 = vdwg.mxu0
    %v879 = vadd.f32 %v620, %v874
    %v880 = vtanh.pop %v879
    %v881 = vsub.f32 1.0, %v772
    %v882 = vmul.f32 %v881, %v614
    %v883 = vmul.f32 %v772, %v880
    %v884 = vadd.f32 %v882, %v883
    %s885 = scalar_lea.vmem [#allocation11], 16
    %886 = vst [vmem:[%s885] sm:$0xff] %v884
    %s887 = scalar_lea.vmem [#allocation6], 72
    %v888 = vld [vmem:[%s887] sm:$0xff]
    %v889 = vld [vmem:[%s887 + $0x8] sm:$0xff]
    %v890 = vld [vmem:[%s887 + $0x10] sm:$0xff]
    %v891 = vpack.c.bf16 %v884, %v884
    %v892 = vld [vmem:[#allocation8] sm:$0xff]
    %v893 = vld [vmem:[#allocation8 + $0x8] sm:$0xff]
    %v894 = vld [vmem:[#allocation8 + $0x10] sm:$0xff]
    %v895 = vld [vmem:[#allocation8 + $0x18] sm:$0xff]
    %v896 = vld [vmem:[#allocation8 + $0x20] sm:$0xff]
    %v897 = vld [vmem:[#allocation8 + $0x28] sm:$0xff]
    %v898 = vld [vmem:[#allocation8 + $0x30] sm:$0xff]
    %v899 = vld [vmem:[#allocation8 + $0x38] sm:$0xff]
    %v900 = vld [vmem:[#allocation8 + $0x40] sm:$0xff]
    %v901 = vld [vmem:[#allocation8 + $0x48] sm:$0xff]
    %v902 = vld [vmem:[#allocation8 + $0x50] sm:$0xff]
    %v903 = vld [vmem:[#allocation8 + $0x58] sm:$0xff]
    %v904 = vld [vmem:[#allocation8 + $0x60] sm:$0xff]
    %v905 = vld [vmem:[#allocation8 + $0x68] sm:$0xff]
    %v906 = vld [vmem:[#allocation8 + $0x70] sm:$0xff]
    %v907 = vld [vmem:[#allocation8 + $0x78] sm:$0xff]
    %v924 = vunpack.c.l.b16 %v892
    %v925 = vunpack.c.h.b16 %v892
    %v926 = vunpack.c.l.b16 %v893
    %v927 = vunpack.c.h.b16 %v893
    %v928 = vunpack.c.l.b16 %v894
    %v929 = vunpack.c.h.b16 %v894
    %v930 = vunpack.c.l.b16 %v895
    %v931 = vunpack.c.h.b16 %v895
    %v932 = vunpack.c.l.b16 %v896
    %v933 = vunpack.c.h.b16 %v896
    %v934 = vunpack.c.l.b16 %v897
    %v935 = vunpack.c.h.b16 %v897
    %v936 = vunpack.c.l.b16 %v898
    %v937 = vunpack.c.h.b16 %v898
    %v938 = vunpack.c.l.b16 %v899
    %v939 = vunpack.c.h.b16 %v899
    %v940 = vunpack.c.l.b16 %v900
    %v941 = vunpack.c.h.b16 %v900
    %v942 = vunpack.c.l.b16 %v901
    %v943 = vunpack.c.h.b16 %v901
    %v944 = vunpack.c.l.b16 %v902
    %v945 = vunpack.c.h.b16 %v902
    %v946 = vunpack.c.l.b16 %v903
    %v947 = vunpack.c.h.b16 %v903
    %v948 = vunpack.c.l.b16 %v904
    %v949 = vunpack.c.h.b16 %v904
    %v950 = vunpack.c.l.b16 %v905
    %v951 = vunpack.c.h.b16 %v905
    %v952 = vunpack.c.l.b16 %v906
    %v953 = vunpack.c.h.b16 %v906
    %v954 = vunpack.c.l.b16 %v907
    %v955 = vunpack.c.h.b16 %v907
    %v956 = vpack.c.b16 %v926, %v924
    %v957 = vpack.c.b16 %v927, %v925
    %v958 = vpack.c.b16 %v930, %v928
    %v959 = vpack.c.b16 %v931, %v929
    %v960 = vpack.c.b16 %v934, %v932
    %v961 = vpack.c.b16 %v935, %v933
    %v962 = vpack.c.b16 %v938, %v936
    %v963 = vpack.c.b16 %v939, %v937
    %v964 = vpack.c.b16 %v942, %v940
    %v965 = vpack.c.b16 %v943, %v941
    %v966 = vpack.c.b16 %v946, %v944
    %v967 = vpack.c.b16 %v947, %v945
    %v968 = vpack.c.b16 %v950, %v948
    %v969 = vpack.c.b16 %v951, %v949
    %v970 = vpack.c.b16 %v954, %v952
    %v971 = vpack.c.b16 %v955, %v953
    %988 = vmatprep.subr.bf16.mxu0 %v957
    %989 = vmatpush1.bf16.msra.mxu0 %v956
    %990 = vmatprep.subr.bf16.mxu0 %v959
    %991 = vmatpush1.bf16.msra.mxu0 %v958
    %992 = vmatprep.subr.bf16.mxu0 %v961
    %993 = vmatpush1.bf16.msra.mxu0 %v960
    %994 = vmatprep.subr.bf16.mxu0 %v963
    %995 = vmatpush1.bf16.msra.mxu0 %v962
    %996 = vmatprep.subr.bf16.mxu0 %v965
    %997 = vmatpush1.bf16.msra.mxu0 %v964
    %998 = vmatprep.subr.bf16.mxu0 %v967
    %999 = vmatpush1.bf16.msra.mxu0 %v966
    %1000 = vmatprep.subr.bf16.mxu0 %v969
    %1001 = vmatpush1.bf16.msra.mxu0 %v968
    %1002 = vmatprep.subr.bf16.mxu0 %v971
    %1003 = vmatpush1.bf16.msra.mxu0 %v970
    %1004 = vmatprep.subr.bf16.mxu0 0
    %1005 = vmatpush1.bf16.msra.mxu0 0
    %1006 = vmatprep.subr.bf16.mxu0 0
    %1007 = vmatpush1.bf16.msra.mxu0 0
    %1008 = vmatprep.subr.bf16.mxu0 0
    %1009 = vmatpush1.bf16.msra.mxu0 0
    %1010 = vmatprep.subr.bf16.mxu0 0
    %1011 = vmatpush1.bf16.msra.mxu0 0
    %1012 = vmatprep.subr.bf16.mxu0 0
    %1013 = vmatpush1.bf16.msra.mxu0 0
    %1014 = vmatprep.subr.bf16.mxu0 0
    %1015 = vmatpush1.bf16.msra.mxu0 0
    %1016 = vmatprep.subr.bf16.mxu0 0
    %1017 = vmatpush1.bf16.msra.mxu0 0
    %1018 = vmatprep.subr.bf16.mxu0 0
    %1019 = vmatpush1.bf16.msra.mxu0 0
    %1020 = vmatprep.mubr.bf16.mxu0 0
    %1021 = vmatmul.mubr.bf16.gmra.mrb[0].mxu0 %v891
    %v1022 = vpop.f32.mrb[0].mxu0
    %v1023 = vadd.f32 0.0, %v1022
    %v1024 = vpop.f32.mrb[0].mxu0
    %v1025 = vadd.f32 0.0, %v1024
    %v1026 = vpop.f32.mrb[0].mxu0
    %v1027 = vpop.f32.mrb[0].mxu0
    %1028 = vdwg.mxu0
    %v1029 = vadd.f32 %v888, %v1023
    %v1030 = vxor.u32 %v1029, 2147483648
    %v1031 = vmul.f32 %v1030, 1.442695
    %v1032 = vpow.pop %v1031
    %v1033 = vadd.f32 %v1032, 1.0
    %v1034 = vrcp.pop %v1033
    %v1035 = vmul.f32 1.0, %v1034
    %v1036 = vadd.f32 %v889, %v1025
    %v1037 = vxor.u32 %v1036, 2147483648
    %v1038 = vmul.f32 %v1037, 1.442695
    %v1039 = vpow.pop %v1038
    %v1040 = vadd.f32 %v1039, 1.0
    %v1041 = vrcp.pop %v1040
    %v1042 = vmul.f32 1.0, %v1041
    %v1043 = vmul.f32 %v1035, %v884
    %v1044 = vpack.c.bf16 %v1043, %v1043
    %v1045 = vld [vmem:[#allocation9] sm:$0xf]
    %v1046 = vld [vmem:[#allocation9 + $0x4] sm:$0xf]
    %v1047 = vld [vmem:[#allocation9 + $0x8] sm:$0xf]
    %v1048 = vld [vmem:[#allocation9 + $0xc] sm:$0xf]
    %v1049 = vld [vmem:[#allocation9 + $0x10] sm:$0xf]
    %v1050 = vld [vmem:[#allocation9 + $0x14] sm:$0xf]
    %v1051 = vld [vmem:[#allocation9 + $0x18] sm:$0xf]
    %v1052 = vld [vmem:[#allocation9 + $0x1c] sm:$0xf]
    %v1053 = vld [vmem:[#allocation9 + $0x20] sm:$0xf]
    %v1054 = vld [vmem:[#allocation9 + $0x24] sm:$0xf]
    %v1055 = vld [vmem:[#allocation9 + $0x28] sm:$0xf]
    %v1056 = vld [vmem:[#allocation9 + $0x2c] sm:$0xf]
    %v1057 = vld [vmem:[#allocation9 + $0x30] sm:$0xf]
    %v1058 = vld [vmem:[#allocation9 + $0x34] sm:$0xf]
    %v1059 = vld [vmem:[#allocation9 + $0x38] sm:$0xf]
    %v1060 = vld [vmem:[#allocation9 + $0x3c] sm:$0xf]
    %v1077 = vunpack.c.l.b16 %v1045
    %v1078 = vunpack.c.l.b16 %v1046
    %v1079 = vunpack.c.l.b16 %v1047
    %v1080 = vunpack.c.l.b16 %v1048
    %v1081 = vunpack.c.l.b16 %v1049
    %v1082 = vunpack.c.l.b16 %v1050
    %v1083 = vunpack.c.l.b16 %v1051
    %v1084 = vunpack.c.l.b16 %v1052
    %v1085 = vunpack.c.l.b16 %v1053
    %v1086 = vunpack.c.l.b16 %v1054
    %v1087 = vunpack.c.l.b16 %v1055
    %v1088 = vunpack.c.l.b16 %v1056
    %v1089 = vunpack.c.l.b16 %v1057
    %v1090 = vunpack.c.l.b16 %v1058
    %v1091 = vunpack.c.l.b16 %v1059
    %v1092 = vunpack.c.l.b16 %v1060
    %v1093 = vpack.c.b16 %v1078, %v1077
    %v1094 = vpack.c.b16 %v1080, %v1079
    %v1095 = vpack.c.b16 %v1082, %v1081
    %v1096 = vpack.c.b16 %v1084, %v1083
    %v1097 = vpack.c.b16 %v1086, %v1085
    %v1098 = vpack.c.b16 %v1088, %v1087
    %v1099 = vpack.c.b16 %v1090, %v1089
    %v1100 = vpack.c.b16 %v1092, %v1091
    %1109 = vmatprep.subr.bf16.mxu0 0
    %1110 = vmatpush1.bf16.msra.mxu0 %v1093
    %1111 = vmatprep.subr.bf16.mxu0 0
    %1112 = vmatpush1.bf16.msra.mxu0 %v1094
    %1113 = vmatprep.subr.bf16.mxu0 0
    %1114 = vmatpush1.bf16.msra.mxu0 %v1095
    %1115 = vmatprep.subr.bf16.mxu0 0
    %1116 = vmatpush1.bf16.msra.mxu0 %v1096
    %1117 = vmatprep.subr.bf16.mxu0 0
    %1118 = vmatpush1.bf16.msra.mxu0 %v1097
    %1119 = vmatprep.subr.bf16.mxu0 0
    %1120 = vmatpush1.bf16.msra.mxu0 %v1098
    %1121 = vmatprep.subr.bf16.mxu0 0
    %1122 = vmatpush1.bf16.msra.mxu0 %v1099
    %1123 = vmatprep.subr.bf16.mxu0 0
    %1124 = vmatpush1.bf16.msra.mxu0 %v1100
    %1125 = vmatprep.subr.bf16.mxu0 0
    %1126 = vmatpush1.bf16.msra.mxu0 0
    %1127 = vmatprep.subr.bf16.mxu0 0
    %1128 = vmatpush1.bf16.msra.mxu0 0
    %1129 = vmatprep.subr.bf16.mxu0 0
    %1130 = vmatpush1.bf16.msra.mxu0 0
    %1131 = vmatprep.subr.bf16.mxu0 0
    %1132 = vmatpush1.bf16.msra.mxu0 0
    %1133 = vmatprep.subr.bf16.mxu0 0
    %1134 = vmatpush1.bf16.msra.mxu0 0
    %1135 = vmatprep.subr.bf16.mxu0 0
    %1136 = vmatpush1.bf16.msra.mxu0 0
    %1137 = vmatprep.subr.bf16.mxu0 0
    %1138 = vmatpush1.bf16.msra.mxu0 0
    %1139 = vmatprep.subr.bf16.mxu0 0
    %1140 = vmatpush1.bf16.msra.mxu0 0
    %1141 = vmatprep.mubr.bf16.mxu0 0
    %1142 = vmatmul.mubr.bf16.gmra.mrb[0].mxu0 %v1044
    %v1143 = vpop.f32.mrb[0].mxu0
    %v1144 = vadd.f32 0.0, %v1143
    %v1145 = vpop.f32.mrb[0].mxu0
    %v1146 = vpop.f32.mrb[0].mxu0
    %v1147 = vpop.f32.mrb[0].mxu0
    %1148 = vdwg.mxu0
    %v1149 = vadd.f32 %v890, %v1144
    %v1150 = vtanh.pop %v1149
    %v1151 = vsub.f32 1.0, %v1042
    %v1152 = vmul.f32 %v1151, %v884
    %v1153 = vmul.f32 %v1042, %v1150
    %v1154 = vadd.f32 %v1152, %v1153
    %s1155 = scalar_lea.vmem [#allocation11], 24
    %1156 = vst [vmem:[%s1155] sm:$0xff] %v1154
    %s1157 = scalar_lea.vmem [#allocation6], 96
    %v1158 = vld [vmem:[%s1157] sm:$0xff]
    %v1159 = vld [vmem:[%s1157 + $0x8] sm:$0xff]
    %v1160 = vld [vmem:[%s1157 + $0x10] sm:$0xff]
    %v1161 = vpack.c.bf16 %v1154, %v1154
    %v1162 = vld [vmem:[#allocation8] sm:$0xff]
    %v1163 = vld [vmem:[#allocation8 + $0x8] sm:$0xff]
    %v1164 = vld [vmem:[#allocation8 + $0x10] sm:$0xff]
    %v1165 = vld [vmem:[#allocation8 + $0x18] sm:$0xff]
    %v1166 = vld [vmem:[#allocation8 + $0x20] sm:$0xff]
    %v1167 = vld [vmem:[#allocation8 + $0x28] sm:$0xff]
    %v1168 = vld [vmem:[#allocation8 + $0x30] sm:$0xff]
    %v1169 = vld [vmem:[#allocation8 + $0x38] sm:$0xff]
    %v1170 = vld [vmem:[#allocation8 + $0x40] sm:$0xff]
    %v1171 = vld [vmem:[#allocation8 + $0x48] sm:$0xff]
    %v1172 = vld [vmem:[#allocation8 + $0x50] sm:$0xff]
    %v1173 = vld [vmem:[#allocation8 + $0x58] sm:$0xff]
    %v1174 = vld [vmem:[#allocation8 + $0x60] sm:$0xff]
    %v1175 = vld [vmem:[#allocation8 + $0x68] sm:$0xff]
    %v1176 = vld [vmem:[#allocation8 + $0x70] sm:$0xff]
    %v1177 = vld [vmem:[#allocation8 + $0x78] sm:$0xff]
    %v1194 = vunpack.c.l.b16 %v1162
    %v1195 = vunpack.c.h.b16 %v1162
    %v1196 = vunpack.c.l.b16 %v1163
    %v1197 = vunpack.c.h.b16 %v1163
    %v1198 = vunpack.c.l.b16 %v1164
    %v1199 = vunpack.c.h.b16 %v1164
    %v1200 = vunpack.c.l.b16 %v1165
    %v1201 = vunpack.c.h.b16 %v1165
    %v1202 = vunpack.c.l.b16 %v1166
    %v1203 = vunpack.c.h.b16 %v1166
    %v1204 = vunpack.c.l.b16 %v1167
    %v1205 = vunpack.c.h.b16 %v1167
    %v1206 = vunpack.c.l.b16 %v1168
    %v1207 = vunpack.c.h.b16 %v1168
    %v1208 = vunpack.c.l.b16 %v1169
    %v1209 = vunpack.c.h.b16 %v1169
    %v1210 = vunpack.c.l.b16 %v1170
    %v1211 = vunpack.c.h.b16 %v1170
    %v1212 = vunpack.c.l.b16 %v1171
    %v1213 = vunpack.c.h.b16 %v1171
    %v1214 = vunpack.c.l.b16 %v1172
    %v1215 = vunpack.c.h.b16 %v1172
    %v1216 = vunpack.c.l.b16 %v1173
    %v1217 = vunpack.c.h.b16 %v1173
    %v1218 = vunpack.c.l.b16 %v1174
    %v1219 = vunpack.c.h.b16 %v1174
    %v1220 = vunpack.c.l.b16 %v1175
    %v1221 = vunpack.c.h.b16 %v1175
    %v1222 = vunpack.c.l.b16 %v1176
    %v1223 = vunpack.c.h.b16 %v1176
    %v1224 = vunpack.c.l.b16 %v1177
    %v1225 = vunpack.c.h.b16 %v1177
    %v1226 = vpack.c.b16 %v1196, %v1194
    %v1227 = vpack.c.b16 %v1197, %v1195
    %v1228 = vpack.c.b16 %v1200, %v1198
    %v1229 = vpack.c.b16 %v1201, %v1199
    %v1230 = vpack.c.b16 %v1204, %v1202
    %v1231 = vpack.c.b16 %v1205, %v1203
    %v1232 = vpack.c.b16 %v1208, %v1206
    %v1233 = vpack.c.b16 %v1209, %v1207
    %v1234 = vpack.c.b16 %v1212, %v1210
    %v1235 = vpack.c.b16 %v1213, %v1211
    %v1236 = vpack.c.b16 %v1216, %v1214
    %v1237 = vpack.c.b16 %v1217, %v1215
    %v1238 = vpack.c.b16 %v1220, %v1218
    %v1239 = vpack.c.b16 %v1221, %v1219
    %v1240 = vpack.c.b16 %v1224, %v1222
    %v1241 = vpack.c.b16 %v1225, %v1223
    %1258 = vmatprep.subr.bf16.mxu0 %v1227
    %1259 = vmatpush1.bf16.msra.mxu0 %v1226
    %1260 = vmatprep.subr.bf16.mxu0 %v1229
    %1261 = vmatpush1.bf16.msra.mxu0 %v1228
    %1262 = vmatprep.subr.bf16.mxu0 %v1231
    %1263 = vmatpush1.bf16.msra.mxu0 %v1230
    %1264 = vmatprep.subr.bf16.mxu0 %v1233
    %1265 = vmatpush1.bf16.msra.mxu0 %v1232
    %1266 = vmatprep.subr.bf16.mxu0 %v1235
    %1267 = vmatpush1.bf16.msra.mxu0 %v1234
    %1268 = vmatprep.subr.bf16.mxu0 %v1237
    %1269 = vmatpush1.bf16.msra.mxu0 %v1236
    %1270 = vmatprep.subr.bf16.mxu0 %v1239
    %1271 = vmatpush1.bf16.msra.mxu0 %v1238
    %1272 = vmatprep.subr.bf16.mxu0 %v1241
    %1273 = vmatpush1.bf16.msra.mxu0 %v1240
    %1274 = vmatprep.subr.bf16.mxu0 0
    %1275 = vmatpush1.bf16.msra.mxu0 0
    %1276 = vmatprep.subr.bf16.mxu0 0
    %1277 = vmatpush1.bf16.msra.mxu0 0
    %1278 = vmatprep.subr.bf16.mxu0 0
    %1279 = vmatpush1.bf16.msra.mxu0 0
    %1280 = vmatprep.subr.bf16.mxu0 0
    %1281 = vmatpush1.bf16.msra.mxu0 0
    %1282 = vmatprep.subr.bf16.mxu0 0
    %1283 = vmatpush1.bf16.msra.mxu0 0
    %1284 = vmatprep.subr.bf16.mxu0 0
    %1285 = vmatpush1.bf16.msra.mxu0 0
    %1286 = vmatprep.subr.bf16.mxu0 0
    %1287 = vmatpush1.bf16.msra.mxu0 0
    %1288 = vmatprep.subr.bf16.mxu0 0
    %1289 = vmatpush1.bf16.msra.mxu0 0
    %1290 = vmatprep.mubr.bf16.mxu0 0
    %1291 = vmatmul.mubr.bf16.gmra.mrb[0].mxu0 %v1161
    %v1292 = vpop.f32.mrb[0].mxu0
    %v1293 = vadd.f32 0.0, %v1292
    %v1294 = vpop.f32.mrb[0].mxu0
    %v1295 = vadd.f32 0.0, %v1294
    %v1296 = vpop.f32.mrb[0].mxu0
    %v1297 = vpop.f32.mrb[0].mxu0
    %1298 = vdwg.mxu0
    %v1299 = vadd.f32 %v1158, %v1293
    %v1300 = vxor.u32 %v1299, 2147483648
    %v1301 = vmul.f32 %v1300, 1.442695
    %v1302 = vpow.pop %v1301
    %v1303 = vadd.f32 %v1302, 1.0
    %v1304 = vrcp.pop %v1303
    %v1305 = vmul.f32 1.0, %v1304
    %v1306 = vadd.f32 %v1159, %v1295
    %v1307 = vxor.u32 %v1306, 2147483648
    %v1308 = vmul.f32 %v1307, 1.442695
    %v1309 = vpow.pop %v1308
    %v1310 = vadd.f32 %v1309, 1.0
    %v1311 = vrcp.pop %v1310
    %v1312 = vmul.f32 1.0, %v1311
    %v1313 = vmul.f32 %v1305, %v1154
    %v1314 = vpack.c.bf16 %v1313, %v1313
    %v1315 = vld [vmem:[#allocation9] sm:$0xf]
    %v1316 = vld [vmem:[#allocation9 + $0x4] sm:$0xf]
    %v1317 = vld [vmem:[#allocation9 + $0x8] sm:$0xf]
    %v1318 = vld [vmem:[#allocation9 + $0xc] sm:$0xf]
    %v1319 = vld [vmem:[#allocation9 + $0x10] sm:$0xf]
    %v1320 = vld [vmem:[#allocation9 + $0x14] sm:$0xf]
    %v1321 = vld [vmem:[#allocation9 + $0x18] sm:$0xf]
    %v1322 = vld [vmem:[#allocation9 + $0x1c] sm:$0xf]
    %v1323 = vld [vmem:[#allocation9 + $0x20] sm:$0xf]
    %v1324 = vld [vmem:[#allocation9 + $0x24] sm:$0xf]
    %v1325 = vld [vmem:[#allocation9 + $0x28] sm:$0xf]
    %v1326 = vld [vmem:[#allocation9 + $0x2c] sm:$0xf]
    %v1327 = vld [vmem:[#allocation9 + $0x30] sm:$0xf]
    %v1328 = vld [vmem:[#allocation9 + $0x34] sm:$0xf]
    %v1329 = vld [vmem:[#allocation9 + $0x38] sm:$0xf]
    %v1330 = vld [vmem:[#allocation9 + $0x3c] sm:$0xf]
    %v1347 = vunpack.c.l.b16 %v1315
    %v1348 = vunpack.c.l.b16 %v1316
    %v1349 = vunpack.c.l.b16 %v1317
    %v1350 = vunpack.c.l.b16 %v1318
    %v1351 = vunpack.c.l.b16 %v1319
    %v1352 = vunpack.c.l.b16 %v1320
    %v1353 = vunpack.c.l.b16 %v1321
    %v1354 = vunpack.c.l.b16 %v1322
    %v1355 = vunpack.c.l.b16 %v1323
    %v1356 = vunpack.c.l.b16 %v1324
    %v1357 = vunpack.c.l.b16 %v1325
    %v1358 = vunpack.c.l.b16 %v1326
    %v1359 = vunpack.c.l.b16 %v1327
    %v1360 = vunpack.c.l.b16 %v1328
    %v1361 = vunpack.c.l.b16 %v1329
    %v1362 = vunpack.c.l.b16 %v1330
    %v1363 = vpack.c.b16 %v1348, %v1347
    %v1364 = vpack.c.b16 %v1350, %v1349
    %v1365 = vpack.c.b16 %v1352, %v1351
    %v1366 = vpack.c.b16 %v1354, %v1353
    %v1367 = vpack.c.b16 %v1356, %v1355
    %v1368 = vpack.c.b16 %v1358, %v1357
    %v1369 = vpack.c.b16 %v1360, %v1359
    %v1370 = vpack.c.b16 %v1362, %v1361
    %1379 = vmatprep.subr.bf16.mxu0 0
    %1380 = vmatpush1.bf16.msra.mxu0 %v1363
    %1381 = vmatprep.subr.bf16.mxu0 0
    %1382 = vmatpush1.bf16.msra.mxu0 %v1364
    %1383 = vmatprep.subr.bf16.mxu0 0
    %1384 = vmatpush1.bf16.msra.mxu0 %v1365
    %1385 = vmatprep.subr.bf16.mxu0 0
    %1386 = vmatpush1.bf16.msra.mxu0 %v1366
    %1387 = vmatprep.subr.bf16.mxu0 0
    %1388 = vmatpush1.bf16.msra.mxu0 %v1367
    %1389 = vmatprep.subr.bf16.mxu0 0
    %1390 = vmatpush1.bf16.msra.mxu0 %v1368
    %1391 = vmatprep.subr.bf16.mxu0 0
    %1392 = vmatpush1.bf16.msra.mxu0 %v1369
    %1393 = vmatprep.subr.bf16.mxu0 0
    %1394 = vmatpush1.bf16.msra.mxu0 %v1370
    %1395 = vmatprep.subr.bf16.mxu0 0
    %1396 = vmatpush1.bf16.msra.mxu0 0
    %1397 = vmatprep.subr.bf16.mxu0 0
    %1398 = vmatpush1.bf16.msra.mxu0 0
    %1399 = vmatprep.subr.bf16.mxu0 0
    %1400 = vmatpush1.bf16.msra.mxu0 0
    %1401 = vmatprep.subr.bf16.mxu0 0
    %1402 = vmatpush1.bf16.msra.mxu0 0
    %1403 = vmatprep.subr.bf16.mxu0 0
    %1404 = vmatpush1.bf16.msra.mxu0 0
    %1405 = vmatprep.subr.bf16.mxu0 0
    %1406 = vmatpush1.bf16.msra.mxu0 0
    %1407 = vmatprep.subr.bf16.mxu0 0
    %1408 = vmatpush1.bf16.msra.mxu0 0
    %1409 = vmatprep.subr.bf16.mxu0 0
    %1410 = vmatpush1.bf16.msra.mxu0 0
    %1411 = vmatprep.mubr.bf16.mxu0 0
    %1412 = vmatmul.mubr.bf16.gmra.mrb[0].mxu0 %v1314
    %v1413 = vpop.f32.mrb[0].mxu0
    %v1414 = vadd.f32 0.0, %v1413
    %v1415 = vpop.f32.mrb[0].mxu0
    %v1416 = vpop.f32.mrb[0].mxu0
    %v1417 = vpop.f32.mrb[0].mxu0
    %1418 = vdwg.mxu0
    %v1419 = vadd.f32 %v1160, %v1414
    %v1420 = vtanh.pop %v1419
    %v1421 = vsub.f32 1.0, %v1312
    %v1422 = vmul.f32 %v1421, %v1154
    %v1423 = vmul.f32 %v1312, %v1420
    %v1424 = vadd.f32 %v1422, %v1423
    %s1425 = scalar_lea.vmem [#allocation11], 32
    %1426 = vst [vmem:[%s1425] sm:$0xff] %v1424
    %s1427 = scalar_lea.vmem [#allocation6], 120
    %v1428 = vld [vmem:[%s1427] sm:$0xff]
    %v1429 = vld [vmem:[%s1427 + $0x8] sm:$0xff]
    %v1430 = vld [vmem:[%s1427 + $0x10] sm:$0xff]
    %v1431 = vpack.c.bf16 %v1424, %v1424
    %v1432 = vld [vmem:[#allocation8] sm:$0xff]
    %v1433 = vld [vmem:[#allocation8 + $0x8] sm:$0xff]
    %v1434 = vld [vmem:[#allocation8 + $0x10] sm:$0xff]
    %v1435 = vld [vmem:[#allocation8 + $0x18] sm:$0xff]
    %v1436 = vld [vmem:[#allocation8 + $0x20] sm:$0xff]
    %v1437 = vld [vmem:[#allocation8 + $0x28] sm:$0xff]
    %v1438 = vld [vmem:[#allocation8 + $0x30] sm:$0xff]
    %v1439 = vld [vmem:[#allocation8 + $0x38] sm:$0xff]
    %v1440 = vld [vmem:[#allocation8 + $0x40] sm:$0xff]
    %v1441 = vld [vmem:[#allocation8 + $0x48] sm:$0xff]
    %v1442 = vld [vmem:[#allocation8 + $0x50] sm:$0xff]
    %v1443 = vld [vmem:[#allocation8 + $0x58] sm:$0xff]
    %v1444 = vld [vmem:[#allocation8 + $0x60] sm:$0xff]
    %v1445 = vld [vmem:[#allocation8 + $0x68] sm:$0xff]
    %v1446 = vld [vmem:[#allocation8 + $0x70] sm:$0xff]
    %v1447 = vld [vmem:[#allocation8 + $0x78] sm:$0xff]
    %v1464 = vunpack.c.l.b16 %v1432
    %v1465 = vunpack.c.h.b16 %v1432
    %v1466 = vunpack.c.l.b16 %v1433
    %v1467 = vunpack.c.h.b16 %v1433
    %v1468 = vunpack.c.l.b16 %v1434
    %v1469 = vunpack.c.h.b16 %v1434
    %v1470 = vunpack.c.l.b16 %v1435
    %v1471 = vunpack.c.h.b16 %v1435
    %v1472 = vunpack.c.l.b16 %v1436
    %v1473 = vunpack.c.h.b16 %v1436
    %v1474 = vunpack.c.l.b16 %v1437
    %v1475 = vunpack.c.h.b16 %v1437
    %v1476 = vunpack.c.l.b16 %v1438
    %v1477 = vunpack.c.h.b16 %v1438
    %v1478 = vunpack.c.l.b16 %v1439
    %v1479 = vunpack.c.h.b16 %v1439
    %v1480 = vunpack.c.l.b16 %v1440
    %v1481 = vunpack.c.h.b16 %v1440
    %v1482 = vunpack.c.l.b16 %v1441
    %v1483 = vunpack.c.h.b16 %v1441
    %v1484 = vunpack.c.l.b16 %v1442
    %v1485 = vunpack.c.h.b16 %v1442
    %v1486 = vunpack.c.l.b16 %v1443
    %v1487 = vunpack.c.h.b16 %v1443
    %v1488 = vunpack.c.l.b16 %v1444
    %v1489 = vunpack.c.h.b16 %v1444
    %v1490 = vunpack.c.l.b16 %v1445
    %v1491 = vunpack.c.h.b16 %v1445
    %v1492 = vunpack.c.l.b16 %v1446
    %v1493 = vunpack.c.h.b16 %v1446
    %v1494 = vunpack.c.l.b16 %v1447
    %v1495 = vunpack.c.h.b16 %v1447
    %v1496 = vpack.c.b16 %v1466, %v1464
    %v1497 = vpack.c.b16 %v1467, %v1465
    %v1498 = vpack.c.b16 %v1470, %v1468
    %v1499 = vpack.c.b16 %v1471, %v1469
    %v1500 = vpack.c.b16 %v1474, %v1472
    %v1501 = vpack.c.b16 %v1475, %v1473
    %v1502 = vpack.c.b16 %v1478, %v1476
    %v1503 = vpack.c.b16 %v1479, %v1477
    %v1504 = vpack.c.b16 %v1482, %v1480
    %v1505 = vpack.c.b16 %v1483, %v1481
    %v1506 = vpack.c.b16 %v1486, %v1484
    %v1507 = vpack.c.b16 %v1487, %v1485
    %v1508 = vpack.c.b16 %v1490, %v1488
    %v1509 = vpack.c.b16 %v1491, %v1489
    %v1510 = vpack.c.b16 %v1494, %v1492
    %v1511 = vpack.c.b16 %v1495, %v1493
    %1528 = vmatprep.subr.bf16.mxu0 %v1497
    %1529 = vmatpush1.bf16.msra.mxu0 %v1496
    %1530 = vmatprep.subr.bf16.mxu0 %v1499
    %1531 = vmatpush1.bf16.msra.mxu0 %v1498
    %1532 = vmatprep.subr.bf16.mxu0 %v1501
    %1533 = vmatpush1.bf16.msra.mxu0 %v1500
    %1534 = vmatprep.subr.bf16.mxu0 %v1503
    %1535 = vmatpush1.bf16.msra.mxu0 %v1502
    %1536 = vmatprep.subr.bf16.mxu0 %v1505
    %1537 = vmatpush1.bf16.msra.mxu0 %v1504
    %1538 = vmatprep.subr.bf16.mxu0 %v1507
    %1539 = vmatpush1.bf16.msra.mxu0 %v1506
    %1540 = vmatprep.subr.bf16.mxu0 %v1509
    %1541 = vmatpush1.bf16.msra.mxu0 %v1508
    %1542 = vmatprep.subr.bf16.mxu0 %v1511
    %1543 = vmatpush1.bf16.msra.mxu0 %v1510
    %1544 = vmatprep.subr.bf16.mxu0 0
    %1545 = vmatpush1.bf16.msra.mxu0 0
    %1546 = vmatprep.subr.bf16.mxu0 0
    %1547 = vmatpush1.bf16.msra.mxu0 0
    %1548 = vmatprep.subr.bf16.mxu0 0
    %1549 = vmatpush1.bf16.msra.mxu0 0
    %1550 = vmatprep.subr.bf16.mxu0 0
    %1551 = vmatpush1.bf16.msra.mxu0 0
    %1552 = vmatprep.subr.bf16.mxu0 0
    %1553 = vmatpush1.bf16.msra.mxu0 0
    %1554 = vmatprep.subr.bf16.mxu0 0
    %1555 = vmatpush1.bf16.msra.mxu0 0
    %1556 = vmatprep.subr.bf16.mxu0 0
    %1557 = vmatpush1.bf16.msra.mxu0 0
    %1558 = vmatprep.subr.bf16.mxu0 0
    %1559 = vmatpush1.bf16.msra.mxu0 0
    %1560 = vmatprep.mubr.bf16.mxu0 0
    %1561 = vmatmul.mubr.bf16.gmra.mrb[0].mxu0 %v1431
    %v1562 = vpop.f32.mrb[0].mxu0
    %v1563 = vadd.f32 0.0, %v1562
    %v1564 = vpop.f32.mrb[0].mxu0
    %v1565 = vadd.f32 0.0, %v1564
    %v1566 = vpop.f32.mrb[0].mxu0
    %v1567 = vpop.f32.mrb[0].mxu0
    %1568 = vdwg.mxu0
    %v1569 = vadd.f32 %v1428, %v1563
    %v1570 = vxor.u32 %v1569, 2147483648
    %v1571 = vmul.f32 %v1570, 1.442695
    %v1572 = vpow.pop %v1571
    %v1573 = vadd.f32 %v1572, 1.0
    %v1574 = vrcp.pop %v1573
    %v1575 = vmul.f32 1.0, %v1574
    %v1576 = vadd.f32 %v1429, %v1565
    %v1577 = vxor.u32 %v1576, 2147483648
    %v1578 = vmul.f32 %v1577, 1.442695
    %v1579 = vpow.pop %v1578
    %v1580 = vadd.f32 %v1579, 1.0
    %v1581 = vrcp.pop %v1580
    %v1582 = vmul.f32 1.0, %v1581
    %v1583 = vmul.f32 %v1575, %v1424
    %v1584 = vpack.c.bf16 %v1583, %v1583
    %v1585 = vld [vmem:[#allocation9] sm:$0xf]
    %v1586 = vld [vmem:[#allocation9 + $0x4] sm:$0xf]
    %v1587 = vld [vmem:[#allocation9 + $0x8] sm:$0xf]
    %v1588 = vld [vmem:[#allocation9 + $0xc] sm:$0xf]
    %v1589 = vld [vmem:[#allocation9 + $0x10] sm:$0xf]
    %v1590 = vld [vmem:[#allocation9 + $0x14] sm:$0xf]
    %v1591 = vld [vmem:[#allocation9 + $0x18] sm:$0xf]
    %v1592 = vld [vmem:[#allocation9 + $0x1c] sm:$0xf]
    %v1593 = vld [vmem:[#allocation9 + $0x20] sm:$0xf]
    %v1594 = vld [vmem:[#allocation9 + $0x24] sm:$0xf]
    %v1595 = vld [vmem:[#allocation9 + $0x28] sm:$0xf]
    %v1596 = vld [vmem:[#allocation9 + $0x2c] sm:$0xf]
    %v1597 = vld [vmem:[#allocation9 + $0x30] sm:$0xf]
    %v1598 = vld [vmem:[#allocation9 + $0x34] sm:$0xf]
    %v1599 = vld [vmem:[#allocation9 + $0x38] sm:$0xf]
    %v1600 = vld [vmem:[#allocation9 + $0x3c] sm:$0xf]
    %v1617 = vunpack.c.l.b16 %v1585
    %v1618 = vunpack.c.l.b16 %v1586
    %v1619 = vunpack.c.l.b16 %v1587
    %v1620 = vunpack.c.l.b16 %v1588
    %v1621 = vunpack.c.l.b16 %v1589
    %v1622 = vunpack.c.l.b16 %v1590
    %v1623 = vunpack.c.l.b16 %v1591
    %v1624 = vunpack.c.l.b16 %v1592
    %v1625 = vunpack.c.l.b16 %v1593
    %v1626 = vunpack.c.l.b16 %v1594
    %v1627 = vunpack.c.l.b16 %v1595
    %v1628 = vunpack.c.l.b16 %v1596
    %v1629 = vunpack.c.l.b16 %v1597
    %v1630 = vunpack.c.l.b16 %v1598
    %v1631 = vunpack.c.l.b16 %v1599
    %v1632 = vunpack.c.l.b16 %v1600
    %v1633 = vpack.c.b16 %v1618, %v1617
    %v1634 = vpack.c.b16 %v1620, %v1619
    %v1635 = vpack.c.b16 %v1622, %v1621
    %v1636 = vpack.c.b16 %v1624, %v1623
    %v1637 = vpack.c.b16 %v1626, %v1625
    %v1638 = vpack.c.b16 %v1628, %v1627
    %v1639 = vpack.c.b16 %v1630, %v1629
    %v1640 = vpack.c.b16 %v1632, %v1631
    %1649 = vmatprep.subr.bf16.mxu0 0
    %1650 = vmatpush1.bf16.msra.mxu0 %v1633
    %1651 = vmatprep.subr.bf16.mxu0 0
    %1652 = vmatpush1.bf16.msra.mxu0 %v1634
    %1653 = vmatprep.subr.bf16.mxu0 0
    %1654 = vmatpush1.bf16.msra.mxu0 %v1635
    %1655 = vmatprep.subr.bf16.mxu0 0
    %1656 = vmatpush1.bf16.msra.mxu0 %v1636
    %1657 = vmatprep.subr.bf16.mxu0 0
    %1658 = vmatpush1.bf16.msra.mxu0 %v1637
    %1659 = vmatprep.subr.bf16.mxu0 0
    %1660 = vmatpush1.bf16.msra.mxu0 %v1638
    %1661 = vmatprep.subr.bf16.mxu0 0
    %1662 = vmatpush1.bf16.msra.mxu0 %v1639
    %1663 = vmatprep.subr.bf16.mxu0 0
    %1664 = vmatpush1.bf16.msra.mxu0 %v1640
    %1665 = vmatprep.subr.bf16.mxu0 0
    %1666 = vmatpush1.bf16.msra.mxu0 0
    %1667 = vmatprep.subr.bf16.mxu0 0
    %1668 = vmatpush1.bf16.msra.mxu0 0
    %1669 = vmatprep.subr.bf16.mxu0 0
    %1670 = vmatpush1.bf16.msra.mxu0 0
    %1671 = vmatprep.subr.bf16.mxu0 0
    %1672 = vmatpush1.bf16.msra.mxu0 0
    %1673 = vmatprep.subr.bf16.mxu0 0
    %1674 = vmatpush1.bf16.msra.mxu0 0
    %1675 = vmatprep.subr.bf16.mxu0 0
    %1676 = vmatpush1.bf16.msra.mxu0 0
    %1677 = vmatprep.subr.bf16.mxu0 0
    %1678 = vmatpush1.bf16.msra.mxu0 0
    %1679 = vmatprep.subr.bf16.mxu0 0
    %1680 = vmatpush1.bf16.msra.mxu0 0
    %1681 = vmatprep.mubr.bf16.mxu0 0
    %1682 = vmatmul.mubr.bf16.gmra.mrb[0].mxu0 %v1584
    %v1683 = vpop.f32.mrb[0].mxu0
    %v1684 = vadd.f32 0.0, %v1683
    %v1685 = vpop.f32.mrb[0].mxu0
    %v1686 = vpop.f32.mrb[0].mxu0
    %v1687 = vpop.f32.mrb[0].mxu0
    %1688 = vdwg.mxu0
    %v1689 = vadd.f32 %v1430, %v1684
    %v1690 = vtanh.pop %v1689
    %v1691 = vsub.f32 1.0, %v1582
    %v1692 = vmul.f32 %v1691, %v1424
    %v1693 = vmul.f32 %v1582, %v1690
    %v1694 = vadd.f32 %v1692, %v1693
    %s1695 = scalar_lea.vmem [#allocation11], 40
    %1696 = vst [vmem:[%s1695] sm:$0xff] %v1694
    %s1697 = scalar_lea.vmem [#allocation6], 144
    %v1698 = vld [vmem:[%s1697] sm:$0xff]
    %v1699 = vld [vmem:[%s1697 + $0x8] sm:$0xff]
    %v1700 = vld [vmem:[%s1697 + $0x10] sm:$0xff]
    %v1701 = vpack.c.bf16 %v1694, %v1694
    %v1702 = vld [vmem:[#allocation8] sm:$0xff]
    %v1703 = vld [vmem:[#allocation8 + $0x8] sm:$0xff]
    %v1704 = vld [vmem:[#allocation8 + $0x10] sm:$0xff]
    %v1705 = vld [vmem:[#allocation8 + $0x18] sm:$0xff]
    %v1706 = vld [vmem:[#allocation8 + $0x20] sm:$0xff]
    %v1707 = vld [vmem:[#allocation8 + $0x28] sm:$0xff]
    %v1708 = vld [vmem:[#allocation8 + $0x30] sm:$0xff]
    %v1709 = vld [vmem:[#allocation8 + $0x38] sm:$0xff]
    %v1710 = vld [vmem:[#allocation8 + $0x40] sm:$0xff]
    %v1711 = vld [vmem:[#allocation8 + $0x48] sm:$0xff]
    %v1712 = vld [vmem:[#allocation8 + $0x50] sm:$0xff]
    %v1713 = vld [vmem:[#allocation8 + $0x58] sm:$0xff]
    %v1714 = vld [vmem:[#allocation8 + $0x60] sm:$0xff]
    %v1715 = vld [vmem:[#allocation8 + $0x68] sm:$0xff]
    %v1716 = vld [vmem:[#allocation8 + $0x70] sm:$0xff]
    %v1717 = vld [vmem:[#allocation8 + $0x78] sm:$0xff]
    %v1734 = vunpack.c.l.b16 %v1702
    %v1735 = vunpack.c.h.b16 %v1702
    %v1736 = vunpack.c.l.b16 %v1703
    %v1737 = vunpack.c.h.b16 %v1703
    %v1738 = vunpack.c.l.b16 %v1704
    %v1739 = vunpack.c.h.b16 %v1704
    %v1740 = vunpack.c.l.b16 %v1705
    %v1741 = vunpack.c.h.b16 %v1705
    %v1742 = vunpack.c.l.b16 %v1706
    %v1743 = vunpack.c.h.b16 %v1706
    %v1744 = vunpack.c.l.b16 %v1707
    %v1745 = vunpack.c.h.b16 %v1707
    %v1746 = vunpack.c.l.b16 %v1708
    %v1747 = vunpack.c.h.b16 %v1708
    %v1748 = vunpack.c.l.b16 %v1709
    %v1749 = vunpack.c.h.b16 %v1709
    %v1750 = vunpack.c.l.b16 %v1710
    %v1751 = vunpack.c.h.b16 %v1710
    %v1752 = vunpack.c.l.b16 %v1711
    %v1753 = vunpack.c.h.b16 %v1711
    %v1754 = vunpack.c.l.b16 %v1712
    %v1755 = vunpack.c.h.b16 %v1712
    %v1756 = vunpack.c.l.b16 %v1713
    %v1757 = vunpack.c.h.b16 %v1713
    %v1758 = vunpack.c.l.b16 %v1714
    %v1759 = vunpack.c.h.b16 %v1714
    %v1760 = vunpack.c.l.b16 %v1715
    %v1761 = vunpack.c.h.b16 %v1715
    %v1762 = vunpack.c.l.b16 %v1716
    %v1763 = vunpack.c.h.b16 %v1716
    %v1764 = vunpack.c.l.b16 %v1717
    %v1765 = vunpack.c.h.b16 %v1717
    %v1766 = vpack.c.b16 %v1736, %v1734
    %v1767 = vpack.c.b16 %v1737, %v1735
    %v1768 = vpack.c.b16 %v1740, %v1738
    %v1769 = vpack.c.b16 %v1741, %v1739
    %v1770 = vpack.c.b16 %v1744, %v1742
    %v1771 = vpack.c.b16 %v1745, %v1743
    %v1772 = vpack.c.b16 %v1748, %v1746
    %v1773 = vpack.c.b16 %v1749, %v1747
    %v1774 = vpack.c.b16 %v1752, %v1750
    %v1775 = vpack.c.b16 %v1753, %v1751
    %v1776 = vpack.c.b16 %v1756, %v1754
    %v1777 = vpack.c.b16 %v1757, %v1755
    %v1778 = vpack.c.b16 %v1760, %v1758
    %v1779 = vpack.c.b16 %v1761, %v1759
    %v1780 = vpack.c.b16 %v1764, %v1762
    %v1781 = vpack.c.b16 %v1765, %v1763
    %1798 = vmatprep.subr.bf16.mxu0 %v1767
    %1799 = vmatpush1.bf16.msra.mxu0 %v1766
    %1800 = vmatprep.subr.bf16.mxu0 %v1769
    %1801 = vmatpush1.bf16.msra.mxu0 %v1768
    %1802 = vmatprep.subr.bf16.mxu0 %v1771
    %1803 = vmatpush1.bf16.msra.mxu0 %v1770
    %1804 = vmatprep.subr.bf16.mxu0 %v1773
    %1805 = vmatpush1.bf16.msra.mxu0 %v1772
    %1806 = vmatprep.subr.bf16.mxu0 %v1775
    %1807 = vmatpush1.bf16.msra.mxu0 %v1774
    %1808 = vmatprep.subr.bf16.mxu0 %v1777
    %1809 = vmatpush1.bf16.msra.mxu0 %v1776
    %1810 = vmatprep.subr.bf16.mxu0 %v1779
    %1811 = vmatpush1.bf16.msra.mxu0 %v1778
    %1812 = vmatprep.subr.bf16.mxu0 %v1781
    %1813 = vmatpush1.bf16.msra.mxu0 %v1780
    %1814 = vmatprep.subr.bf16.mxu0 0
    %1815 = vmatpush1.bf16.msra.mxu0 0
    %1816 = vmatprep.subr.bf16.mxu0 0
    %1817 = vmatpush1.bf16.msra.mxu0 0
    %1818 = vmatprep.subr.bf16.mxu0 0
    %1819 = vmatpush1.bf16.msra.mxu0 0
    %1820 = vmatprep.subr.bf16.mxu0 0
    %1821 = vmatpush1.bf16.msra.mxu0 0
    %1822 = vmatprep.subr.bf16.mxu0 0
    %1823 = vmatpush1.bf16.msra.mxu0 0
    %1824 = vmatprep.subr.bf16.mxu0 0
    %1825 = vmatpush1.bf16.msra.mxu0 0
    %1826 = vmatprep.subr.bf16.mxu0 0
    %1827 = vmatpush1.bf16.msra.mxu0 0
    %1828 = vmatprep.subr.bf16.mxu0 0
    %1829 = vmatpush1.bf16.msra.mxu0 0
    %1830 = vmatprep.mubr.bf16.mxu0 0
    %1831 = vmatmul.mubr.bf16.gmra.mrb[0].mxu0 %v1701
    %v1832 = vpop.f32.mrb[0].mxu0
    %v1833 = vadd.f32 0.0, %v1832
    %v1834 = vpop.f32.mrb[0].mxu0
    %v1835 = vadd.f32 0.0, %v1834
    %v1836 = vpop.f32.mrb[0].mxu0
    %v1837 = vpop.f32.mrb[0].mxu0
    %1838 = vdwg.mxu0
    %v1839 = vadd.f32 %v1698, %v1833
    %v1840 = vxor.u32 %v1839, 2147483648
    %v1841 = vmul.f32 %v1840, 1.442695
    %v1842 = vpow.pop %v1841
    %v1843 = vadd.f32 %v1842, 1.0
    %v1844 = vrcp.pop %v1843
    %v1845 = vmul.f32 1.0, %v1844
    %v1846 = vadd.f32 %v1699, %v1835
    %v1847 = vxor.u32 %v1846, 2147483648
    %v1848 = vmul.f32 %v1847, 1.442695
    %v1849 = vpow.pop %v1848
    %v1850 = vadd.f32 %v1849, 1.0
    %v1851 = vrcp.pop %v1850
    %v1852 = vmul.f32 1.0, %v1851
    %v1853 = vmul.f32 %v1845, %v1694
    %v1854 = vpack.c.bf16 %v1853, %v1853
    %v1855 = vld [vmem:[#allocation9] sm:$0xf]
    %v1856 = vld [vmem:[#allocation9 + $0x4] sm:$0xf]
    %v1857 = vld [vmem:[#allocation9 + $0x8] sm:$0xf]
    %v1858 = vld [vmem:[#allocation9 + $0xc] sm:$0xf]
    %v1859 = vld [vmem:[#allocation9 + $0x10] sm:$0xf]
    %v1860 = vld [vmem:[#allocation9 + $0x14] sm:$0xf]
    %v1861 = vld [vmem:[#allocation9 + $0x18] sm:$0xf]
    %v1862 = vld [vmem:[#allocation9 + $0x1c] sm:$0xf]
    %v1863 = vld [vmem:[#allocation9 + $0x20] sm:$0xf]
    %v1864 = vld [vmem:[#allocation9 + $0x24] sm:$0xf]
    %v1865 = vld [vmem:[#allocation9 + $0x28] sm:$0xf]
    %v1866 = vld [vmem:[#allocation9 + $0x2c] sm:$0xf]
    %v1867 = vld [vmem:[#allocation9 + $0x30] sm:$0xf]
    %v1868 = vld [vmem:[#allocation9 + $0x34] sm:$0xf]
    %v1869 = vld [vmem:[#allocation9 + $0x38] sm:$0xf]
    %v1870 = vld [vmem:[#allocation9 + $0x3c] sm:$0xf]
    %v1887 = vunpack.c.l.b16 %v1855
    %v1888 = vunpack.c.l.b16 %v1856
    %v1889 = vunpack.c.l.b16 %v1857
    %v1890 = vunpack.c.l.b16 %v1858
    %v1891 = vunpack.c.l.b16 %v1859
    %v1892 = vunpack.c.l.b16 %v1860
    %v1893 = vunpack.c.l.b16 %v1861
    %v1894 = vunpack.c.l.b16 %v1862
    %v1895 = vunpack.c.l.b16 %v1863
    %v1896 = vunpack.c.l.b16 %v1864
    %v1897 = vunpack.c.l.b16 %v1865
    %v1898 = vunpack.c.l.b16 %v1866
    %v1899 = vunpack.c.l.b16 %v1867
    %v1900 = vunpack.c.l.b16 %v1868
    %v1901 = vunpack.c.l.b16 %v1869
    %v1902 = vunpack.c.l.b16 %v1870
    %v1903 = vpack.c.b16 %v1888, %v1887
    %v1904 = vpack.c.b16 %v1890, %v1889
    %v1905 = vpack.c.b16 %v1892, %v1891
    %v1906 = vpack.c.b16 %v1894, %v1893
    %v1907 = vpack.c.b16 %v1896, %v1895
    %v1908 = vpack.c.b16 %v1898, %v1897
    %v1909 = vpack.c.b16 %v1900, %v1899
    %v1910 = vpack.c.b16 %v1902, %v1901
    %1919 = vmatprep.subr.bf16.mxu0 0
    %1920 = vmatpush1.bf16.msra.mxu0 %v1903
    %1921 = vmatprep.subr.bf16.mxu0 0
    %1922 = vmatpush1.bf16.msra.mxu0 %v1904
    %1923 = vmatprep.subr.bf16.mxu0 0
    %1924 = vmatpush1.bf16.msra.mxu0 %v1905
    %1925 = vmatprep.subr.bf16.mxu0 0
    %1926 = vmatpush1.bf16.msra.mxu0 %v1906
    %1927 = vmatprep.subr.bf16.mxu0 0
    %1928 = vmatpush1.bf16.msra.mxu0 %v1907
    %1929 = vmatprep.subr.bf16.mxu0 0
    %1930 = vmatpush1.bf16.msra.mxu0 %v1908
    %1931 = vmatprep.subr.bf16.mxu0 0
    %1932 = vmatpush1.bf16.msra.mxu0 %v1909
    %1933 = vmatprep.subr.bf16.mxu0 0
    %1934 = vmatpush1.bf16.msra.mxu0 %v1910
    %1935 = vmatprep.subr.bf16.mxu0 0
    %1936 = vmatpush1.bf16.msra.mxu0 0
    %1937 = vmatprep.subr.bf16.mxu0 0
    %1938 = vmatpush1.bf16.msra.mxu0 0
    %1939 = vmatprep.subr.bf16.mxu0 0
    %1940 = vmatpush1.bf16.msra.mxu0 0
    %1941 = vmatprep.subr.bf16.mxu0 0
    %1942 = vmatpush1.bf16.msra.mxu0 0
    %1943 = vmatprep.subr.bf16.mxu0 0
    %1944 = vmatpush1.bf16.msra.mxu0 0
    %1945 = vmatprep.subr.bf16.mxu0 0
    %1946 = vmatpush1.bf16.msra.mxu0 0
    %1947 = vmatprep.subr.bf16.mxu0 0
    %1948 = vmatpush1.bf16.msra.mxu0 0
    %1949 = vmatprep.subr.bf16.mxu0 0
    %1950 = vmatpush1.bf16.msra.mxu0 0
    %1951 = vmatprep.mubr.bf16.mxu0 0
    %1952 = vmatmul.mubr.bf16.gmra.mrb[0].mxu0 %v1854
    %v1953 = vpop.f32.mrb[0].mxu0
    %v1954 = vadd.f32 0.0, %v1953
    %v1955 = vpop.f32.mrb[0].mxu0
    %v1956 = vpop.f32.mrb[0].mxu0
    %v1957 = vpop.f32.mrb[0].mxu0
    %1958 = vdwg.mxu0
    %v1959 = vadd.f32 %v1700, %v1954
    %v1960 = vtanh.pop %v1959
    %v1961 = vsub.f32 1.0, %v1852
    %v1962 = vmul.f32 %v1961, %v1694
    %v1963 = vmul.f32 %v1852, %v1960
    %v1964 = vadd.f32 %v1962, %v1963
    %s1965 = scalar_lea.vmem [#allocation11], 48
    %1966 = vst [vmem:[%s1965] sm:$0xff] %v1964
    %s1967 = scalar_lea.vmem [#allocation6], 168
    %v1968 = vld [vmem:[%s1967] sm:$0xff]
    %v1969 = vld [vmem:[%s1967 + $0x8] sm:$0xff]
    %v1970 = vld [vmem:[%s1967 + $0x10] sm:$0xff]
    %v1971 = vpack.c.bf16 %v1964, %v1964
    %v1972 = vld [vmem:[#allocation8] sm:$0xff]
    %v1973 = vld [vmem:[#allocation8 + $0x8] sm:$0xff]
    %v1974 = vld [vmem:[#allocation8 + $0x10] sm:$0xff]
    %v1975 = vld [vmem:[#allocation8 + $0x18] sm:$0xff]
    %v1976 = vld [vmem:[#allocation8 + $0x20] sm:$0xff]
    %v1977 = vld [vmem:[#allocation8 + $0x28] sm:$0xff]
    %v1978 = vld [vmem:[#allocation8 + $0x30] sm:$0xff]
    %v1979 = vld [vmem:[#allocation8 + $0x38] sm:$0xff]
    %v1980 = vld [vmem:[#allocation8 + $0x40] sm:$0xff]
    %v1981 = vld [vmem:[#allocation8 + $0x48] sm:$0xff]
    %v1982 = vld [vmem:[#allocation8 + $0x50] sm:$0xff]
    %v1983 = vld [vmem:[#allocation8 + $0x58] sm:$0xff]
    %v1984 = vld [vmem:[#allocation8 + $0x60] sm:$0xff]
    %v1985 = vld [vmem:[#allocation8 + $0x68] sm:$0xff]
    %v1986 = vld [vmem:[#allocation8 + $0x70] sm:$0xff]
    %v1987 = vld [vmem:[#allocation8 + $0x78] sm:$0xff]
    %v2004 = vunpack.c.l.b16 %v1972
    %v2005 = vunpack.c.h.b16 %v1972
    %v2006 = vunpack.c.l.b16 %v1973
    %v2007 = vunpack.c.h.b16 %v1973
    %v2008 = vunpack.c.l.b16 %v1974
    %v2009 = vunpack.c.h.b16 %v1974
    %v2010 = vunpack.c.l.b16 %v1975
    %v2011 = vunpack.c.h.b16 %v1975
    %v2012 = vunpack.c.l.b16 %v1976
    %v2013 = vunpack.c.h.b16 %v1976
    %v2014 = vunpack.c.l.b16 %v1977
    %v2015 = vunpack.c.h.b16 %v1977
    %v2016 = vunpack.c.l.b16 %v1978
    %v2017 = vunpack.c.h.b16 %v1978
    %v2018 = vunpack.c.l.b16 %v1979
    %v2019 = vunpack.c.h.b16 %v1979
    %v2020 = vunpack.c.l.b16 %v1980
    %v2021 = vunpack.c.h.b16 %v1980
    %v2022 = vunpack.c.l.b16 %v1981
    %v2023 = vunpack.c.h.b16 %v1981
    %v2024 = vunpack.c.l.b16 %v1982
    %v2025 = vunpack.c.h.b16 %v1982
    %v2026 = vunpack.c.l.b16 %v1983
    %v2027 = vunpack.c.h.b16 %v1983
    %v2028 = vunpack.c.l.b16 %v1984
    %v2029 = vunpack.c.h.b16 %v1984
    %v2030 = vunpack.c.l.b16 %v1985
    %v2031 = vunpack.c.h.b16 %v1985
    %v2032 = vunpack.c.l.b16 %v1986
    %v2033 = vunpack.c.h.b16 %v1986
    %v2034 = vunpack.c.l.b16 %v1987
    %v2035 = vunpack.c.h.b16 %v1987
    %v2036 = vpack.c.b16 %v2006, %v2004
    %v2037 = vpack.c.b16 %v2007, %v2005
    %v2038 = vpack.c.b16 %v2010, %v2008
    %v2039 = vpack.c.b16 %v2011, %v2009
    %v2040 = vpack.c.b16 %v2014, %v2012
    %v2041 = vpack.c.b16 %v2015, %v2013
    %v2042 = vpack.c.b16 %v2018, %v2016
    %v2043 = vpack.c.b16 %v2019, %v2017
    %v2044 = vpack.c.b16 %v2022, %v2020
    %v2045 = vpack.c.b16 %v2023, %v2021
    %v2046 = vpack.c.b16 %v2026, %v2024
    %v2047 = vpack.c.b16 %v2027, %v2025
    %v2048 = vpack.c.b16 %v2030, %v2028
    %v2049 = vpack.c.b16 %v2031, %v2029
    %v2050 = vpack.c.b16 %v2034, %v2032
    %v2051 = vpack.c.b16 %v2035, %v2033
    %2068 = vmatprep.subr.bf16.mxu0 %v2037
    %2069 = vmatpush1.bf16.msra.mxu0 %v2036
    %2070 = vmatprep.subr.bf16.mxu0 %v2039
    %2071 = vmatpush1.bf16.msra.mxu0 %v2038
    %2072 = vmatprep.subr.bf16.mxu0 %v2041
    %2073 = vmatpush1.bf16.msra.mxu0 %v2040
    %2074 = vmatprep.subr.bf16.mxu0 %v2043
    %2075 = vmatpush1.bf16.msra.mxu0 %v2042
    %2076 = vmatprep.subr.bf16.mxu0 %v2045
    %2077 = vmatpush1.bf16.msra.mxu0 %v2044
    %2078 = vmatprep.subr.bf16.mxu0 %v2047
    %2079 = vmatpush1.bf16.msra.mxu0 %v2046
    %2080 = vmatprep.subr.bf16.mxu0 %v2049
    %2081 = vmatpush1.bf16.msra.mxu0 %v2048
    %2082 = vmatprep.subr.bf16.mxu0 %v2051
    %2083 = vmatpush1.bf16.msra.mxu0 %v2050
    %2084 = vmatprep.subr.bf16.mxu0 0
    %2085 = vmatpush1.bf16.msra.mxu0 0
    %2086 = vmatprep.subr.bf16.mxu0 0
    %2087 = vmatpush1.bf16.msra.mxu0 0
    %2088 = vmatprep.subr.bf16.mxu0 0
    %2089 = vmatpush1.bf16.msra.mxu0 0
    %2090 = vmatprep.subr.bf16.mxu0 0
    %2091 = vmatpush1.bf16.msra.mxu0 0
    %2092 = vmatprep.subr.bf16.mxu0 0
    %2093 = vmatpush1.bf16.msra.mxu0 0
    %2094 = vmatprep.subr.bf16.mxu0 0
    %2095 = vmatpush1.bf16.msra.mxu0 0
    %2096 = vmatprep.subr.bf16.mxu0 0
    %2097 = vmatpush1.bf16.msra.mxu0 0
    %2098 = vmatprep.subr.bf16.mxu0 0
    %2099 = vmatpush1.bf16.msra.mxu0 0
    %2100 = vmatprep.mubr.bf16.mxu0 0
    %2101 = vmatmul.mubr.bf16.gmra.mrb[0].mxu0 %v1971
    %v2102 = vpop.f32.mrb[0].mxu0
    %v2103 = vadd.f32 0.0, %v2102
    %v2104 = vpop.f32.mrb[0].mxu0
    %v2105 = vadd.f32 0.0, %v2104
    %v2106 = vpop.f32.mrb[0].mxu0
    %v2107 = vpop.f32.mrb[0].mxu0
    %2108 = vdwg.mxu0
    %v2109 = vadd.f32 %v1968, %v2103
    %v2110 = vxor.u32 %v2109, 2147483648
    %v2111 = vmul.f32 %v2110, 1.442695
    %v2112 = vpow.pop %v2111
    %v2113 = vadd.f32 %v2112, 1.0
    %v2114 = vrcp.pop %v2113
    %v2115 = vmul.f32 1.0, %v2114
    %v2116 = vadd.f32 %v1969, %v2105
    %v2117 = vxor.u32 %v2116, 2147483648
    %v2118 = vmul.f32 %v2117, 1.442695
    %v2119 = vpow.pop %v2118
    %v2120 = vadd.f32 %v2119, 1.0
    %v2121 = vrcp.pop %v2120
    %v2122 = vmul.f32 1.0, %v2121
    %v2123 = vmul.f32 %v2115, %v1964
    %v2124 = vpack.c.bf16 %v2123, %v2123
    %v2125 = vld [vmem:[#allocation9] sm:$0xf]
    %v2126 = vld [vmem:[#allocation9 + $0x4] sm:$0xf]
    %v2127 = vld [vmem:[#allocation9 + $0x8] sm:$0xf]
    %v2128 = vld [vmem:[#allocation9 + $0xc] sm:$0xf]
    %v2129 = vld [vmem:[#allocation9 + $0x10] sm:$0xf]
    %v2130 = vld [vmem:[#allocation9 + $0x14] sm:$0xf]
    %v2131 = vld [vmem:[#allocation9 + $0x18] sm:$0xf]
    %v2132 = vld [vmem:[#allocation9 + $0x1c] sm:$0xf]
    %v2133 = vld [vmem:[#allocation9 + $0x20] sm:$0xf]
    %v2134 = vld [vmem:[#allocation9 + $0x24] sm:$0xf]
    %v2135 = vld [vmem:[#allocation9 + $0x28] sm:$0xf]
    %v2136 = vld [vmem:[#allocation9 + $0x2c] sm:$0xf]
    %v2137 = vld [vmem:[#allocation9 + $0x30] sm:$0xf]
    %v2138 = vld [vmem:[#allocation9 + $0x34] sm:$0xf]
    %v2139 = vld [vmem:[#allocation9 + $0x38] sm:$0xf]
    %v2140 = vld [vmem:[#allocation9 + $0x3c] sm:$0xf]
    %v2157 = vunpack.c.l.b16 %v2125
    %v2158 = vunpack.c.l.b16 %v2126
    %v2159 = vunpack.c.l.b16 %v2127
    %v2160 = vunpack.c.l.b16 %v2128
    %v2161 = vunpack.c.l.b16 %v2129
    %v2162 = vunpack.c.l.b16 %v2130
    %v2163 = vunpack.c.l.b16 %v2131
    %v2164 = vunpack.c.l.b16 %v2132
    %v2165 = vunpack.c.l.b16 %v2133
    %v2166 = vunpack.c.l.b16 %v2134
    %v2167 = vunpack.c.l.b16 %v2135
    %v2168 = vunpack.c.l.b16 %v2136
    %v2169 = vunpack.c.l.b16 %v2137
    %v2170 = vunpack.c.l.b16 %v2138
    %v2171 = vunpack.c.l.b16 %v2139
    %v2172 = vunpack.c.l.b16 %v2140
    %v2173 = vpack.c.b16 %v2158, %v2157
    %v2174 = vpack.c.b16 %v2160, %v2159
    %v2175 = vpack.c.b16 %v2162, %v2161
    %v2176 = vpack.c.b16 %v2164, %v2163
    %v2177 = vpack.c.b16 %v2166, %v2165
    %v2178 = vpack.c.b16 %v2168, %v2167
    %v2179 = vpack.c.b16 %v2170, %v2169
    %v2180 = vpack.c.b16 %v2172, %v2171
    %2189 = vmatprep.subr.bf16.mxu0 0
    %2190 = vmatpush1.bf16.msra.mxu0 %v2173
    %2191 = vmatprep.subr.bf16.mxu0 0
    %2192 = vmatpush1.bf16.msra.mxu0 %v2174
    %2193 = vmatprep.subr.bf16.mxu0 0
    %2194 = vmatpush1.bf16.msra.mxu0 %v2175
    %2195 = vmatprep.subr.bf16.mxu0 0
    %2196 = vmatpush1.bf16.msra.mxu0 %v2176
    %2197 = vmatprep.subr.bf16.mxu0 0
    %2198 = vmatpush1.bf16.msra.mxu0 %v2177
    %2199 = vmatprep.subr.bf16.mxu0 0
    %2200 = vmatpush1.bf16.msra.mxu0 %v2178
    %2201 = vmatprep.subr.bf16.mxu0 0
    %2202 = vmatpush1.bf16.msra.mxu0 %v2179
    %2203 = vmatprep.subr.bf16.mxu0 0
    %2204 = vmatpush1.bf16.msra.mxu0 %v2180
    %2205 = vmatprep.subr.bf16.mxu0 0
    %2206 = vmatpush1.bf16.msra.mxu0 0
    %2207 = vmatprep.subr.bf16.mxu0 0
    %2208 = vmatpush1.bf16.msra.mxu0 0
    %2209 = vmatprep.subr.bf16.mxu0 0
    %2210 = vmatpush1.bf16.msra.mxu0 0
    %2211 = vmatprep.subr.bf16.mxu0 0
    %2212 = vmatpush1.bf16.msra.mxu0 0
    %2213 = vmatprep.subr.bf16.mxu0 0
    %2214 = vmatpush1.bf16.msra.mxu0 0
    %2215 = vmatprep.subr.bf16.mxu0 0
    %2216 = vmatpush1.bf16.msra.mxu0 0
    %2217 = vmatprep.subr.bf16.mxu0 0
    %2218 = vmatpush1.bf16.msra.mxu0 0
    %2219 = vmatprep.subr.bf16.mxu0 0
    %2220 = vmatpush1.bf16.msra.mxu0 0
    %2221 = vmatprep.mubr.bf16.mxu0 0
    %2222 = vmatmul.mubr.bf16.gmra.mrb[0].mxu0 %v2124
    %v2223 = vpop.f32.mrb[0].mxu0
    %v2224 = vadd.f32 0.0, %v2223
    %v2225 = vpop.f32.mrb[0].mxu0
    %v2226 = vpop.f32.mrb[0].mxu0
    %v2227 = vpop.f32.mrb[0].mxu0
    %2228 = vdwg.mxu0
    %v2229 = vadd.f32 %v1970, %v2224
    %v2230 = vtanh.pop %v2229
    %v2231 = vsub.f32 1.0, %v2122
    %v2232 = vmul.f32 %v2231, %v1964
    %v2233 = vmul.f32 %v2122, %v2230
    %v2234 = vadd.f32 %v2232, %v2233
    %s2235 = scalar_lea.vmem [#allocation11], 56
    %2236 = vst [vmem:[%s2235] sm:$0xff] %v2234
    %2237 = vst [vmem:[#allocation2] sm:$0xff] %v2234
    // Predicated region
    $region38: #{tpu_custom_call.1} parent=1 // pred_check
      _
    $region39: #{tpu_custom_call.1} parent=1 // pred_check_branch
      %2239 = sbr.rel (0) target = $region41
    $region40: #{tpu_custom_call.1} parent=1 // pred_region
      %s2241 = ssub.s32 1024, 1024
      %2242 = vsyncadd [#allocation5], %s2241
      %s2243 = sshll.u32 [#allocation11], 4
      %s2244 = int_to_ptr.vmem [resolvable:$true] %s2243
      %2249 = dma.vmem_to_hbm [thread:$0]  %s2244, 1024, %s4, [#allocation5], 128, 128, 8
    $region41: #{tpu_custom_call.1} parent=1 // pred_fallthru
      _
    // Predicated region
    $region42: #{tpu_custom_call.1} parent=1 // pred_check
      _
    $region43: #{tpu_custom_call.1} parent=1 // pred_check_branch
      %2251 = sbr.rel (0) target = $region45
    $region44: #{tpu_custom_call.1} parent=1 // pred_region
      %2252 = dma.done [#allocation5], 1024
    $region45: #{tpu_custom_call.1} parent=1 // pred_fallthru
      _
    %2253 = vsyncpa [#allocation4], 1
    %2254 = vsyncpa [#allocation7], 1
    %2255 = vsyncpa [#allocation10], 1
    %2256 = vsyncpa [#allocation5], 1

</llo_original>
